<compile_context>
chip_gen: v7x
topology: tpu7x:2x2x1
jax: 0.10.0
libtpu: 0.0.40
codegen_flags: <defaults>
</compile_context>

<pallas_src>
import functools

import jax
import jax.numpy as jnp
from jax import lax
from jax.experimental import pallas as pl
from jax.experimental.pallas import tpu as pltpu


def _adaptive_reg_kernel(x_ref, prev_ref, next_ref, *out_refs,
                         TD, D, H, W, lambda_base, mu_base, beta_adaptive,
                         beta_norm, neg_inv_threshold, center, half_inv_scale,
                         compute_fields):
    if compute_fields:
        lam_ref, mu_ref, aw_ref, sums_ref = out_refs
    else:
        (sums_ref,) = out_refs

    f32 = jnp.float32
    d_blk = pl.program_id(1)

    # torch.gradient (unit spacing, edge_order=1):
    #   interior i : 0.5 * (f[i+1] - f[i-1])
    #   i == 0     : f[1]   - f[0]
    #   i == n-1   : f[n-1] - f[n-2]
    # Implemented as edge-replicated neighbours + a 1.0-vs-0.5 boundary weight.
    # Weights/masks are broadcast-shaped so they fold into the gradient multiply.
    idx_d = lax.broadcasted_iota(jnp.int32, (TD, 1, 1), 0) + d_blk * TD
    wd = jnp.where((idx_d == 0) | (idx_d == D - 1), f32(1.0), f32(0.5))

    idx_h = lax.broadcasted_iota(jnp.int32, (1, H, 1), 1)
    first_h = idx_h == 0
    last_h = idx_h == H - 1
    wh = jnp.where(first_h | last_h, f32(1.0), f32(0.5))

    idx_w = lax.broadcasted_iota(jnp.int32, (1, 1, W), 2)
    first_w = idx_w == 0
    last_w = idx_w == W - 1
    ww = jnp.where(first_w | last_w, f32(1.0), f32(0.5))

    def grads(c):
        x = x_ref[0, c].astype(f32)          # (TD, H, W) slab
        prev = prev_ref[0, c].astype(f32)    # (1, H, W) plane before slab (clamped)
        nxt = next_ref[0, c].astype(f32)     # (1, H, W) plane after slab (clamped)

        # D axis: halo planes come from the 1-plane inputs; concat / slice along
        # the leading axis is vreg-plane granular (no relayout).
        xd = jnp.concatenate([prev, x, nxt], axis=0)        # (TD+2, H, W)
        gd = (xd[2:TD + 2] - xd[0:TD]) * wd

        # H (sublane) / W (lane): circular roll on the XLU + edge replication
        # via a broadcast select (no misaligned slices, no padded copies).
        xh_p = jnp.where(last_h, x, pltpu.roll(x, H - 1, axis=1))   # f[h+1]
        xh_m = jnp.where(first_h, x, pltpu.roll(x, 1, axis=1))      # f[h-1]
        gh = (xh_p - xh_m) * wh

        xw_p = jnp.where(last_w, x, pltpu.roll(x, W - 1, axis=2))   # f[w+1]
        xw_m = jnp.where(first_w, x, pltpu.roll(x, 1, axis=2))      # f[w-1]
        gw = (xw_p - xw_m) * ww
        return gd, gh, gw

    gdx, ghx, gwx = grads(0)   # gradients of channel 0 along (D, H, W)
    gdy, ghy, gwy = grads(1)
    gdz, ghz, gwz = grads(2)

    # Diagonal squares reused by both the gradient norm and the shear term.
    sq_xx = gdx * gdx
    sq_yy = ghy * ghy
    sq_zz = gwz * gwz
    gnorm = jnp.sqrt(sq_xx + sq_yy + sq_zz
                     + ghx * ghx + gwx * gwx
                     + gdy * gdy + gwy * gwy
                     + gdz * gdz + ghz * ghz)

    lam = lambda_base * (1.0 + beta_norm * jnp.exp(gnorm * neg_inv_threshold))
    # sigmoid(t) = 0.5 * (tanh(t / 2) + 1); divide strength-reduced to multiply.
    sig = 0.5 * (jnp.tanh((center - gnorm) * half_inv_scale) + 1.0)
    mu = mu_base * (1.0 + beta_norm * sig)
    aw = 1.0 + beta_adaptive * jnp.exp(-gnorm)

    e_xy = 0.5 * (ghx + gdy)
    e_xz = 0.5 * (gwx + gdz)
    e_yz = 0.5 * (gwy + ghz)
    trace = gdx + ghy + gwz
    energy = (0.5 * lam) * (trace * trace) + mu * (
        sq_xx + sq_yy + sq_zz
        + 2.0 * (e_xy * e_xy + e_xz * e_xz + e_yz * e_yz))
    adaptive_reg = aw * energy

    jac = (gdx * (ghy * gwz - gwy * ghz)
           - ghx * (gdy * gwz - gwy * gdz)
           + gwx * (gdy * ghz - ghy * gdz))
    neg = jnp.maximum(-jac, f32(0.0))

    if compute_fields:
        lam_ref[0] = lam
        mu_ref[0] = mu
        aw_ref[0] = aw

    # Per-(batch, slab) partial sums go to private SMEM slots: no cross-iteration
    # accumulator, so both grid axes stay "parallel".
    sums_ref[0, 0, 0] = jnp.sum(adaptive_reg)
    sums_ref[0, 0, 1] = jnp.sum(neg * neg)


def _slab_vmem_bytes(td, H, W, compute_fields):
    """Rough per-grid-step VMEM footprint for a D-slab of `td` planes."""
    plane = 4 * H * W
    blk = 3 * td * plane + 6 * plane           # input slab + 2 halo planes x 3ch
    if compute_fields:
        blk += 3 * td * plane                  # lam / mu / aw output slabs
    return 2 * blk + 14 * td * plane           # double buffering + live temporaries


def _pick_block_d(D, H, W, compute_fields, budget_bytes):
    """Largest divisor of D whose slab working set fits the VMEM budget."""
    for td in range(D, 0, -1):
        if D % td == 0 and _slab_vmem_bytes(td, H, W, compute_fields) <= budget_bytes:
            return td
    return 1


def adaptive_regularization_loss(deformation_field, volume=None, *,
                                 lambda_base, mu_base, lambda_folding=10.0,
                                 beta_adaptive=1.0, beta_norm=1.0,
                                 threshold=0.1, center=0.05, scale=0.01,
                                 compute_fields=True, block_d=None,
                                 vmem_budget_bytes=24 * 1024 * 1024):
    """Equivalent of AdaptiveRegularizationLoss3_1mod(...)(deformation_field, volume).

    `volume` is unused by the reference forward; it is accepted and ignored.
    Returns (total_loss, lambda_strain, mu_shear, adaptive_weight); the three
    fields are None when compute_fields=False (loss-only fast path)."""
    del volume
    x = deformation_field
    if x.dtype not in (jnp.float32, jnp.bfloat16):
        x = x.astype(jnp.float32)
    B, C, D, H, W = x.shape
    assert C == 3, "deformation field must have 3 channels"
    assert D >= 2 and H >= 2 and W >= 2, "torch.gradient needs each dim >= 2"

    if block_d is None:
        TD = _pick_block_d(D, H, W, compute_fields, vmem_budget_bytes)
    else:
        assert D % int(block_d) == 0, "block_d must divide D"
        TD = int(block_d)
    nD = D // TD

    kernel = functools.partial(
        _adaptive_reg_kernel, TD=TD, D=D, H=H, W=W,
        lambda_base=float(lambda_base), mu_base=float(mu_base),
        beta_adaptive=float(beta_adaptive), beta_norm=float(beta_norm),
        neg_inv_threshold=-1.0 / float(threshold), center=float(center),
        half_inv_scale=0.5 / float(scale), compute_fields=compute_fields)

    # Input: the main slab plus one clamped halo plane on each side of it
    # (same HBM array passed three times; halo DMAs are 1 plane x 3 channels).
    in_specs = [
        pl.BlockSpec((1, 3, TD, H, W), lambda b, d: (b, 0, d, 0, 0)),
        pl.BlockSpec((1, 3, 1, H, W),
                     lambda b, d: (b, 0, jnp.maximum(d * TD - 1, 0), 0, 0)),
        pl.BlockSpec((1, 3, 1, H, W),
                     lambda b, d: (b, 0, jnp.minimum((d + 1) * TD, D - 1), 0, 0)),
    ]

    sums_shape = jax.ShapeDtypeStruct((B, nD, 2), jnp.float32)
    sums_spec = pl.BlockSpec((1, 1, 2), lambda b, d: (b, d, 0),
                             memory_space=pltpu.MemorySpace.SMEM)
    if compute_fields:
        field = jax.ShapeDtypeStruct((B, D, H, W), jnp.float32)
        fspec = pl.BlockSpec((1, TD, H, W), lambda b, d: (b, d, 0, 0))
        out_shape = (field, field, field, sums_shape)
        out_specs = (fspec, fspec, fspec, sums_spec)
    else:
        out_shape = (sums_shape,)
        out_specs = (sums_spec,)

    nvox = B * D * H * W
    est = _slab_vmem_bytes(TD, H, W, compute_fields)
    vmem_limit = int(min(max(2 * est, 32 * 1024 * 1024), 64 * 1024 * 1024))
    bytes_accessed = int(3 * nvox * jnp.dtype(x.dtype).itemsize
                         + (12 * nvox if compute_fields else 0) + B * nD * 8)

    outs = pl.pallas_call(
        kernel,
        out_shape=out_shape,
        grid_spec=pltpu.PrefetchScalarGridSpec(
            num_scalar_prefetch=0,
            grid=(B, nD),
            in_specs=in_specs,
            out_specs=out_specs,
        ),
        compiler_params=pltpu.CompilerParams(
            dimension_semantics=("parallel", "parallel"),
            vmem_limit_bytes=vmem_limit,
        ),
        cost_estimate=pl.CostEstimate(
            flops=int(110 * nvox),
            transcendentals=int(4 * nvox),
            bytes_accessed=bytes_accessed,
        ),
    )(x, x, x)

    if compute_fields:
        lam, mu, aw, sums = outs
    else:
        (sums,) = outs
        lam = mu = aw = None

    # Cheap scalar glue in plain JAX (same denominators as torch.mean).
    total_loss = (jnp.sum(sums[..., 0])
                  + float(lambda_folding) * jnp.sum(sums[..., 1])) / jnp.float32(nvox)
    return total_loss, lam, mu, aw


def _reference(df, *, lambda_base, mu_base, lambda_folding, beta_adaptive,
               beta_norm, threshold, center, scale):
    """Pure-JAX reference mirroring the PyTorch forward (torch.gradient,
    edge_order=1, unit spacing)."""
    def grad(x, axis):
        n = x.shape[axis]
        central = (lax.slice_in_dim(x, 2, n, axis=axis)
                   - lax.slice_in_dim(x, 0, n - 2, axis=axis)) * 0.5
        first = (lax.slice_in_dim(x, 1, 2, axis=axis)
                 - lax.slice_in_dim(x, 0, 1, axis=axis))
        last = (lax.slice_in_dim(x, n - 1, n, axis=axis)
                - lax.slice_in_dim(x, n - 2, n - 1, axis=axis))
        return jnp.concatenate([first, central, last], axis=axis)

    dfdx = [grad(df[:, 0], a) for a in (1, 2, 3)]
    dfdy = [grad(df[:, 1], a) for a in (1, 2, 3)]
    dfdz = [grad(df[:, 2], a) for a in (1, 2, 3)]
    gnorm = jnp.sqrt(sum(g ** 2 for g in dfdx + dfdy + dfdz))
    lam = lambda_base * (1 + beta_norm * jnp.exp(-gnorm / threshold))
    mu = mu_base * (1 + beta_norm * jax.nn.sigmoid(-(gnorm - center) / scale))
    e_xx, e_yy, e_zz = dfdx[0], dfdy[1], dfdz[2]
    e_xy = 0.5 * (dfdx[1] + dfdy[0])
    e_xz = 0.5 * (dfdx[2] + dfdz[0])
    e_yz = 0.5 * (dfdy[2] + dfdz[1])
    trace = e_xx + e_yy + e_zz
    strain = 0.5 * lam * trace ** 2
    shear = mu * (e_xx ** 2 + e_yy ** 2 + e_zz ** 2
                  + 2 * (e_xy ** 2 + e_xz ** 2 + e_yz ** 2))
    energy = strain + shear
    aw = 1 + beta_adaptive * jnp.exp(-gnorm)
    adaptive_reg = aw * energy
    jac = (dfdx[0] * (dfdy[1] * dfdz[2] - dfdy[2] * dfdz[1])
           - dfdx[1] * (dfdy[0] * dfdz[2] - dfdy[2] * dfdz[0])
           + dfdx[2] * (dfdy[0] * dfdz[1] - dfdy[1] * dfdz[0]))
    folding = jnp.mean(jnp.maximum(-jac, 0.0) ** 2)
    total = jnp.mean(adaptive_reg) + lambda_folding * folding
    return total, lam, mu, aw


if __name__ == "__main__":
    key = jax.random.PRNGKey(0)
    k1, k2 = jax.random.split(key)
    # Small but lane-dense shape: last dim = 128, H multiple of 8.
    B, C, D, H, W = 2, 3, 8, 16, 128
    deformation_field = 0.1 * jax.random.normal(
        k1, (B, C, D, H, W), dtype=jnp.float32)
    volume = jax.random.normal(k2, (B, 1, D, H, W), dtype=jnp.float32)  # unused

    params = dict(lambda_base=1.0, mu_base=1.0, lambda_folding=10.0,
                  beta_adaptive=1.0, beta_norm=1.0, threshold=0.1,
                  center=0.05, scale=0.01)

    ref_total, ref_lam, ref_mu, ref_aw = _reference(deformation_field, **params)

    # (1) Default path: whole volume per batch (fits VMEM budget at this size).
    total, lam, mu, aw = adaptive_regularization_loss(
        deformation_field, volume, **params)
    jax.block_until_ready(total)
    assert jnp.allclose(total, ref_total, rtol=1e-4, atol=1e-6), (total, ref_total)
    assert jnp.allclose(lam, ref_lam, rtol=2e-5, atol=2e-5)
    assert jnp.allclose(mu, ref_mu, rtol=2e-5, atol=2e-5)
    assert jnp.allclose(aw, ref_aw, rtol=2e-5, atol=2e-5)

    # (2) D-slab tiled path (exercises the clamped halo-plane index maps).
    total2, lam2, mu2, aw2 = adaptive_regularization_loss(
        deformation_field, volume, block_d=2, **params)
    jax.block_until_ready(total2)
    assert jnp.allclose(total2, ref_total, rtol=1e-4, atol=1e-6), (total2, ref_total)
    assert jnp.allclose(lam2, ref_lam, rtol=2e-5, atol=2e-5)
    assert jnp.allclose(mu2, ref_mu, rtol=2e-5, atol=2e-5)
    assert jnp.allclose(aw2, ref_aw, rtol=2e-5, atol=2e-5)

    # (3) Loss-only fast path (no lam/mu/aw stores).
    total3, _, _, _ = adaptive_regularization_loss(
        deformation_field, volume, compute_fields=False, **params)
    jax.block_until_ready(total3)
    assert jnp.allclose(total3, ref_total, rtol=1e-4, atol=1e-6), (total3, ref_total)

    print("KERNEL_OK")
</pallas_src>

<mosaic_0001>
module attributes {stable_mosaic.version = 11 : i64} {
  func.func @_adaptive_reg_kernel(%arg0: i32, %arg1: i32, %arg2: memref<1x3x8x16x128xf32, #tpu.memory_space<vmem>>, %arg3: memref<1x3x1x16x128xf32, #tpu.memory_space<vmem>>, %arg4: memref<1x3x1x16x128xf32, #tpu.memory_space<vmem>>, %arg5: memref<1x8x16x128xf32, #tpu.memory_space<vmem>>, %arg6: memref<1x8x16x128xf32, #tpu.memory_space<vmem>>, %arg7: memref<1x8x16x128xf32, #tpu.memory_space<vmem>>, %arg8: memref<1x1x2xf32, #tpu.memory_space<smem>>) attributes {dimension_semantics = [#tpu.dimension_semantics<parallel>, #tpu.dimension_semantics<parallel>], iteration_bounds = array<i64: 2, 1>, scalar_prefetch = 0 : i64, scratch_operands = 0 : i64, tpu.core_type = #tpu.core_type<tc>, window_params = [{transform_indices = @transform_0, window_bounds = array<i64: 1, 3, 8, 16, 128>}, {transform_indices = @transform_1, window_bounds = array<i64: 1, 3, 1, 16, 128>}, {transform_indices = @transform_2, window_bounds = array<i64: 1, 3, 1, 16, 128>}, {transform_indices = @transform_3, window_bounds = array<i64: 1, 8, 16, 128>}, {transform_indices = @transform_4, window_bounds = array<i64: 1, 8, 16, 128>}, {transform_indices = @transform_5, window_bounds = array<i64: 1, 8, 16, 128>}, {transform_indices = @transform_6, window_bounds = array<i64: 1, 1, 2>}]} {
    %0 = tpu.iota {dimensions = array<i32: 0>} : vector<8x1x1xi32>
    %c8_i32 = arith.constant 8 : i32
    %1 = arith.muli %arg1, %c8_i32 : i32
    %2 = vector.broadcast %1 : i32 to vector<8x1x1xi32>
    %3 = arith.addi %0, %2 : vector<8x1x1xi32>
    %c0_i32 = arith.constant 0 : i32
    %4 = vector.broadcast %c0_i32 : i32 to vector<8x1x1xi32>
    %5 = arith.cmpi eq, %3, %4 : vector<8x1x1xi32>
    %c7_i32 = arith.constant 7 : i32
    %6 = vector.broadcast %c7_i32 : i32 to vector<8x1x1xi32>
    %7 = arith.cmpi eq, %3, %6 : vector<8x1x1xi32>
    %8 = arith.ori %5, %7 : vector<8x1x1xi1>
    %cst = arith.constant 1.000000e+00 : f32
    %cst_0 = arith.constant 5.000000e-01 : f32
    %9 = vector.broadcast %cst : f32 to vector<8x1x1xf32>
    %10 = vector.broadcast %cst_0 : f32 to vector<8x1x1xf32>
    %11 = arith.select %8, %9, %10 : vector<8x1x1xi1>, vector<8x1x1xf32>
    %12 = tpu.iota {dimensions = array<i32: 1>} : vector<1x16x1xi32>
    %c0_i32_1 = arith.constant 0 : i32
    %13 = vector.broadcast %c0_i32_1 : i32 to vector<1x16x1xi32>
    %14 = arith.cmpi eq, %12, %13 : vector<1x16x1xi32>
    %c15_i32 = arith.constant 15 : i32
    %15 = vector.broadcast %c15_i32 : i32 to vector<1x16x1xi32>
    %16 = arith.cmpi eq, %12, %15 : vector<1x16x1xi32>
    %17 = arith.ori %14, %16 : vector<1x16x1xi1>
    %cst_2 = arith.constant 1.000000e+00 : f32
    %cst_3 = arith.constant 5.000000e-01 : f32
    %18 = vector.broadcast %cst_2 : f32 to vector<1x16x1xf32>
    %19 = vector.broadcast %cst_3 : f32 to vector<1x16x1xf32>
    %20 = arith.select %17, %18, %19 : vector<1x16x1xi1>, vector<1x16x1xf32>
    %21 = tpu.iota {dimensions = array<i32: 2>} : vector<1x1x128xi32>
    %c0_i32_4 = arith.constant 0 : i32
    %22 = vector.broadcast %c0_i32_4 : i32 to vector<1x1x128xi32>
    %23 = arith.cmpi eq, %21, %22 : vector<1x1x128xi32>
    %c127_i32 = arith.constant 127 : i32
    %24 = vector.broadcast %c127_i32 : i32 to vector<1x1x128xi32>
    %25 = arith.cmpi eq, %21, %24 : vector<1x1x128xi32>
    %26 = arith.ori %23, %25 : vector<1x1x128xi1>
    %cst_5 = arith.constant 1.000000e+00 : f32
    %cst_6 = arith.constant 5.000000e-01 : f32
    %27 = vector.broadcast %cst_5 : f32 to vector<1x1x128xf32>
    %28 = vector.broadcast %cst_6 : f32 to vector<1x1x128xf32>
    %29 = arith.select %26, %27, %28 : vector<1x1x128xi1>, vector<1x1x128xf32>
    %c0 = arith.constant 0 : index
    %c0_7 = arith.constant 0 : index
    %c0_8 = arith.constant 0 : index
    %c0_9 = arith.constant 0 : index
    %c0_10 = arith.constant 0 : index
    %30 = vector.load %arg2[%c0, %c0_7, %c0_8, %c0_9, %c0_10] : memref<1x3x8x16x128xf32, #tpu.memory_space<vmem>>, vector<1x1x8x16x128xf32>
    %31 = vector.shape_cast %30 : vector<1x1x8x16x128xf32> to vector<8x16x128xf32>
    %c0_11 = arith.constant 0 : index
    %c0_12 = arith.constant 0 : index
    %c0_13 = arith.constant 0 : index
    %c0_14 = arith.constant 0 : index
    %c0_15 = arith.constant 0 : index
    %32 = vector.load %arg3[%c0_11, %c0_12, %c0_13, %c0_14, %c0_15] : memref<1x3x1x16x128xf32, #tpu.memory_space<vmem>>, vector<1x1x1x16x128xf32>
    %33 = vector.shape_cast %32 : vector<1x1x1x16x128xf32> to vector<1x16x128xf32>
    %c0_16 = arith.constant 0 : index
    %c0_17 = arith.constant 0 : index
    %c0_18 = arith.constant 0 : index
    %c0_19 = arith.constant 0 : index
    %c0_20 = arith.constant 0 : index
    %34 = vector.load %arg4[%c0_16, %c0_17, %c0_18, %c0_19, %c0_20] : memref<1x3x1x16x128xf32, #tpu.memory_space<vmem>>, vector<1x1x1x16x128xf32>
    %35 = vector.shape_cast %34 : vector<1x1x1x16x128xf32> to vector<1x16x128xf32>
    %36 = tpu.concatenate %33, %31, %35 in 0 : vector<1x16x128xf32>, vector<8x16x128xf32>, vector<1x16x128xf32> -> vector<10x16x128xf32>
    %37 = vector.extract_strided_slice %36 {offsets = [2, 0, 0], sizes = [8, 16, 128], strides = [1, 1, 1]} : vector<10x16x128xf32> to vector<8x16x128xf32>
    %38 = vector.extract_strided_slice %36 {offsets = [0, 0, 0], sizes = [8, 16, 128], strides = [1, 1, 1]} : vector<10x16x128xf32> to vector<8x16x128xf32>
    %39 = arith.subf %37, %38 : vector<8x16x128xf32>
    %40 = vector.broadcast %11 : vector<8x1x1xf32> to vector<8x16x128xf32>
    %41 = arith.mulf %39, %40 : vector<8x16x128xf32>
    %c15_i32_21 = arith.constant 15 : i32
    %42 = tpu.dynamic_rotate %31 by %c15_i32_21 dim 1 : vector<8x16x128xf32>, i32 -> vector<8x16x128xf32>
    %43 = vector.shape_cast %16 : vector<1x16x1xi1> to vector<1x16x1xi1>
    %44 = vector.broadcast %43 : vector<1x16x1xi1> to vector<8x16x128xi1>
    %45 = arith.select %44, %31, %42 : vector<8x16x128xi1>, vector<8x16x128xf32>
    %c1_i32 = arith.constant 1 : i32
    %46 = tpu.dynamic_rotate %31 by %c1_i32 dim 1 : vector<8x16x128xf32>, i32 -> vector<8x16x128xf32>
    %47 = vector.shape_cast %14 : vector<1x16x1xi1> to vector<1x16x1xi1>
    %48 = vector.broadcast %47 : vector<1x16x1xi1> to vector<8x16x128xi1>
    %49 = arith.select %48, %31, %46 : vector<8x16x128xi1>, vector<8x16x128xf32>
    %50 = arith.subf %45, %49 : vector<8x16x128xf32>
    %51 = vector.broadcast %20 : vector<1x16x1xf32> to vector<8x16x128xf32>
    %52 = arith.mulf %50, %51 : vector<8x16x128xf32>
    %c127_i32_22 = arith.constant 127 : i32
    %53 = tpu.dynamic_rotate %31 by %c127_i32_22 dim 2 : vector<8x16x128xf32>, i32 -> vector<8x16x128xf32>
    %54 = vector.shape_cast %25 : vector<1x1x128xi1> to vector<1x1x128xi1>
    %55 = vector.broadcast %54 : vector<1x1x128xi1> to vector<8x16x128xi1>
    %56 = arith.select %55, %31, %53 : vector<8x16x128xi1>, vector<8x16x128xf32>
    %c1_i32_23 = arith.constant 1 : i32
    %57 = tpu.dynamic_rotate %31 by %c1_i32_23 dim 2 : vector<8x16x128xf32>, i32 -> vector<8x16x128xf32>
    %58 = vector.shape_cast %23 : vector<1x1x128xi1> to vector<1x1x128xi1>
    %59 = vector.broadcast %58 : vector<1x1x128xi1> to vector<8x16x128xi1>
    %60 = arith.select %59, %31, %57 : vector<8x16x128xi1>, vector<8x16x128xf32>
    %61 = arith.subf %56, %60 : vector<8x16x128xf32>
    %62 = vector.broadcast %29 : vector<1x1x128xf32> to vector<8x16x128xf32>
    %63 = arith.mulf %61, %62 : vector<8x16x128xf32>
    %c0_24 = arith.constant 0 : index
    %c1 = arith.constant 1 : index
    %c0_25 = arith.constant 0 : index
    %c0_26 = arith.constant 0 : index
    %c0_27 = arith.constant 0 : index
    %64 = vector.load %arg2[%c0_24, %c1, %c0_25, %c0_26, %c0_27] : memref<1x3x8x16x128xf32, #tpu.memory_space<vmem>>, vector<1x1x8x16x128xf32>
    %65 = vector.shape_cast %64 : vector<1x1x8x16x128xf32> to vector<8x16x128xf32>
    %c0_28 = arith.constant 0 : index
    %c1_29 = arith.constant 1 : index
    %c0_30 = arith.constant 0 : index
    %c0_31 = arith.constant 0 : index
    %c0_32 = arith.constant 0 : index
    %66 = vector.load %arg3[%c0_28, %c1_29, %c0_30, %c0_31, %c0_32] : memref<1x3x1x16x128xf32, #tpu.memory_space<vmem>>, vector<1x1x1x16x128xf32>
    %67 = vector.shape_cast %66 : vector<1x1x1x16x128xf32> to vector<1x16x128xf32>
    %c0_33 = arith.constant 0 : index
    %c1_34 = arith.constant 1 : index
    %c0_35 = arith.constant 0 : index
    %c0_36 = arith.constant 0 : index
    %c0_37 = arith.constant 0 : index
    %68 = vector.load %arg4[%c0_33, %c1_34, %c0_35, %c0_36, %c0_37] : memref<1x3x1x16x128xf32, #tpu.memory_space<vmem>>, vector<1x1x1x16x128xf32>
    %69 = vector.shape_cast %68 : vector<1x1x1x16x128xf32> to vector<1x16x128xf32>
    %70 = tpu.concatenate %67, %65, %69 in 0 : vector<1x16x128xf32>, vector<8x16x128xf32>, vector<1x16x128xf32> -> vector<10x16x128xf32>
    %71 = vector.extract_strided_slice %70 {offsets = [2, 0, 0], sizes = [8, 16, 128], strides = [1, 1, 1]} : vector<10x16x128xf32> to vector<8x16x128xf32>
    %72 = vector.extract_strided_slice %70 {offsets = [0, 0, 0], sizes = [8, 16, 128], strides = [1, 1, 1]} : vector<10x16x128xf32> to vector<8x16x128xf32>
    %73 = arith.subf %71, %72 : vector<8x16x128xf32>
    %74 = vector.broadcast %11 : vector<8x1x1xf32> to vector<8x16x128xf32>
    %75 = arith.mulf %73, %74 : vector<8x16x128xf32>
    %c15_i32_38 = arith.constant 15 : i32
    %76 = tpu.dynamic_rotate %65 by %c15_i32_38 dim 1 : vector<8x16x128xf32>, i32 -> vector<8x16x128xf32>
    %77 = vector.shape_cast %16 : vector<1x16x1xi1> to vector<1x16x1xi1>
    %78 = vector.broadcast %77 : vector<1x16x1xi1> to vector<8x16x128xi1>
    %79 = arith.select %78, %65, %76 : vector<8x16x128xi1>, vector<8x16x128xf32>
    %c1_i32_39 = arith.constant 1 : i32
    %80 = tpu.dynamic_rotate %65 by %c1_i32_39 dim 1 : vector<8x16x128xf32>, i32 -> vector<8x16x128xf32>
    %81 = vector.shape_cast %14 : vector<1x16x1xi1> to vector<1x16x1xi1>
    %82 = vector.broadcast %81 : vector<1x16x1xi1> to vector<8x16x128xi1>
    %83 = arith.select %82, %65, %80 : vector<8x16x128xi1>, vector<8x16x128xf32>
    %84 = arith.subf %79, %83 : vector<8x16x128xf32>
    %85 = vector.broadcast %20 : vector<1x16x1xf32> to vector<8x16x128xf32>
    %86 = arith.mulf %84, %85 : vector<8x16x128xf32>
    %c127_i32_40 = arith.constant 127 : i32
    %87 = tpu.dynamic_rotate %65 by %c127_i32_40 dim 2 : vector<8x16x128xf32>, i32 -> vector<8x16x128xf32>
    %88 = vector.shape_cast %25 : vector<1x1x128xi1> to vector<1x1x128xi1>
    %89 = vector.broadcast %88 : vector<1x1x128xi1> to vector<8x16x128xi1>
    %90 = arith.select %89, %65, %87 : vector<8x16x128xi1>, vector<8x16x128xf32>
    %c1_i32_41 = arith.constant 1 : i32
    %91 = tpu.dynamic_rotate %65 by %c1_i32_41 dim 2 : vector<8x16x128xf32>, i32 -> vector<8x16x128xf32>
    %92 = vector.shape_cast %23 : vector<1x1x128xi1> to vector<1x1x128xi1>
    %93 = vector.broadcast %92 : vector<1x1x128xi1> to vector<8x16x128xi1>
    %94 = arith.select %93, %65, %91 : vector<8x16x128xi1>, vector<8x16x128xf32>
    %95 = arith.subf %90, %94 : vector<8x16x128xf32>
    %96 = vector.broadcast %29 : vector<1x1x128xf32> to vector<8x16x128xf32>
    %97 = arith.mulf %95, %96 : vector<8x16x128xf32>
    %c0_42 = arith.constant 0 : index
    %c2 = arith.constant 2 : index
    %c0_43 = arith.constant 0 : index
    %c0_44 = arith.constant 0 : index
    %c0_45 = arith.constant 0 : index
    %98 = vector.load %arg2[%c0_42, %c2, %c0_43, %c0_44, %c0_45] : memref<1x3x8x16x128xf32, #tpu.memory_space<vmem>>, vector<1x1x8x16x128xf32>
    %99 = vector.shape_cast %98 : vector<1x1x8x16x128xf32> to vector<8x16x128xf32>
    %c0_46 = arith.constant 0 : index
    %c2_47 = arith.constant 2 : index
    %c0_48 = arith.constant 0 : index
    %c0_49 = arith.constant 0 : index
    %c0_50 = arith.constant 0 : index
    %100 = vector.load %arg3[%c0_46, %c2_47, %c0_48, %c0_49, %c0_50] : memref<1x3x1x16x128xf32, #tpu.memory_space<vmem>>, vector<1x1x1x16x128xf32>
    %101 = vector.shape_cast %100 : vector<1x1x1x16x128xf32> to vector<1x16x128xf32>
    %c0_51 = arith.constant 0 : index
    %c2_52 = arith.constant 2 : index
    %c0_53 = arith.constant 0 : index
    %c0_54 = arith.constant 0 : index
    %c0_55 = arith.constant 0 : index
    %102 = vector.load %arg4[%c0_51, %c2_52, %c0_53, %c0_54, %c0_55] : memref<1x3x1x16x128xf32, #tpu.memory_space<vmem>>, vector<1x1x1x16x128xf32>
    %103 = vector.shape_cast %102 : vector<1x1x1x16x128xf32> to vector<1x16x128xf32>
    %104 = tpu.concatenate %101, %99, %103 in 0 : vector<1x16x128xf32>, vector<8x16x128xf32>, vector<1x16x128xf32> -> vector<10x16x128xf32>
    %105 = vector.extract_strided_slice %104 {offsets = [2, 0, 0], sizes = [8, 16, 128], strides = [1, 1, 1]} : vector<10x16x128xf32> to vector<8x16x128xf32>
    %106 = vector.extract_strided_slice %104 {offsets = [0, 0, 0], sizes = [8, 16, 128], strides = [1, 1, 1]} : vector<10x16x128xf32> to vector<8x16x128xf32>
    %107 = arith.subf %105, %106 : vector<8x16x128xf32>
    %108 = vector.broadcast %11 : vector<8x1x1xf32> to vector<8x16x128xf32>
    %109 = arith.mulf %107, %108 : vector<8x16x128xf32>
    %c15_i32_56 = arith.constant 15 : i32
    %110 = tpu.dynamic_rotate %99 by %c15_i32_56 dim 1 : vector<8x16x128xf32>, i32 -> vector<8x16x128xf32>
    %111 = vector.shape_cast %16 : vector<1x16x1xi1> to vector<1x16x1xi1>
    %112 = vector.broadcast %111 : vector<1x16x1xi1> to vector<8x16x128xi1>
    %113 = arith.select %112, %99, %110 : vector<8x16x128xi1>, vector<8x16x128xf32>
    %c1_i32_57 = arith.constant 1 : i32
    %114 = tpu.dynamic_rotate %99 by %c1_i32_57 dim 1 : vector<8x16x128xf32>, i32 -> vector<8x16x128xf32>
    %115 = vector.shape_cast %14 : vector<1x16x1xi1> to vector<1x16x1xi1>
    %116 = vector.broadcast %115 : vector<1x16x1xi1> to vector<8x16x128xi1>
    %117 = arith.select %116, %99, %114 : vector<8x16x128xi1>, vector<8x16x128xf32>
    %118 = arith.subf %113, %117 : vector<8x16x128xf32>
    %119 = vector.broadcast %20 : vector<1x16x1xf32> to vector<8x16x128xf32>
    %120 = arith.mulf %118, %119 : vector<8x16x128xf32>
    %c127_i32_58 = arith.constant 127 : i32
    %121 = tpu.dynamic_rotate %99 by %c127_i32_58 dim 2 : vector<8x16x128xf32>, i32 -> vector<8x16x128xf32>
    %122 = vector.shape_cast %25 : vector<1x1x128xi1> to vector<1x1x128xi1>
    %123 = vector.broadcast %122 : vector<1x1x128xi1> to vector<8x16x128xi1>
    %124 = arith.select %123, %99, %121 : vector<8x16x128xi1>, vector<8x16x128xf32>
    %c1_i32_59 = arith.constant 1 : i32
    %125 = tpu.dynamic_rotate %99 by %c1_i32_59 dim 2 : vector<8x16x128xf32>, i32 -> vector<8x16x128xf32>
    %126 = vector.shape_cast %23 : vector<1x1x128xi1> to vector<1x1x128xi1>
    %127 = vector.broadcast %126 : vector<1x1x128xi1> to vector<8x16x128xi1>
    %128 = arith.select %127, %99, %125 : vector<8x16x128xi1>, vector<8x16x128xf32>
    %129 = arith.subf %124, %128 : vector<8x16x128xf32>
    %130 = vector.broadcast %29 : vector<1x1x128xf32> to vector<8x16x128xf32>
    %131 = arith.mulf %129, %130 : vector<8x16x128xf32>
    %132 = arith.mulf %41, %41 : vector<8x16x128xf32>
    %133 = arith.mulf %86, %86 : vector<8x16x128xf32>
    %134 = arith.mulf %131, %131 : vector<8x16x128xf32>
    %135 = arith.addf %132, %133 : vector<8x16x128xf32>
    %136 = arith.addf %135, %134 : vector<8x16x128xf32>
    %137 = arith.mulf %52, %52 : vector<8x16x128xf32>
    %138 = arith.addf %136, %137 : vector<8x16x128xf32>
    %139 = arith.mulf %63, %63 : vector<8x16x128xf32>
    %140 = arith.addf %138, %139 : vector<8x16x128xf32>
    %141 = arith.mulf %75, %75 : vector<8x16x128xf32>
    %142 = arith.addf %140, %141 : vector<8x16x128xf32>
    %143 = arith.mulf %97, %97 : vector<8x16x128xf32>
    %144 = arith.addf %142, %143 : vector<8x16x128xf32>
    %145 = arith.mulf %109, %109 : vector<8x16x128xf32>
    %146 = arith.addf %144, %145 : vector<8x16x128xf32>
    %147 = arith.mulf %120, %120 : vector<8x16x128xf32>
    %148 = arith.addf %146, %147 : vector<8x16x128xf32>
    %149 = math.sqrt %148 : vector<8x16x128xf32>
    %cst_60 = arith.constant -1.000000e+01 : f32
    %150 = vector.broadcast %cst_60 : f32 to vector<8x16x128xf32>
    %151 = arith.mulf %149, %150 : vector<8x16x128xf32>
    %152 = math.exp %151 : vector<8x16x128xf32>
    %cst_61 = arith.constant 1.000000e+00 : f32
    %153 = vector.broadcast %cst_61 : f32 to vector<8x16x128xf32>
    %154 = arith.mulf %153, %152 : vector<8x16x128xf32>
    %cst_62 = arith.constant 1.000000e+00 : f32
    %155 = vector.broadcast %cst_62 : f32 to vector<8x16x128xf32>
    %156 = arith.addf %155, %154 : vector<8x16x128xf32>
    %cst_63 = arith.constant 1.000000e+00 : f32
    %157 = vector.broadcast %cst_63 : f32 to vector<8x16x128xf32>
    %158 = arith.mulf %157, %156 : vector<8x16x128xf32>
    %cst_64 = arith.constant 5.000000e-02 : f32
    %159 = vector.broadcast %cst_64 : f32 to vector<8x16x128xf32>
    %160 = arith.subf %159, %149 : vector<8x16x128xf32>
    %cst_65 = arith.constant 5.000000e+01 : f32
    %161 = vector.broadcast %cst_65 : f32 to vector<8x16x128xf32>
    %162 = arith.mulf %160, %161 : vector<8x16x128xf32>
    %163 = math.tanh %162 : vector<8x16x128xf32>
    %cst_66 = arith.constant 1.000000e+00 : f32
    %164 = vector.broadcast %cst_66 : f32 to vector<8x16x128xf32>
    %165 = arith.addf %163, %164 : vector<8x16x128xf32>
    %cst_67 = arith.constant 5.000000e-01 : f32
    %166 = vector.broadcast %cst_67 : f32 to vector<8x16x128xf32>
    %167 = arith.mulf %166, %165 : vector<8x16x128xf32>
    %cst_68 = arith.constant 1.000000e+00 : f32
    %168 = vector.broadcast %cst_68 : f32 to vector<8x16x128xf32>
    %169 = arith.mulf %168, %167 : vector<8x16x128xf32>
    %cst_69 = arith.constant 1.000000e+00 : f32
    %170 = vector.broadcast %cst_69 : f32 to vector<8x16x128xf32>
    %171 = arith.addf %170, %169 : vector<8x16x128xf32>
    %cst_70 = arith.constant 1.000000e+00 : f32
    %172 = vector.broadcast %cst_70 : f32 to vector<8x16x128xf32>
    %173 = arith.mulf %172, %171 : vector<8x16x128xf32>
    %cst_71 = arith.constant 0.000000e+00 : f32
    %174 = vector.broadcast %cst_71 : f32 to vector<8x16x128xf32>
    %175 = arith.subf %174, %149 : vector<8x16x128xf32>
    %176 = math.exp %175 : vector<8x16x128xf32>
    %cst_72 = arith.constant 1.000000e+00 : f32
    %177 = vector.broadcast %cst_72 : f32 to vector<8x16x128xf32>
    %178 = arith.mulf %177, %176 : vector<8x16x128xf32>
    %cst_73 = arith.constant 1.000000e+00 : f32
    %179 = vector.broadcast %cst_73 : f32 to vector<8x16x128xf32>
    %180 = arith.addf %179, %178 : vector<8x16x128xf32>
    %181 = arith.addf %52, %75 : vector<8x16x128xf32>
    %cst_74 = arith.constant 5.000000e-01 : f32
    %182 = vector.broadcast %cst_74 : f32 to vector<8x16x128xf32>
    %183 = arith.mulf %182, %181 : vector<8x16x128xf32>
    %184 = arith.addf %63, %109 : vector<8x16x128xf32>
    %cst_75 = arith.constant 5.000000e-01 : f32
    %185 = vector.broadcast %cst_75 : f32 to vector<8x16x128xf32>
    %186 = arith.mulf %185, %184 : vector<8x16x128xf32>
    %187 = arith.addf %97, %120 : vector<8x16x128xf32>
    %cst_76 = arith.constant 5.000000e-01 : f32
    %188 = vector.broadcast %cst_76 : f32 to vector<8x16x128xf32>
    %189 = arith.mulf %188, %187 : vector<8x16x128xf32>
    %190 = arith.addf %41, %86 : vector<8x16x128xf32>
    %191 = arith.addf %190, %131 : vector<8x16x128xf32>
    %cst_77 = arith.constant 5.000000e-01 : f32
    %192 = vector.broadcast %cst_77 : f32 to vector<8x16x128xf32>
    %193 = arith.mulf %192, %158 : vector<8x16x128xf32>
    %194 = arith.mulf %191, %191 : vector<8x16x128xf32>
    %195 = arith.mulf %193, %194 : vector<8x16x128xf32>
    %196 = arith.addf %132, %133 : vector<8x16x128xf32>
    %197 = arith.addf %196, %134 : vector<8x16x128xf32>
    %198 = arith.mulf %183, %183 : vector<8x16x128xf32>
    %199 = arith.mulf %186, %186 : vector<8x16x128xf32>
    %200 = arith.addf %198, %199 : vector<8x16x128xf32>
    %201 = arith.mulf %189, %189 : vector<8x16x128xf32>
    %202 = arith.addf %200, %201 : vector<8x16x128xf32>
    %cst_78 = arith.constant 2.000000e+00 : f32
    %203 = vector.broadcast %cst_78 : f32 to vector<8x16x128xf32>
    %204 = arith.mulf %203, %202 : vector<8x16x128xf32>
    %205 = arith.addf %197, %204 : vector<8x16x128xf32>
    %206 = arith.mulf %173, %205 : vector<8x16x128xf32>
    %207 = arith.addf %195, %206 : vector<8x16x128xf32>
    %208 = arith.mulf %180, %207 : vector<8x16x128xf32>
    %209 = arith.mulf %86, %131 : vector<8x16x128xf32>
    %210 = arith.mulf %97, %120 : vector<8x16x128xf32>
    %211 = arith.subf %209, %210 : vector<8x16x128xf32>
    %212 = arith.mulf %41, %211 : vector<8x16x128xf32>
    %213 = arith.mulf %75, %131 : vector<8x16x128xf32>
    %214 = arith.mulf %97, %109 : vector<8x16x128xf32>
    %215 = arith.subf %213, %214 : vector<8x16x128xf32>
    %216 = arith.mulf %52, %215 : vector<8x16x128xf32>
    %217 = arith.subf %212, %216 : vector<8x16x128xf32>
    %218 = arith.mulf %75, %120 : vector<8x16x128xf32>
    %219 = arith.mulf %86, %109 : vector<8x16x128xf32>
    %220 = arith.subf %218, %219 : vector<8x16x128xf32>
    %221 = arith.mulf %63, %220 : vector<8x16x128xf32>
    %222 = arith.addf %217, %221 : vector<8x16x128xf32>
    %cst_79 = arith.constant 0.000000e+00 : f32
    %223 = vector.broadcast %cst_79 : f32 to vector<8x16x128xf32>
    %224 = arith.subf %223, %222 : vector<8x16x128xf32>
    %cst_80 = arith.constant 0.000000e+00 : f32
    %225 = vector.broadcast %cst_80 : f32 to vector<8x16x128xf32>
    %226 = arith.maximumf %224, %225 : vector<8x16x128xf32>
    %c0_81 = arith.constant 0 : index
    %c0_82 = arith.constant 0 : index
    %c0_83 = arith.constant 0 : index
    %c0_84 = arith.constant 0 : index
    %227 = vector.load %arg5[%c0_81, %c0_82, %c0_83, %c0_84] : memref<1x8x16x128xf32, #tpu.memory_space<vmem>>, vector<1x8x16x128xf32>
    %228 = vector.shape_cast %227 : vector<1x8x16x128xf32> to vector<8x16x128xf32>
    %229 = vector.shape_cast %158 : vector<8x16x128xf32> to vector<1x8x16x128xf32>
    tpu.vector_store %arg5[%c0_81, %c0_82, %c0_83, %c0_84], %229 {strides = array<i32>} : memref<1x8x16x128xf32, #tpu.memory_space<vmem>>, vector<1x8x16x128xf32>,
    %c0_85 = arith.constant 0 : index
    %c0_86 = arith.constant 0 : index
    %c0_87 = arith.constant 0 : index
    %c0_88 = arith.constant 0 : index
    %230 = vector.load %arg6[%c0_85, %c0_86, %c0_87, %c0_88] : memref<1x8x16x128xf32, #tpu.memory_space<vmem>>, vector<1x8x16x128xf32>
    %231 = vector.shape_cast %230 : vector<1x8x16x128xf32> to vector<8x16x128xf32>
    %232 = vector.shape_cast %173 : vector<8x16x128xf32> to vector<1x8x16x128xf32>
    tpu.vector_store %arg6[%c0_85, %c0_86, %c0_87, %c0_88], %232 {strides = array<i32>} : memref<1x8x16x128xf32, #tpu.memory_space<vmem>>, vector<1x8x16x128xf32>,
    %c0_89 = arith.constant 0 : index
    %c0_90 = arith.constant 0 : index
    %c0_91 = arith.constant 0 : index
    %c0_92 = arith.constant 0 : index
    %233 = vector.load %arg7[%c0_89, %c0_90, %c0_91, %c0_92] : memref<1x8x16x128xf32, #tpu.memory_space<vmem>>, vector<1x8x16x128xf32>
    %234 = vector.shape_cast %233 : vector<1x8x16x128xf32> to vector<8x16x128xf32>
    %235 = vector.shape_cast %180 : vector<8x16x128xf32> to vector<1x8x16x128xf32>
    tpu.vector_store %arg7[%c0_89, %c0_90, %c0_91, %c0_92], %235 {strides = array<i32>} : memref<1x8x16x128xf32, #tpu.memory_space<vmem>>, vector<1x8x16x128xf32>,
    %236 = vector.shape_cast %208 : vector<8x16x128xf32> to vector<1x8x16x128xf32>
    %cst_93 = arith.constant dense<0.000000e+00> : vector<1xf32>
    %237 = vector.multi_reduction <add>, %236, %cst_93 [1, 2, 3] : vector<1x8x16x128xf32> to vector<1xf32>
    %238 = vector.shape_cast %237 : vector<1xf32> to vector<1x1x1x1xf32>
    %239 = vector.extract %238[0, 0, 0, 0] : f32 from vector<1x1x1x1xf32>
    %c0_94 = arith.constant 0 : index
    %c0_95 = arith.constant 0 : index
    %c0_96 = arith.constant 0 : index
    %240 = memref.load %arg8[%c0_94, %c0_95, %c0_96] : memref<1x1x2xf32, #tpu.memory_space<smem>>
    memref.store %239, %arg8[%c0_94, %c0_95, %c0_96] : memref<1x1x2xf32, #tpu.memory_space<smem>>
    %241 = arith.mulf %226, %226 : vector<8x16x128xf32>
    %242 = vector.shape_cast %241 : vector<8x16x128xf32> to vector<1x8x16x128xf32>
    %cst_97 = arith.constant dense<0.000000e+00> : vector<1xf32>
    %243 = vector.multi_reduction <add>, %242, %cst_97 [1, 2, 3] : vector<1x8x16x128xf32> to vector<1xf32>
    %244 = vector.shape_cast %243 : vector<1xf32> to vector<1x1x1x1xf32>
    %245 = vector.extract %244[0, 0, 0, 0] : f32 from vector<1x1x1x1xf32>
    %c0_98 = arith.constant 0 : index
    %c0_99 = arith.constant 0 : index
    %c1_100 = arith.constant 1 : index
    %246 = memref.load %arg8[%c0_98, %c0_99, %c1_100] : memref<1x1x2xf32, #tpu.memory_space<smem>>
    memref.store %245, %arg8[%c0_98, %c0_99, %c1_100] : memref<1x1x2xf32, #tpu.memory_space<smem>>
    return
  }
  func.func @transform_0(%arg0: i32, %arg1: i32) -> (i32, i32, i32, i32, i32) {
    %c0_i32 = arith.constant 0 : i32
    %c0_i32_0 = arith.constant 0 : i32
    %c0_i32_1 = arith.constant 0 : i32
    %c0_i32_2 = arith.constant 0 : i32
    return %arg0, %c0_i32, %arg1, %c0_i32_0, %c0_i32_1 : i32, i32, i32, i32, i32
  }
  func.func @transform_1(%arg0: i32, %arg1: i32) -> (i32, i32, i32, i32, i32) {
    %c8_i32 = arith.constant 8 : i32
    %0 = arith.muli %arg1, %c8_i32 : i32
    %c1_i32 = arith.constant 1 : i32
    %1 = arith.subi %0, %c1_i32 : i32
    %c0_i32 = arith.constant 0 : i32
    %2 = arith.maxsi %1, %c0_i32 : i32
    %c0_i32_0 = arith.constant 0 : i32
    %c0_i32_1 = arith.constant 0 : i32
    %c0_i32_2 = arith.constant 0 : i32
    %c0_i32_3 = arith.constant 0 : i32
    return %arg0, %c0_i32_0, %2, %c0_i32_1, %c0_i32_2 : i32, i32, i32, i32, i32
  }
  func.func @transform_2(%arg0: i32, %arg1: i32) -> (i32, i32, i32, i32, i32) {
    %c1_i32 = arith.constant 1 : i32
    %0 = arith.addi %arg1, %c1_i32 : i32
    %c8_i32 = arith.constant 8 : i32
    %1 = arith.muli %0, %c8_i32 : i32
    %c7_i32 = arith.constant 7 : i32
    %2 = arith.minsi %1, %c7_i32 : i32
    %c0_i32 = arith.constant 0 : i32
    %c0_i32_0 = arith.constant 0 : i32
    %c0_i32_1 = arith.constant 0 : i32
    %c0_i32_2 = arith.constant 0 : i32
    return %arg0, %c0_i32, %2, %c0_i32_0, %c0_i32_1 : i32, i32, i32, i32, i32
  }
  func.func @transform_3(%arg0: i32, %arg1: i32) -> (i32, i32, i32, i32) {
    %c0_i32 = arith.constant 0 : i32
    %c0_i32_0 = arith.constant 0 : i32
    %c0_i32_1 = arith.constant 0 : i32
    return %arg0, %arg1, %c0_i32, %c0_i32_0 : i32, i32, i32, i32
  }
  func.func @transform_4(%arg0: i32, %arg1: i32) -> (i32, i32, i32, i32) {
    %c0_i32 = arith.constant 0 : i32
    %c0_i32_0 = arith.constant 0 : i32
    %c0_i32_1 = arith.constant 0 : i32
    return %arg0, %arg1, %c0_i32, %c0_i32_0 : i32, i32, i32, i32
  }
  func.func @transform_5(%arg0: i32, %arg1: i32) -> (i32, i32, i32, i32) {
    %c0_i32 = arith.constant 0 : i32
    %c0_i32_0 = arith.constant 0 : i32
    %c0_i32_1 = arith.constant 0 : i32
    return %arg0, %arg1, %c0_i32, %c0_i32_0 : i32, i32, i32, i32
  }
  func.func @transform_6(%arg0: i32, %arg1: i32) -> (i32, i32, i32) {
    %c0_i32 = arith.constant 0 : i32
    %c0_i32_0 = arith.constant 0 : i32
    return %arg0, %arg1, %c0_i32 : i32, i32, i32
  }
}

</mosaic_0001>

<llo_original>
// kernel: tpu_custom_call.1
$region0: #{tpu_custom_call.1}
  #allocation0 [shape = 'u32[]', space=smem, size = 0x4, offset = 0x4, fixed_abs, tag = 'smem constant byte address 0x4 - core index']
  #allocation1 [shape = 'u32[144,128]{1,0:T(1,128)}', space=vmem, size = 0x12000, scoped, tag = 'internal scratch']
  #allocation14 [shape = 's32[]', space=sflag, size = 0x4, offset = 0, fixed_abs, tag = 'sflag constant byte address 0x0 - dummy sync flag']
  #allocation16 [shape = 's32[]', space=sflag, size = 0x4, offset = 0, fixed_abs, tag = 'sflag constant byte address 0x0 - dummy sync flag']
  %s0 = inlined_call_operand.hbm [shape: f32[2,3,8,16,128], index: 0, kind: input, shape index: {}]
  %s1 = inlined_call_operand.hbm [shape: f32[2,3,8,16,128], index: 1, kind: input, shape index: {}]
  %s2 = inlined_call_operand.hbm [shape: f32[2,3,8,16,128], index: 2, kind: input, shape index: {}]
  %s3 = inlined_call_operand.hbm [shape: f32[2,8,16,128], index: 3, kind: output, shape index: {0}]
  %s4 = inlined_call_operand.hbm [shape: f32[2,8,16,128], index: 4, kind: output, shape index: {1}]
  %s5 = inlined_call_operand.hbm [shape: f32[2,8,16,128], index: 5, kind: output, shape index: {2}]
  %s6 = inlined_call_operand.hbm [shape: f32[2,1,2], index: 6, kind: output, shape index: {3}]
  %7 = xla_tuple %s3, %s4, %s5, %s6
  %s8 = sld [smem:[#allocation0]]
  $region81: #{tpu_custom_call.1} parent=0
    _
  %s10 = ssub.s32 1, %s8
  %s11 = scalar_select 0, %s10, %s8
  $region1: #{tpu_custom_call.1} parent=0
    #allocation2 [shape = 'u8[393216]{0}', space=vmem, size = 0x60000, scoped, tag = 'input window, operand 0']
    #allocation3 [shape = 's32[2]{0}', space=sflag, size = 0x8, scoped, tag = 'scoped memory for tpu_custom_call.1']
    #allocation4 [shape = 's32[2]{0}', space=sflag, size = 0x8, scoped, tag = 'scoped memory for tpu_custom_call.1']
    #allocation5 [shape = 's32[2]{0}', space=sflag, size = 0x8, scoped, tag = 'scoped memory for tpu_custom_call.1']
    #allocation6 [shape = 'u8[49152]{0}', space=vmem, size = 0xc000, scoped, tag = 'input window, operand 1']
    #allocation7 [shape = 's32[2]{0}', space=sflag, size = 0x8, scoped, tag = 'scoped memory for tpu_custom_call.1']
    #allocation8 [shape = 'u8[49152]{0}', space=vmem, size = 0xc000, scoped, tag = 'input window, operand 2']
    #allocation9 [shape = 'u8[131072]{0}', space=vmem, size = 0x20000, scoped, tag = 'output window, operand 0']
    #allocation10 [shape = 'u8[131072]{0}', space=vmem, size = 0x20000, scoped, tag = 'output window, operand 1']
    #allocation11 [shape = 's32[2]{0}', space=sflag, size = 0x8, scoped, tag = 'scoped memory for tpu_custom_call.1']
    #allocation12 [shape = 'u8[131072]{0}', space=vmem, size = 0x20000, scoped, tag = 'output window, operand 2']
    #allocation13 [shape = 'u8[1024]{0}', space=smem, size = 0x400, scoped, tag = 'output window, operand 3']
    %12 = vsyncpa [#allocation3], 0
    %s13 = scalar_lea.sflag [#allocation3], 1
    %14 = vsyncpa %s13, 0
    %15 = vsyncpa [#allocation7], 0
    %s16 = scalar_lea.sflag [#allocation7], 1
    %17 = vsyncpa %s16, 0
    %18 = vsyncpa [#allocation4], 0
    %s19 = scalar_lea.sflag [#allocation4], 1
    %20 = vsyncpa %s19, 0
    %21 = vsyncpa [#allocation11], 0
    %s22 = scalar_lea.sflag [#allocation11], 1
    %23 = vsyncpa %s22, 0
    %24 = vsyncpa [#allocation5], 0
    %s25 = scalar_lea.sflag [#allocation5], 1
    %26 = vsyncpa %s25, 0
    loop: start=0, step=1, limit=4
    $region2: #{tpu_custom_call.1} parent=1 // loop_pre_header
      _
    $region3: #{tpu_custom_call.1} parent=1 // loop_header
      %s28 = sphi 0, %s32
      %p29 = scmp.ge.s32.totalorder %s28, 4
      %s35 = sphi 0, %s47
      %s36 = sphi 0, %s43
      %s37 = sphi 0, %s35
      %s38 = sphi 0, %s36
      %s39 = sphi 0, %s37
      %s40 = sphi 0, %s38
      %s52 = sphi 0, %s54
      %s55 = sphi 0, %s52
      %s56 = sphi 0, %s55
      %s72 = sphi 0, %s56
      %s88 = sphi 0, %s90
      %s91 = sphi 0, %s88
      %s92 = sphi 0, %s91
      %s108 = sphi 0, %s92
      %s124 = sphi 0, %s126
      %s127 = sphi 0, %s124
      %s128 = sphi 0, %s127
      %s144 = sphi 0, %s128
      %s152 = sphi 0, %s154
      %s155 = sphi 0, %s152
      %s156 = sphi 0, %s155
      %s172 = sphi 0, %s156
      %s180 = sphi 0, %s182
      %s183 = sphi 0, %s180
      %s184 = sphi 0, %s183
      %s200 = sphi 0, %s184
      %s208 = sphi 0, %s210
      %s211 = sphi 0, %s208
      %s212 = sphi 0, %s211
      %s228 = sphi 0, %s212
      %s236 = sphi 0, %s238
      %s239 = sphi 0, %s236
      %s240 = sphi 0, %s239
      %s256 = sphi 0, %s240
    $region4: #{tpu_custom_call.1} parent=1 // loop_header_branch
      %31 = sbr.rel (%p29) target = $region8
    $region5: #{tpu_custom_call.1} parent=1 // loop_body
      %s33 = ssub.s32 %s28, 1
      %s34 = ssub.s32 %s28, 2
      %s41 = sadd.s32 1, %s36
      %p42 = scmp.ge.s32.totalorder %s41, 1
      %s43 = scalar_select %p42, 0, %s41
      %s44 = sadd.s32 1, %s35
      %s45 = scalar_select %p42, %s44, %s35
      %p46 = scmp.ge.s32.totalorder %s45, 2
      %s47 = scalar_select %p46, 0, %s45
      %s48 = ssub.s32 %s35, %s47
      %s49 = ssub.s32 %s36, %s43
      %s50 = sor.u32 %s48, %s49
      %p51 = scmp.eq.s32.totalorder %s50, 0
      %s53 = sadd.s32 %s52, 1
      %s54 = scalar_select %p51, %s52, %s53
      %p57 = pneg %p51
      %p58 = scmp.eq.s32.totalorder %s28, 1
      %p59 = por %p57, %p58
      %p60 = scmp.ne.s32.totalorder %s52, %s55
      %p61 = scmp.eq.s32.totalorder %s28, 0
      %p62 = por %p60, %p61
      %p63 = scmp.ne.s32.totalorder %s52, %s55
      %p64 = scmp.eq.s32.totalorder %s33, 1
      %p65 = por %p63, %p64
      %p66 = scmp.ne.s32.totalorder %s55, %s56
      %p67 = scmp.eq.s32.totalorder %s33, 0
      %p68 = por %p66, %p67
      %p69 = scmp.ne.s32.totalorder %s55, %s56
      %p70 = scmp.eq.s32.totalorder %s34, 1
      %p71 = por %p69, %p70
      %p73 = scmp.ne.s32.totalorder %s56, %s72
      %p74 = scmp.eq.s32.totalorder %s34, 0
      %p75 = por %p73, %p74
      %s76 = smul.u32 %s36, 8
      %s77 = ssub.s32 %s76, 1
      %p78 = scmp.gt.s32.totalorder %s77, 0
      %s79 = scalar_select %p78, %s77, 0
      %s80 = smul.u32 %s43, 8
      %s81 = ssub.s32 %s80, 1
      %p82 = scmp.gt.s32.totalorder %s81, 0
      %s83 = scalar_select %p82, %s81, 0
      %s84 = ssub.s32 %s35, %s47
      %s85 = ssub.s32 %s79, %s83
      %s86 = sor.u32 %s84, %s85
      %p87 = scmp.eq.s32.totalorder %s86, 0
      %s89 = sadd.s32 %s88, 1
      %s90 = scalar_select %p87, %s88, %s89
      %p93 = pneg %p87
      %p94 = scmp.eq.s32.totalorder %s28, 1
      %p95 = por %p93, %p94
      %p96 = scmp.ne.s32.totalorder %s88, %s91
      %p97 = scmp.eq.s32.totalorder %s28, 0
      %p98 = por %p96, %p97
      %p99 = scmp.ne.s32.totalorder %s88, %s91
      %p100 = scmp.eq.s32.totalorder %s33, 1
      %p101 = por %p99, %p100
      %p102 = scmp.ne.s32.totalorder %s91, %s92
      %p103 = scmp.eq.s32.totalorder %s33, 0
      %p104 = por %p102, %p103
      %p105 = scmp.ne.s32.totalorder %s91, %s92
      %p106 = scmp.eq.s32.totalorder %s34, 1
      %p107 = por %p105, %p106
      %p109 = scmp.ne.s32.totalorder %s92, %s108
      %p110 = scmp.eq.s32.totalorder %s34, 0
      %p111 = por %p109, %p110
      %s112 = sadd.s32 %s36, 1
      %s113 = smul.u32 %s112, 8
      %p114 = scmp.lt.s32.totalorder %s113, 7
      %s115 = scalar_select %p114, %s113, 7
      %s116 = sadd.s32 %s43, 1
      %s117 = smul.u32 %s116, 8
      %p118 = scmp.lt.s32.totalorder %s117, 7
      %s119 = scalar_select %p118, %s117, 7
      %s120 = ssub.s32 %s35, %s47
      %s121 = ssub.s32 %s115, %s119
      %s122 = sor.u32 %s120, %s121
      %p123 = scmp.eq.s32.totalorder %s122, 0
      %s125 = sadd.s32 %s124, 1
      %s126 = scalar_select %p123, %s124, %s125
      %p129 = pneg %p123
      %p130 = scmp.eq.s32.totalorder %s28, 1
      %p131 = por %p129, %p130
      %p132 = scmp.ne.s32.totalorder %s124, %s127
      %p133 = scmp.eq.s32.totalorder %s28, 0
      %p134 = por %p132, %p133
      %p135 = scmp.ne.s32.totalorder %s124, %s127
      %p136 = scmp.eq.s32.totalorder %s33, 1
      %p137 = por %p135, %p136
      %p138 = scmp.ne.s32.totalorder %s127, %s128
      %p139 = scmp.eq.s32.totalorder %s33, 0
      %p140 = por %p138, %p139
      %p141 = scmp.ne.s32.totalorder %s127, %s128
      %p142 = scmp.eq.s32.totalorder %s34, 1
      %p143 = por %p141, %p142
      %p145 = scmp.ne.s32.totalorder %s128, %s144
      %p146 = scmp.eq.s32.totalorder %s34, 0
      %p147 = por %p145, %p146
      %s148 = ssub.s32 %s35, %s47
      %s149 = ssub.s32 %s36, %s43
      %s150 = sor.u32 %s148, %s149
      %p151 = scmp.eq.s32.totalorder %s150, 0
      %s153 = sadd.s32 %s152, 1
      %s154 = scalar_select %p151, %s152, %s153
      %p157 = pneg %p151
      %p158 = scmp.eq.s32.totalorder %s28, 1
      %p159 = por %p157, %p158
      %p160 = scmp.ne.s32.totalorder %s152, %s155
      %p161 = scmp.eq.s32.totalorder %s28, 0
      %p162 = por %p160, %p161
      %p163 = scmp.ne.s32.totalorder %s152, %s155
      %p164 = scmp.eq.s32.totalorder %s33, 1
      %p165 = por %p163, %p164
      %p166 = scmp.ne.s32.totalorder %s155, %s156
      %p167 = scmp.eq.s32.totalorder %s33, 0
      %p168 = por %p166, %p167
      %p169 = scmp.ne.s32.totalorder %s155, %s156
      %p170 = scmp.eq.s32.totalorder %s34, 1
      %p171 = por %p169, %p170
      %p173 = scmp.ne.s32.totalorder %s156, %s172
      %p174 = scmp.eq.s32.totalorder %s34, 0
      %p175 = por %p173, %p174
      %s176 = ssub.s32 %s35, %s47
      %s177 = ssub.s32 %s36, %s43
      %s178 = sor.u32 %s176, %s177
      %p179 = scmp.eq.s32.totalorder %s178, 0
      %s181 = sadd.s32 %s180, 1
      %s182 = scalar_select %p179, %s180, %s181
      %p185 = pneg %p179
      %p186 = scmp.eq.s32.totalorder %s28, 1
      %p187 = por %p185, %p186
      %p188 = scmp.ne.s32.totalorder %s180, %s183
      %p189 = scmp.eq.s32.totalorder %s28, 0
      %p190 = por %p188, %p189
      %p191 = scmp.ne.s32.totalorder %s180, %s183
      %p192 = scmp.eq.s32.totalorder %s33, 1
      %p193 = por %p191, %p192
      %p194 = scmp.ne.s32.totalorder %s183, %s184
      %p195 = scmp.eq.s32.totalorder %s33, 0
      %p196 = por %p194, %p195
      %p197 = scmp.ne.s32.totalorder %s183, %s184
      %p198 = scmp.eq.s32.totalorder %s34, 1
      %p199 = por %p197, %p198
      %p201 = scmp.ne.s32.totalorder %s184, %s200
      %p202 = scmp.eq.s32.totalorder %s34, 0
      %p203 = por %p201, %p202
      %s204 = ssub.s32 %s35, %s47
      %s205 = ssub.s32 %s36, %s43
      %s206 = sor.u32 %s204, %s205
      %p207 = scmp.eq.s32.totalorder %s206, 0
      %s209 = sadd.s32 %s208, 1
      %s210 = scalar_select %p207, %s208, %s209
      %p213 = pneg %p207
      %p214 = scmp.eq.s32.totalorder %s28, 1
      %p215 = por %p213, %p214
      %p216 = scmp.ne.s32.totalorder %s208, %s211
      %p217 = scmp.eq.s32.totalorder %s28, 0
      %p218 = por %p216, %p217
      %p219 = scmp.ne.s32.totalorder %s208, %s211
      %p220 = scmp.eq.s32.totalorder %s33, 1
      %p221 = por %p219, %p220
      %p222 = scmp.ne.s32.totalorder %s211, %s212
      %p223 = scmp.eq.s32.totalorder %s33, 0
      %p224 = por %p222, %p223
      %p225 = scmp.ne.s32.totalorder %s211, %s212
      %p226 = scmp.eq.s32.totalorder %s34, 1
      %p227 = por %p225, %p226
      %p229 = scmp.ne.s32.totalorder %s212, %s228
      %p230 = scmp.eq.s32.totalorder %s34, 0
      %p231 = por %p229, %p230
      %s232 = ssub.s32 %s35, %s47
      %s233 = ssub.s32 %s36, %s43
      %s234 = sor.u32 %s232, %s233
      %p235 = scmp.eq.s32.totalorder %s234, 0
      %s237 = sadd.s32 %s236, 1
      %s238 = scalar_select %p235, %s236, %s237
      %p241 = pneg %p235
      %p242 = scmp.eq.s32.totalorder %s28, 1
      %p243 = por %p241, %p242
      %p244 = scmp.ne.s32.totalorder %s236, %s239
      %p245 = scmp.eq.s32.totalorder %s28, 0
      %p246 = por %p244, %p245
      %p247 = scmp.ne.s32.totalorder %s236, %s239
      %p248 = scmp.eq.s32.totalorder %s33, 1
      %p249 = por %p247, %p248
      %p250 = scmp.ne.s32.totalorder %s239, %s240
      %p251 = scmp.eq.s32.totalorder %s33, 0
      %p252 = por %p250, %p251
      %p253 = scmp.ne.s32.totalorder %s239, %s240
      %p254 = scmp.eq.s32.totalorder %s34, 1
      %p255 = por %p253, %p254
      %p257 = scmp.ne.s32.totalorder %s240, %s256
      %p258 = scmp.eq.s32.totalorder %s34, 0
      %p259 = por %p257, %p258
      %p260 = scmp.le.s32.totalorder 1, %s28
      %p261 = scmp.lt.s32.totalorder %s28, 3
      %p262 = pnand %p260, %p261
      %p263 = pneg %p262
      // Predicated region
      $region9: #{tpu_custom_call.1} parent=5 // pred_check
        _
      $region10: #{tpu_custom_call.1} parent=5 // pred_check_branch
        %265 = sbr.rel (%p262) target = $region12
      $region11: #{tpu_custom_call.1} parent=5 // pred_region
        %s266 = ssub.s32 %s28, 1
      $region12: #{tpu_custom_call.1} parent=5 // pred_fallthru
        _
      %p267 = scmp.lt.s32.totalorder %s28, 2
      // Predicated region
      $region13: #{tpu_custom_call.1} parent=5 // pred_check
        %p268 = pneg %p267
      $region14: #{tpu_custom_call.1} parent=5 // pred_check_branch
        %270 = sbr.rel (%p268) target = $region16
      $region15: #{tpu_custom_call.1} parent=5 // pred_region
        // Predicated region
        $region17: #{tpu_custom_call.1} parent=15 // pred_check
          %p271 = pneg %p62
        $region18: #{tpu_custom_call.1} parent=15 // pred_check_branch
          %273 = sbr.rel (%p271) target = $region20
        $region19: #{tpu_custom_call.1} parent=15 // pred_region
          %s274 = sand.u32 %s52, 1
          %s275 = scalar_lea.sflag [#allocation3], %s274
          %s276 = sand.u32 %s52, 1
          %s277 = smul.addr %s276, 384
          %s278 = scalar_lea.vmem [#allocation2], %s277
          %s279 = smul.u32 8, %s36
          %s281 = ssub.s32 6144, 6144
          %282 = vsyncadd %s275, %s281
          %s283 = smul.addr %s279, 2
          %s284 = smul.addr %s35, 48
          %s285 = sadd.s32 %s283, %s284
          %s286 = smul.addr %s285, 128
          %s287 = scalar_lea.hbm %s0, %s286
          %s288 = sshll.u32 %s278, 4
          %s289 = int_to_ptr.vmem [resolvable:$true] %s288
          %294 = dma.hbm_to_vmem [thread:$0]  %s287, 6144, %s289, %s275, 128, 128, 8
        $region20: #{tpu_custom_call.1} parent=15 // pred_fallthru
          _
        // Predicated region
        $region21: #{tpu_custom_call.1} parent=15 // pred_check
          %p295 = pneg %p98
        $region22: #{tpu_custom_call.1} parent=15 // pred_check_branch
          %297 = sbr.rel (%p295) target = $region24
        $region23: #{tpu_custom_call.1} parent=15 // pred_region
          #allocation15 [shape = 'u32[6]{0}', space=smem, size = 0x18, scoped, tag = 'DMA stride descriptor']
          %s298 = sand.u32 %s28, 1
          %s299 = scalar_lea.sflag [#allocation7], %s298
          %s300 = sand.u32 %s88, 1
          %s301 = smul.addr %s300, 48
          %s302 = scalar_lea.vmem [#allocation6], %s301
          %s303 = smul.u32 %s36, 8
          %s304 = ssub.s32 %s303, 1
          %p305 = scmp.gt.s32.totalorder %s304, 0
          %s306 = scalar_select %p305, %s304, 0
          %s308 = ssub.s32 768, 768
          %309 = vsyncadd %s299, %s308
          %s310 = smul.addr %s306, 2
          %s311 = smul.addr %s35, 48
          %s312 = sadd.s32 %s310, %s311
          %s313 = smul.addr %s312, 128
          %s314 = scalar_lea.hbm %s1, %s313
          %s316 = sshll.u32 1, 14
          %s317 = sxor.u32 4294967295, %s316
          %s319 = sld [smem:[#allocation0]]
          %s320 = sadd.s32 2, %s319
          %s322 = sshll.u32 7, 26
          %s323 = sxor.u32 4294967295, %s322
          %s324 = sand.u32 0, %s323
          %s325 = sshll.u32 %s320, 26
          %s326 = sor.u32 %s324, %s325
          %s327 = sshll.u32 %s302, 4
          %s328 = int_to_ptr.vmem [resolvable:$true] %s327
          %334 = sst [smem:[#allocation15]] 2048
          %s335 = scalar_lea.smem [#allocation15], 1
          %336 = sst [smem:[%s335]] 256
          %s337 = scalar_lea.smem [#allocation15], 2
          %338 = sst [smem:[%s337]] 2
          %s339 = scalar_lea.smem [#allocation15], 3
          %340 = sst [smem:[%s339]] 128
          %s341 = scalar_lea.smem [#allocation15], 4
          %342 = sst [smem:[%s341]] 128
          %s343 = scalar_lea.smem [#allocation15], 5
          %344 = sst [smem:[%s343]] 8
          %346 = dma.general %s314, 768, %s328, %s299, [#allocation14], [#allocation15], %s326, 0
        $region24: #{tpu_custom_call.1} parent=15 // pred_fallthru
          _
        // Predicated region
        $region25: #{tpu_custom_call.1} parent=15 // pred_check
          %p347 = pneg %p134
        $region26: #{tpu_custom_call.1} parent=15 // pred_check_branch
          %349 = sbr.rel (%p347) target = $region28
        $region27: #{tpu_custom_call.1} parent=15 // pred_region
          #allocation17 [shape = 'u32[6]{0}', space=smem, size = 0x18, scoped, tag = 'DMA stride descriptor']
          %s350 = sand.u32 %s28, 1
          %s351 = scalar_lea.sflag [#allocation7], %s350
          %s352 = sand.u32 %s124, 1
          %s353 = smul.addr %s352, 48
          %s354 = scalar_lea.vmem [#allocation8], %s353
          %s355 = sadd.s32 %s36, 1
          %s356 = smul.u32 %s355, 8
          %p357 = scmp.lt.s32.totalorder %s356, 7
          %s358 = scalar_select %p357, %s356, 7
          %s360 = ssub.s32 768, 768
          %361 = vsyncadd %s351, %s360
          %s362 = smul.addr %s358, 2
          %s363 = smul.addr %s35, 48
          %s364 = sadd.s32 %s362, %s363
          %s365 = smul.addr %s364, 128
          %s366 = scalar_lea.hbm %s2, %s365
          %s368 = sshll.u32 1, 14
          %s369 = sxor.u32 4294967295, %s368
          %s371 = sld [smem:[#allocation0]]
          %s372 = sadd.s32 2, %s371
          %s374 = sshll.u32 7, 26
          %s375 = sxor.u32 4294967295, %s374
          %s376 = sand.u32 0, %s375
          %s377 = sshll.u32 %s372, 26
          %s378 = sor.u32 %s376, %s377
          %s379 = sshll.u32 %s354, 4
          %s380 = int_to_ptr.vmem [resolvable:$true] %s379
          %386 = sst [smem:[#allocation17]] 2048
          %s387 = scalar_lea.smem [#allocation17], 1
          %388 = sst [smem:[%s387]] 256
          %s389 = scalar_lea.smem [#allocation17], 2
          %390 = sst [smem:[%s389]] 2
          %s391 = scalar_lea.smem [#allocation17], 3
          %392 = sst [smem:[%s391]] 128
          %s393 = scalar_lea.smem [#allocation17], 4
          %394 = sst [smem:[%s393]] 128
          %s395 = scalar_lea.smem [#allocation17], 5
          %396 = sst [smem:[%s395]] 8
          %398 = dma.general %s366, 768, %s380, %s351, [#allocation16], [#allocation17], %s378, 0
        $region28: #{tpu_custom_call.1} parent=15 // pred_fallthru
          _
      $region16: #{tpu_custom_call.1} parent=5 // pred_fallthru
        _
      %p399 = scmp.le.s32.totalorder 1, %s28
      %p400 = scmp.lt.s32.totalorder %s28, 3
      %p401 = pnand %p399, %p400
      %p402 = pneg %p401
      // Predicated region
      $region29: #{tpu_custom_call.1} parent=5 // pred_check
        _
      $region30: #{tpu_custom_call.1} parent=5 // pred_check_branch
        %404 = sbr.rel (%p401) target = $region32
      $region31: #{tpu_custom_call.1} parent=5 // pred_region
        %s405 = ssub.s32 %s28, 1
        %s406 = sand.u32 %s55, 1
        %s407 = scalar_lea.sflag [#allocation3], %s406
        %s408 = sand.u32 %s55, 1
        %s409 = smul.addr %s408, 384
        %s410 = scalar_lea.vmem [#allocation2], %s409
        // Predicated region
        $region33: #{tpu_custom_call.1} parent=31 // pred_check
          %p411 = pneg %p68
        $region34: #{tpu_custom_call.1} parent=31 // pred_check_branch
          %413 = sbr.rel (%p411) target = $region36
        $region35: #{tpu_custom_call.1} parent=31 // pred_region
          %414 = dma.done %s407, 6144
        $region36: #{tpu_custom_call.1} parent=31 // pred_fallthru
          _
        %s415 = sand.u32 %s33, 1
        %s416 = scalar_lea.sflag [#allocation7], %s415
        %s417 = sand.u32 %s91, 1
        %s418 = smul.addr %s417, 48
        %s419 = scalar_lea.vmem [#allocation6], %s418
        // Predicated region
        $region37: #{tpu_custom_call.1} parent=31 // pred_check
          %p420 = pneg %p104
        $region38: #{tpu_custom_call.1} parent=31 // pred_check_branch
          %422 = sbr.rel (%p420) target = $region40
        $region39: #{tpu_custom_call.1} parent=31 // pred_region
          %423 = dma.done %s416, 768
        $region40: #{tpu_custom_call.1} parent=31 // pred_fallthru
          _
        %s424 = sand.u32 %s33, 1
        %s425 = scalar_lea.sflag [#allocation7], %s424
        %s426 = sand.u32 %s127, 1
        %s427 = smul.addr %s426, 48
        %s428 = scalar_lea.vmem [#allocation8], %s427
        // Predicated region
        $region41: #{tpu_custom_call.1} parent=31 // pred_check
          %p429 = pneg %p140
        $region42: #{tpu_custom_call.1} parent=31 // pred_check_branch
          %431 = sbr.rel (%p429) target = $region44
        $region43: #{tpu_custom_call.1} parent=31 // pred_region
          %432 = dma.done %s425, 768
        $region44: #{tpu_custom_call.1} parent=31 // pred_fallthru
          _
        %s433 = sand.u32 %s55, 1
        %s434 = scalar_lea.sflag [#allocation3], %s433
        %s435 = sand.u32 %s55, 1
        %s436 = smul.addr %s435, 384
        %s437 = scalar_lea.vmem [#allocation2], %s436
        %p438 = pneg %p68
        %p439 = pneg %p65
        %s440 = sand.u32 %s33, 1
        %s441 = scalar_lea.sflag [#allocation7], %s440
        %s442 = sand.u32 %s91, 1
        %s443 = smul.addr %s442, 48
        %s444 = scalar_lea.vmem [#allocation6], %s443
        %p445 = pneg %p104
        %p446 = pneg %p101
        %s447 = sand.u32 %s33, 1
        %s448 = scalar_lea.sflag [#allocation7], %s447
        %s449 = sand.u32 %s127, 1
        %s450 = smul.addr %s449, 48
        %s451 = scalar_lea.vmem [#allocation8], %s450
        %p452 = pneg %p140
        %p453 = pneg %p137
        %p454 = pneg %p168
        %p455 = pneg %p165
        %s456 = sand.u32 %s155, 1
        %s457 = scalar_lea.sflag [#allocation4], %s456
        %s458 = sand.u32 %s155, 1
        %s459 = smul.addr %s458, 128
        %s460 = scalar_lea.vmem [#allocation9], %s459
        %p461 = pneg %p196
        %p462 = pneg %p193
        %s463 = sand.u32 %s33, 1
        %s464 = scalar_lea.sflag [#allocation11], %s463
        %s465 = sand.u32 %s183, 1
        %s466 = smul.addr %s465, 128
        %s467 = scalar_lea.vmem [#allocation10], %s466
        %p468 = pneg %p224
        %p469 = pneg %p221
        %s470 = sand.u32 %s33, 1
        %s471 = scalar_lea.sflag [#allocation11], %s470
        %s472 = sand.u32 %s211, 1
        %s473 = smul.addr %s472, 128
        %s474 = scalar_lea.vmem [#allocation12], %s473
        %p475 = pneg %p252
        %p476 = pneg %p249
        %s477 = sand.u32 %s239, 1
        %s478 = scalar_lea.sflag [#allocation5], %s477
        %s479 = sand.u32 %s239, 1
        %s480 = smul.addr %s479, 128
        %s481 = scalar_lea.smem [#allocation13], %s480
        %s482 = smul.u32 8, %s38
        %s483 = smul.u32 %s38, 8
        %s484 = ssub.s32 %s483, 1
        %p485 = scmp.gt.s32.totalorder %s484, 0
        %s486 = scalar_select %p485, %s484, 0
        %s487 = sadd.s32 %s38, 1
        %s488 = smul.u32 %s487, 8
        %p489 = scmp.lt.s32.totalorder %s488, 7
        %s490 = scalar_select %p489, %s488, 7
        %s491 = smul.u32 8, %s38
        %s492 = smul.u32 8, %s38
        %s493 = smul.u32 8, %s38
        %s494 = smul.u32 %s38, 8
        %v495 = vstv %s494
        %v496 = vadd.s32 %v495, 1
        %v497 = vadd.s32 %v495, 2
        %v498 = vadd.s32 %v495, 3
        %v499 = vadd.s32 %v495, 4
        %v500 = vadd.s32 %v495, 5
        %v501 = vadd.s32 %v495, 6
        %v502 = vadd.s32 %v495, 7
        %vm503 = vcmp.eq.s32.totalorder %v495, 0
        %vm504 = vcmp.eq.s32.totalorder %v496, 0
        %vm505 = vcmp.eq.s32.totalorder %v497, 0
        %vm506 = vcmp.eq.s32.totalorder %v498, 0
        %vm507 = vcmp.eq.s32.totalorder %v499, 0
        %vm508 = vcmp.eq.s32.totalorder %v500, 0
        %vm509 = vcmp.eq.s32.totalorder %v501, 0
        %vm510 = vcmp.eq.s32.totalorder %v502, 0
        %vm511 = vcmp.eq.s32.totalorder %v495, 7
        %vm512 = vcmp.eq.s32.totalorder %v496, 7
        %vm513 = vcmp.eq.s32.totalorder %v497, 7
        %vm514 = vcmp.eq.s32.totalorder %v498, 7
        %vm515 = vcmp.eq.s32.totalorder %v499, 7
        %vm516 = vcmp.eq.s32.totalorder %v500, 7
        %vm517 = vcmp.eq.s32.totalorder %v501, 7
        %vm518 = vcmp.eq.s32.totalorder %v502, 7
        %vm519 = vmor %vm503, %vm511
        %vm520 = vmor %vm504, %vm512
        %vm521 = vmor %vm505, %vm513
        %vm522 = vmor %vm506, %vm514
        %vm523 = vmor %vm507, %vm515
        %vm524 = vmor %vm508, %vm516
        %vm525 = vmor %vm509, %vm517
        %vm526 = vmor %vm510, %vm518
        %v527 = vsel %vm519, 1.0, 0.5
        %v528 = vsel %vm520, 1.0, 0.5
        %v529 = vsel %vm521, 1.0, 0.5
        %v530 = vsel %vm522, 1.0, 0.5
        %v531 = vsel %vm523, 1.0, 0.5
        %v532 = vsel %vm524, 1.0, 0.5
        %v533 = vsel %vm525, 1.0, 0.5
        %v534 = vsel %vm526, 1.0, 0.5
        %v535 = vlaneseq
        %v536 = vshrl.u32 %v535, 7
        %v537 = vadd.s32 %v536, 8
        %vm538 = vcmp.eq.s32.totalorder %v536, 0
        %vm539 = vcmp.eq.s32.totalorder %v537, 0
        %vm540 = vcmp.eq.s32.totalorder %v536, 15
        %vm541 = vcmp.eq.s32.totalorder %v537, 15
        %vm542 = vmor %vm538, %vm540
        %vm543 = vmor %vm539, %vm541
        %v544 = vsel %vm542, 1.0, 0.5
        %v545 = vsel %vm543, 1.0, 0.5
        %v546 = vlaneseq
        %v547 = vand.u32 %v546, 127
        %vm548 = vcmp.eq.s32.totalorder %v547, 0
        %vm549 = vcmp.eq.s32.totalorder %v547, 127
        %vm550 = vmor %vm548, %vm549
        %v551 = vsel %vm550, 1.0, 0.5
        %v552 = vld [vmem:[%s410] sm:$0xff]
        %v553 = vld [vmem:[%s410 + $0x8] sm:$0xff]
        %v554 = vld [vmem:[%s410 + $0x10] sm:$0xff]
        %v555 = vld [vmem:[%s410 + $0x18] sm:$0xff]
        %v556 = vld [vmem:[%s410 + $0x20] sm:$0xff]
        %v557 = vld [vmem:[%s410 + $0x28] sm:$0xff]
        %v558 = vld [vmem:[%s410 + $0x30] sm:$0xff]
        %v559 = vld [vmem:[%s410 + $0x38] sm:$0xff]
        %v560 = vld [vmem:[%s410 + $0x40] sm:$0xff]
        %v561 = vld [vmem:[%s410 + $0x48] sm:$0xff]
        %v562 = vld [vmem:[%s410 + $0x50] sm:$0xff]
        %v563 = vld [vmem:[%s410 + $0x58] sm:$0xff]
        %v564 = vld [vmem:[%s410 + $0x60] sm:$0xff]
        %v565 = vld [vmem:[%s410 + $0x68] sm:$0xff]
        %v566 = vld [vmem:[%s410 + $0x70] sm:$0xff]
        %v567 = vld [vmem:[%s410 + $0x78] sm:$0xff]
        %v568 = vld [vmem:[%s419] sm:$0xff]
        %v569 = vld [vmem:[%s419 + $0x8] sm:$0xff]
        %v570 = vld [vmem:[%s428] sm:$0xff]
        %v571 = vld [vmem:[%s428 + $0x8] sm:$0xff]
        %v572 = vsub.f32 %v554, %v568
        %v573 = vsub.f32 %v555, %v569
        %v574 = vsub.f32 %v556, %v552
        %v575 = vsub.f32 %v557, %v553
        %v576 = vsub.f32 %v558, %v554
        %v577 = vsub.f32 %v559, %v555
        %v578 = vsub.f32 %v560, %v556
        %v579 = vsub.f32 %v561, %v557
        %v580 = vsub.f32 %v562, %v558
        %v581 = vsub.f32 %v563, %v559
        %v582 = vsub.f32 %v564, %v560
        %v583 = vsub.f32 %v565, %v561
        %v584 = vsub.f32 %v566, %v562
        %v585 = vsub.f32 %v567, %v563
        %v586 = vsub.f32 %v570, %v564
        %v587 = vsub.f32 %v571, %v565
        %v588 = vmul.f32 %v572, %v527
        %v589 = vmul.f32 %v573, %v527
        %v590 = vmul.f32 %v574, %v528
        %v591 = vmul.f32 %v575, %v528
        %v592 = vmul.f32 %v576, %v529
        %v593 = vmul.f32 %v577, %v529
        %v594 = vmul.f32 %v578, %v530
        %v595 = vmul.f32 %v579, %v530
        %v596 = vmul.f32 %v580, %v531
        %v597 = vmul.f32 %v581, %v531
        %v598 = vmul.f32 %v582, %v532
        %v599 = vmul.f32 %v583, %v532
        %v600 = vmul.f32 %v584, %v533
        %v601 = vmul.f32 %v585, %v533
        %v602 = vmul.f32 %v586, %v534
        %v603 = vmul.f32 %v587, %v534
        %v604 = vrot.slane %v552, 1
        %v605 = vrot.slane %v554, 1
        %v606 = vrot.slane %v556, 1
        %v607 = vrot.slane %v558, 1
        %v608 = vrot.slane %v560, 1
        %v609 = vrot.slane %v562, 1
        %v610 = vrot.slane %v564, 1
        %v611 = vrot.slane %v566, 1
        %v612 = vrot.slane %v553, 1
        %v613 = vrot.slane %v555, 1
        %v614 = vrot.slane %v557, 1
        %v615 = vrot.slane %v559, 1
        %v616 = vrot.slane %v561, 1
        %v617 = vrot.slane %v563, 1
        %v618 = vrot.slane %v565, 1
        %v619 = vrot.slane %v567, 1
        %vm620 = vcmp.lt.s32.totalorder %v536, 7
        %v621 = vsel %vm620, %v604, %v612
        %v622 = vsel %vm620, %v605, %v613
        %v623 = vsel %vm620, %v606, %v614
        %v624 = vsel %vm620, %v607, %v615
        %v625 = vsel %vm620, %v608, %v616
        %v626 = vsel %vm620, %v609, %v617
        %v627 = vsel %vm620, %v610, %v618
        %v628 = vsel %vm620, %v611, %v619
        %v629 = vsel %vm620, %v612, %v604
        %v630 = vsel %vm620, %v613, %v605
        %v631 = vsel %vm620, %v614, %v606
        %v632 = vsel %vm620, %v615, %v607
        %v633 = vsel %vm620, %v616, %v608
        %v634 = vsel %vm620, %v617, %v609
        %v635 = vsel %vm620, %v618, %v610
        %v636 = vsel %vm620, %v619, %v611
        %v637 = vsel %vm540, 1, 0
        %v638 = vsel %vm541, 1, 0
        %vm639 = vcmp.eq.s32.totalorder %v637, 1
        %vm640 = vcmp.eq.s32.totalorder %v638, 1
        %v641 = vsel %vm639, %v552, %v621
        %v642 = vsel %vm640, %v553, %v629
        %v643 = vsel %vm639, %v554, %v622
        %v644 = vsel %vm640, %v555, %v630
        %v645 = vsel %vm639, %v556, %v623
        %v646 = vsel %vm640, %v557, %v631
        %v647 = vsel %vm639, %v558, %v624
        %v648 = vsel %vm640, %v559, %v632
        %v649 = vsel %vm639, %v560, %v625
        %v650 = vsel %vm640, %v561, %v633
        %v651 = vsel %vm639, %v562, %v626
        %v652 = vsel %vm640, %v563, %v634
        %v653 = vsel %vm639, %v564, %v627
        %v654 = vsel %vm640, %v565, %v635
        %v655 = vsel %vm639, %v566, %v628
        %v656 = vsel %vm640, %v567, %v636
        %v657 = vrot.slane %v552, 7
        %v658 = vrot.slane %v554, 7
        %v659 = vrot.slane %v556, 7
        %v660 = vrot.slane %v558, 7
        %v661 = vrot.slane %v560, 7
        %v662 = vrot.slane %v562, 7
        %v663 = vrot.slane %v564, 7
        %v664 = vrot.slane %v566, 7
        %v665 = vrot.slane %v553, 7
        %v666 = vrot.slane %v555, 7
        %v667 = vrot.slane %v557, 7
        %v668 = vrot.slane %v559, 7
        %v669 = vrot.slane %v561, 7
        %v670 = vrot.slane %v563, 7
        %v671 = vrot.slane %v565, 7
        %v672 = vrot.slane %v567, 7
        %vm673 = vcmp.lt.s32.totalorder %v536, 1
        %v674 = vsel %vm673, %v657, %v665
        %v675 = vsel %vm673, %v658, %v666
        %v676 = vsel %vm673, %v659, %v667
        %v677 = vsel %vm673, %v660, %v668
        %v678 = vsel %vm673, %v661, %v669
        %v679 = vsel %vm673, %v662, %v670
        %v680 = vsel %vm673, %v663, %v671
        %v681 = vsel %vm673, %v664, %v672
        %v682 = vsel %vm673, %v665, %v657
        %v683 = vsel %vm673, %v666, %v658
        %v684 = vsel %vm673, %v667, %v659
        %v685 = vsel %vm673, %v668, %v660
        %v686 = vsel %vm673, %v669, %v661
        %v687 = vsel %vm673, %v670, %v662
        %v688 = vsel %vm673, %v671, %v663
        %v689 = vsel %vm673, %v672, %v664
        %v690 = vsel %vm538, 1, 0
        %v691 = vsel %vm539, 1, 0
        %vm692 = vcmp.eq.s32.totalorder %v690, 1
        %vm693 = vcmp.eq.s32.totalorder %v691, 1
        %v694 = vsel %vm692, %v552, %v682
        %v695 = vsel %vm693, %v553, %v674
        %v696 = vsel %vm692, %v554, %v683
        %v697 = vsel %vm693, %v555, %v675
        %v698 = vsel %vm692, %v556, %v684
        %v699 = vsel %vm693, %v557, %v676
        %v700 = vsel %vm692, %v558, %v685
        %v701 = vsel %vm693, %v559, %v677
        %v702 = vsel %vm692, %v560, %v686
        %v703 = vsel %vm693, %v561, %v678
        %v704 = vsel %vm692, %v562, %v687
        %v705 = vsel %vm693, %v563, %v679
        %v706 = vsel %vm692, %v564, %v688
        %v707 = vsel %vm693, %v565, %v680
        %v708 = vsel %vm692, %v566, %v689
        %v709 = vsel %vm693, %v567, %v681
        %v710 = vsub.f32 %v641, %v694
        %v711 = vsub.f32 %v642, %v695
        %v712 = vsub.f32 %v643, %v696
        %v713 = vsub.f32 %v644, %v697
        %v714 = vsub.f32 %v645, %v698
        %v715 = vsub.f32 %v646, %v699
        %v716 = vsub.f32 %v647, %v700
        %v717 = vsub.f32 %v648, %v701
        %v718 = vsub.f32 %v649, %v702
        %v719 = vsub.f32 %v650, %v703
        %v720 = vsub.f32 %v651, %v704
        %v721 = vsub.f32 %v652, %v705
        %v722 = vsub.f32 %v653, %v706
        %v723 = vsub.f32 %v654, %v707
        %v724 = vsub.f32 %v655, %v708
        %v725 = vsub.f32 %v656, %v709
        %v726 = vmul.f32 %v710, %v544
        %v727 = vmul.f32 %v711, %v545
        %v728 = vmul.f32 %v712, %v544
        %v729 = vmul.f32 %v713, %v545
        %v730 = vmul.f32 %v714, %v544
        %v731 = vmul.f32 %v715, %v545
        %v732 = vmul.f32 %v716, %v544
        %v733 = vmul.f32 %v717, %v545
        %v734 = vmul.f32 %v718, %v544
        %v735 = vmul.f32 %v719, %v545
        %v736 = vmul.f32 %v720, %v544
        %v737 = vmul.f32 %v721, %v545
        %v738 = vmul.f32 %v722, %v544
        %v739 = vmul.f32 %v723, %v545
        %v740 = vmul.f32 %v724, %v544
        %v741 = vmul.f32 %v725, %v545
        %742 = vrot.lane.b32.xlu0 %v552, 127
        %v743 = vpop.permute.xlu0 %742
        %744 = vrot.lane.b32.xlu0 %v553, 127
        %v745 = vpop.permute.xlu0 %744
        %746 = vrot.lane.b32.xlu0 %v554, 127
        %v747 = vpop.permute.xlu0 %746
        %748 = vrot.lane.b32.xlu0 %v555, 127
        %v749 = vpop.permute.xlu0 %748
        %750 = vrot.lane.b32.xlu0 %v556, 127
        %v751 = vpop.permute.xlu0 %750
        %752 = vrot.lane.b32.xlu0 %v557, 127
        %v753 = vpop.permute.xlu0 %752
        %754 = vrot.lane.b32.xlu0 %v558, 127
        %v755 = vpop.permute.xlu0 %754
        %756 = vrot.lane.b32.xlu0 %v559, 127
        %v757 = vpop.permute.xlu0 %756
        %758 = vrot.lane.b32.xlu0 %v560, 127
        %v759 = vpop.permute.xlu0 %758
        %760 = vrot.lane.b32.xlu0 %v561, 127
        %v761 = vpop.permute.xlu0 %760
        %762 = vrot.lane.b32.xlu0 %v562, 127
        %v763 = vpop.permute.xlu0 %762
        %764 = vrot.lane.b32.xlu0 %v563, 127
        %v765 = vpop.permute.xlu0 %764
        %766 = vrot.lane.b32.xlu0 %v564, 127
        %v767 = vpop.permute.xlu0 %766
        %768 = vrot.lane.b32.xlu0 %v565, 127
        %v769 = vpop.permute.xlu0 %768
        %770 = vrot.lane.b32.xlu0 %v566, 127
        %v771 = vpop.permute.xlu0 %770
        %772 = vrot.lane.b32.xlu0 %v567, 127
        %v773 = vpop.permute.xlu0 %772
        %v774 = vsel %vm549, 1, 0
        %vm775 = vcmp.eq.s32.totalorder %v774, 1
        %v776 = vsel %vm775, %v552, %v743
        %v777 = vsel %vm775, %v553, %v745
        %v778 = vsel %vm775, %v554, %v747
        %v779 = vsel %vm775, %v555, %v749
        %v780 = vsel %vm775, %v556, %v751
        %v781 = vsel %vm775, %v557, %v753
        %v782 = vsel %vm775, %v558, %v755
        %v783 = vsel %vm775, %v559, %v757
        %v784 = vsel %vm775, %v560, %v759
        %v785 = vsel %vm775, %v561, %v761
        %v786 = vsel %vm775, %v562, %v763
        %v787 = vsel %vm775, %v563, %v765
        %v788 = vsel %vm775, %v564, %v767
        %v789 = vsel %vm775, %v565, %v769
        %v790 = vsel %vm775, %v566, %v771
        %v791 = vsel %vm775, %v567, %v773
        %792 = vrot.lane.b32.xlu0 %v552, 1
        %v793 = vpop.permute.xlu0 %792
        %794 = vrot.lane.b32.xlu0 %v553, 1
        %v795 = vpop.permute.xlu0 %794
        %796 = vrot.lane.b32.xlu0 %v554, 1
        %v797 = vpop.permute.xlu0 %796
        %798 = vrot.lane.b32.xlu0 %v555, 1
        %v799 = vpop.permute.xlu0 %798
        %800 = vrot.lane.b32.xlu0 %v556, 1
        %v801 = vpop.permute.xlu0 %800
        %802 = vrot.lane.b32.xlu0 %v557, 1
        %v803 = vpop.permute.xlu0 %802
        %804 = vrot.lane.b32.xlu0 %v558, 1
        %v805 = vpop.permute.xlu0 %804
        %806 = vrot.lane.b32.xlu0 %v559, 1
        %v807 = vpop.permute.xlu0 %806
        %808 = vrot.lane.b32.xlu0 %v560, 1
        %v809 = vpop.permute.xlu0 %808
        %810 = vrot.lane.b32.xlu0 %v561, 1
        %v811 = vpop.permute.xlu0 %810
        %812 = vrot.lane.b32.xlu0 %v562, 1
        %v813 = vpop.permute.xlu0 %812
        %814 = vrot.lane.b32.xlu0 %v563, 1
        %v815 = vpop.permute.xlu0 %814
        %816 = vrot.lane.b32.xlu0 %v564, 1
        %v817 = vpop.permute.xlu0 %816
        %818 = vrot.lane.b32.xlu0 %v565, 1
        %v819 = vpop.permute.xlu0 %818
        %820 = vrot.lane.b32.xlu0 %v566, 1
        %v821 = vpop.permute.xlu0 %820
        %822 = vrot.lane.b32.xlu0 %v567, 1
        %v823 = vpop.permute.xlu0 %822
        %v824 = vsel %vm548, 1, 0
        %vm825 = vcmp.eq.s32.totalorder %v824, 1
        %v826 = vsel %vm825, %v552, %v793
        %v827 = vsel %vm825, %v553, %v795
        %v828 = vsel %vm825, %v554, %v797
        %v829 = vsel %vm825, %v555, %v799
        %v830 = vsel %vm825, %v556, %v801
        %v831 = vsel %vm825, %v557, %v803
        %v832 = vsel %vm825, %v558, %v805
        %v833 = vsel %vm825, %v559, %v807
        %v834 = vsel %vm825, %v560, %v809
        %v835 = vsel %vm825, %v561, %v811
        %v836 = vsel %vm825, %v562, %v813
        %v837 = vsel %vm825, %v563, %v815
        %v838 = vsel %vm825, %v564, %v817
        %v839 = vsel %vm825, %v565, %v819
        %v840 = vsel %vm825, %v566, %v821
        %v841 = vsel %vm825, %v567, %v823
        %v842 = vsub.f32 %v776, %v826
        %v843 = vsub.f32 %v777, %v827
        %v844 = vsub.f32 %v778, %v828
        %v845 = vsub.f32 %v779, %v829
        %v846 = vsub.f32 %v780, %v830
        %v847 = vsub.f32 %v781, %v831
        %v848 = vsub.f32 %v782, %v832
        %v849 = vsub.f32 %v783, %v833
        %v850 = vsub.f32 %v784, %v834
        %v851 = vsub.f32 %v785, %v835
        %v852 = vsub.f32 %v786, %v836
        %v853 = vsub.f32 %v787, %v837
        %v854 = vsub.f32 %v788, %v838
        %v855 = vsub.f32 %v789, %v839
        %v856 = vsub.f32 %v790, %v840
        %v857 = vsub.f32 %v791, %v841
        %v858 = vmul.f32 %v842, %v551
        %v859 = vmul.f32 %v843, %v551
        %v860 = vmul.f32 %v844, %v551
        %v861 = vmul.f32 %v845, %v551
        %v862 = vmul.f32 %v846, %v551
        %v863 = vmul.f32 %v847, %v551
        %v864 = vmul.f32 %v848, %v551
        %v865 = vmul.f32 %v849, %v551
        %v866 = vmul.f32 %v850, %v551
        %v867 = vmul.f32 %v851, %v551
        %v868 = vmul.f32 %v852, %v551
        %v869 = vmul.f32 %v853, %v551
        %v870 = vmul.f32 %v854, %v551
        %v871 = vmul.f32 %v855, %v551
        %v872 = vmul.f32 %v856, %v551
        %v873 = vmul.f32 %v857, %v551
        %s874 = scalar_lea.vmem %s410, 128 [#allocation2]
        %v875 = vld [vmem:[%s874] sm:$0xff]
        %v876 = vld [vmem:[%s874 + $0x8] sm:$0xff]
        %v877 = vld [vmem:[%s874 + $0x10] sm:$0xff]
        %v878 = vld [vmem:[%s874 + $0x18] sm:$0xff]
        %v879 = vld [vmem:[%s874 + $0x20] sm:$0xff]
        %v880 = vld [vmem:[%s874 + $0x28] sm:$0xff]
        %v881 = vld [vmem:[%s874 + $0x30] sm:$0xff]
        %v882 = vld [vmem:[%s874 + $0x38] sm:$0xff]
        %v883 = vld [vmem:[%s874 + $0x40] sm:$0xff]
        %v884 = vld [vmem:[%s874 + $0x48] sm:$0xff]
        %v885 = vld [vmem:[%s874 + $0x50] sm:$0xff]
        %v886 = vld [vmem:[%s874 + $0x58] sm:$0xff]
        %v887 = vld [vmem:[%s874 + $0x60] sm:$0xff]
        %v888 = vld [vmem:[%s874 + $0x68] sm:$0xff]
        %v889 = vld [vmem:[%s874 + $0x70] sm:$0xff]
        %v890 = vld [vmem:[%s874 + $0x78] sm:$0xff]
        %s891 = scalar_lea.vmem %s419, 16 [#allocation6]
        %v892 = vld [vmem:[%s891] sm:$0xff]
        %v893 = vld [vmem:[%s891 + $0x8] sm:$0xff]
        %s894 = scalar_lea.vmem %s428, 16 [#allocation8]
        %v895 = vld [vmem:[%s894] sm:$0xff]
        %v896 = vld [vmem:[%s894 + $0x8] sm:$0xff]
        %v897 = vsub.f32 %v877, %v892
        %v898 = vsub.f32 %v878, %v893
        %v899 = vsub.f32 %v879, %v875
        %v900 = vsub.f32 %v880, %v876
        %v901 = vsub.f32 %v881, %v877
        %v902 = vsub.f32 %v882, %v878
        %v903 = vsub.f32 %v883, %v879
        %v904 = vsub.f32 %v884, %v880
        %v905 = vsub.f32 %v885, %v881
        %v906 = vsub.f32 %v886, %v882
        %v907 = vsub.f32 %v887, %v883
        %v908 = vsub.f32 %v888, %v884
        %v909 = vsub.f32 %v889, %v885
        %v910 = vsub.f32 %v890, %v886
        %v911 = vsub.f32 %v895, %v887
        %v912 = vsub.f32 %v896, %v888
        %v913 = vmul.f32 %v897, %v527
        %v914 = vmul.f32 %v898, %v527
        %v915 = vmul.f32 %v899, %v528
        %v916 = vmul.f32 %v900, %v528
        %v917 = vmul.f32 %v901, %v529
        %v918 = vmul.f32 %v902, %v529
        %v919 = vmul.f32 %v903, %v530
        %v920 = vmul.f32 %v904, %v530
        %v921 = vmul.f32 %v905, %v531
        %v922 = vmul.f32 %v906, %v531
        %v923 = vmul.f32 %v907, %v532
        %v924 = vmul.f32 %v908, %v532
        %v925 = vmul.f32 %v909, %v533
        %v926 = vmul.f32 %v910, %v533
        %v927 = vmul.f32 %v911, %v534
        %v928 = vmul.f32 %v912, %v534
        %v929 = vrot.slane %v875, 1
        %v930 = vrot.slane %v877, 1
        %v931 = vrot.slane %v879, 1
        %v932 = vrot.slane %v881, 1
        %v933 = vrot.slane %v883, 1
        %v934 = vrot.slane %v885, 1
        %v935 = vrot.slane %v887, 1
        %v936 = vrot.slane %v889, 1
        %v937 = vrot.slane %v876, 1
        %v938 = vrot.slane %v878, 1
        %v939 = vrot.slane %v880, 1
        %v940 = vrot.slane %v882, 1
        %v941 = vrot.slane %v884, 1
        %v942 = vrot.slane %v886, 1
        %v943 = vrot.slane %v888, 1
        %v944 = vrot.slane %v890, 1
        %v945 = vsel %vm620, %v929, %v937
        %v946 = vsel %vm620, %v930, %v938
        %v947 = vsel %vm620, %v931, %v939
        %v948 = vsel %vm620, %v932, %v940
        %v949 = vsel %vm620, %v933, %v941
        %v950 = vsel %vm620, %v934, %v942
        %v951 = vsel %vm620, %v935, %v943
        %v952 = vsel %vm620, %v936, %v944
        %v953 = vsel %vm620, %v937, %v929
        %v954 = vsel %vm620, %v938, %v930
        %v955 = vsel %vm620, %v939, %v931
        %v956 = vsel %vm620, %v940, %v932
        %v957 = vsel %vm620, %v941, %v933
        %v958 = vsel %vm620, %v942, %v934
        %v959 = vsel %vm620, %v943, %v935
        %v960 = vsel %vm620, %v944, %v936
        %v961 = vsel %vm639, %v875, %v945
        %v962 = vsel %vm640, %v876, %v953
        %v963 = vsel %vm639, %v877, %v946
        %v964 = vsel %vm640, %v878, %v954
        %v965 = vsel %vm639, %v879, %v947
        %v966 = vsel %vm640, %v880, %v955
        %v967 = vsel %vm639, %v881, %v948
        %v968 = vsel %vm640, %v882, %v956
        %v969 = vsel %vm639, %v883, %v949
        %v970 = vsel %vm640, %v884, %v957
        %v971 = vsel %vm639, %v885, %v950
        %v972 = vsel %vm640, %v886, %v958
        %v973 = vsel %vm639, %v887, %v951
        %v974 = vsel %vm640, %v888, %v959
        %v975 = vsel %vm639, %v889, %v952
        %v976 = vsel %vm640, %v890, %v960
        %v977 = vrot.slane %v875, 7
        %v978 = vrot.slane %v877, 7
        %v979 = vrot.slane %v879, 7
        %v980 = vrot.slane %v881, 7
        %v981 = vrot.slane %v883, 7
        %v982 = vrot.slane %v885, 7
        %v983 = vrot.slane %v887, 7
        %v984 = vrot.slane %v889, 7
        %v985 = vrot.slane %v876, 7
        %v986 = vrot.slane %v878, 7
        %v987 = vrot.slane %v880, 7
        %v988 = vrot.slane %v882, 7
        %v989 = vrot.slane %v884, 7
        %v990 = vrot.slane %v886, 7
        %v991 = vrot.slane %v888, 7
        %v992 = vrot.slane %v890, 7
        %v993 = vsel %vm673, %v977, %v985
        %v994 = vsel %vm673, %v978, %v986
        %v995 = vsel %vm673, %v979, %v987
        %v996 = vsel %vm673, %v980, %v988
        %v997 = vsel %vm673, %v981, %v989
        %v998 = vsel %vm673, %v982, %v990
        %v999 = vsel %vm673, %v983, %v991
        %v1000 = vsel %vm673, %v984, %v992
        %v1001 = vsel %vm673, %v985, %v977
        %v1002 = vsel %vm673, %v986, %v978
        %v1003 = vsel %vm673, %v987, %v979
        %v1004 = vsel %vm673, %v988, %v980
        %v1005 = vsel %vm673, %v989, %v981
        %v1006 = vsel %vm673, %v990, %v982
        %v1007 = vsel %vm673, %v991, %v983
        %v1008 = vsel %vm673, %v992, %v984
        %v1009 = vsel %vm692, %v875, %v1001
        %v1010 = vsel %vm693, %v876, %v993
        %v1011 = vsel %vm692, %v877, %v1002
        %v1012 = vsel %vm693, %v878, %v994
        %v1013 = vsel %vm692, %v879, %v1003
        %v1014 = vsel %vm693, %v880, %v995
        %v1015 = vsel %vm692, %v881, %v1004
        %v1016 = vsel %vm693, %v882, %v996
        %v1017 = vsel %vm692, %v883, %v1005
        %v1018 = vsel %vm693, %v884, %v997
        %v1019 = vsel %vm692, %v885, %v1006
        %v1020 = vsel %vm693, %v886, %v998
        %v1021 = vsel %vm692, %v887, %v1007
        %v1022 = vsel %vm693, %v888, %v999
        %v1023 = vsel %vm692, %v889, %v1008
        %v1024 = vsel %vm693, %v890, %v1000
        %v1025 = vsub.f32 %v961, %v1009
        %v1026 = vsub.f32 %v962, %v1010
        %v1027 = vsub.f32 %v963, %v1011
        %v1028 = vsub.f32 %v964, %v1012
        %v1029 = vsub.f32 %v965, %v1013
        %v1030 = vsub.f32 %v966, %v1014
        %v1031 = vsub.f32 %v967, %v1015
        %v1032 = vsub.f32 %v968, %v1016
        %v1033 = vsub.f32 %v969, %v1017
        %v1034 = vsub.f32 %v970, %v1018
        %v1035 = vsub.f32 %v971, %v1019
        %v1036 = vsub.f32 %v972, %v1020
        %v1037 = vsub.f32 %v973, %v1021
        %v1038 = vsub.f32 %v974, %v1022
        %v1039 = vsub.f32 %v975, %v1023
        %v1040 = vsub.f32 %v976, %v1024
        %v1041 = vmul.f32 %v1025, %v544
        %v1042 = vmul.f32 %v1026, %v545
        %v1043 = vmul.f32 %v1027, %v544
        %v1044 = vmul.f32 %v1028, %v545
        %v1045 = vmul.f32 %v1029, %v544
        %v1046 = vmul.f32 %v1030, %v545
        %v1047 = vmul.f32 %v1031, %v544
        %v1048 = vmul.f32 %v1032, %v545
        %v1049 = vmul.f32 %v1033, %v544
        %v1050 = vmul.f32 %v1034, %v545
        %v1051 = vmul.f32 %v1035, %v544
        %v1052 = vmul.f32 %v1036, %v545
        %v1053 = vmul.f32 %v1037, %v544
        %v1054 = vmul.f32 %v1038, %v545
        %v1055 = vmul.f32 %v1039, %v544
        %v1056 = vmul.f32 %v1040, %v545
        %1057 = vrot.lane.b32.xlu0 %v875, 127
        %v1058 = vpop.permute.xlu0 %1057
        %1059 = vrot.lane.b32.xlu0 %v876, 127
        %v1060 = vpop.permute.xlu0 %1059
        %1061 = vrot.lane.b32.xlu0 %v877, 127
        %v1062 = vpop.permute.xlu0 %1061
        %1063 = vrot.lane.b32.xlu0 %v878, 127
        %v1064 = vpop.permute.xlu0 %1063
        %1065 = vrot.lane.b32.xlu0 %v879, 127
        %v1066 = vpop.permute.xlu0 %1065
        %1067 = vrot.lane.b32.xlu0 %v880, 127
        %v1068 = vpop.permute.xlu0 %1067
        %1069 = vrot.lane.b32.xlu0 %v881, 127
        %v1070 = vpop.permute.xlu0 %1069
        %1071 = vrot.lane.b32.xlu0 %v882, 127
        %v1072 = vpop.permute.xlu0 %1071
        %1073 = vrot.lane.b32.xlu0 %v883, 127
        %v1074 = vpop.permute.xlu0 %1073
        %1075 = vrot.lane.b32.xlu0 %v884, 127
        %v1076 = vpop.permute.xlu0 %1075
        %1077 = vrot.lane.b32.xlu0 %v885, 127
        %v1078 = vpop.permute.xlu0 %1077
        %1079 = vrot.lane.b32.xlu0 %v886, 127
        %v1080 = vpop.permute.xlu0 %1079
        %1081 = vrot.lane.b32.xlu0 %v887, 127
        %v1082 = vpop.permute.xlu0 %1081
        %1083 = vrot.lane.b32.xlu0 %v888, 127
        %v1084 = vpop.permute.xlu0 %1083
        %1085 = vrot.lane.b32.xlu0 %v889, 127
        %v1086 = vpop.permute.xlu0 %1085
        %1087 = vrot.lane.b32.xlu0 %v890, 127
        %v1088 = vpop.permute.xlu0 %1087
        %v1089 = vsel %vm775, %v875, %v1058
        %v1090 = vsel %vm775, %v876, %v1060
        %v1091 = vsel %vm775, %v877, %v1062
        %v1092 = vsel %vm775, %v878, %v1064
        %v1093 = vsel %vm775, %v879, %v1066
        %v1094 = vsel %vm775, %v880, %v1068
        %v1095 = vsel %vm775, %v881, %v1070
        %v1096 = vsel %vm775, %v882, %v1072
        %v1097 = vsel %vm775, %v883, %v1074
        %v1098 = vsel %vm775, %v884, %v1076
        %v1099 = vsel %vm775, %v885, %v1078
        %v1100 = vsel %vm775, %v886, %v1080
        %v1101 = vsel %vm775, %v887, %v1082
        %v1102 = vsel %vm775, %v888, %v1084
        %v1103 = vsel %vm775, %v889, %v1086
        %v1104 = vsel %vm775, %v890, %v1088
        %1105 = vrot.lane.b32.xlu0 %v875, 1
        %v1106 = vpop.permute.xlu0 %1105
        %1107 = vrot.lane.b32.xlu0 %v876, 1
        %v1108 = vpop.permute.xlu0 %1107
        %1109 = vrot.lane.b32.xlu0 %v877, 1
        %v1110 = vpop.permute.xlu0 %1109
        %1111 = vrot.lane.b32.xlu0 %v878, 1
        %v1112 = vpop.permute.xlu0 %1111
        %1113 = vrot.lane.b32.xlu0 %v879, 1
        %v1114 = vpop.permute.xlu0 %1113
        %1115 = vrot.lane.b32.xlu0 %v880, 1
        %v1116 = vpop.permute.xlu0 %1115
        %1117 = vrot.lane.b32.xlu0 %v881, 1
        %v1118 = vpop.permute.xlu0 %1117
        %1119 = vrot.lane.b32.xlu0 %v882, 1
        %v1120 = vpop.permute.xlu0 %1119
        %1121 = vrot.lane.b32.xlu0 %v883, 1
        %v1122 = vpop.permute.xlu0 %1121
        %1123 = vrot.lane.b32.xlu0 %v884, 1
        %v1124 = vpop.permute.xlu0 %1123
        %1125 = vrot.lane.b32.xlu0 %v885, 1
        %v1126 = vpop.permute.xlu0 %1125
        %1127 = vrot.lane.b32.xlu0 %v886, 1
        %v1128 = vpop.permute.xlu0 %1127
        %1129 = vrot.lane.b32.xlu0 %v887, 1
        %v1130 = vpop.permute.xlu0 %1129
        %1131 = vrot.lane.b32.xlu0 %v888, 1
        %v1132 = vpop.permute.xlu0 %1131
        %1133 = vrot.lane.b32.xlu0 %v889, 1
        %v1134 = vpop.permute.xlu0 %1133
        %1135 = vrot.lane.b32.xlu0 %v890, 1
        %v1136 = vpop.permute.xlu0 %1135
        %v1137 = vsel %vm825, %v875, %v1106
        %v1138 = vsel %vm825, %v876, %v1108
        %v1139 = vsel %vm825, %v877, %v1110
        %v1140 = vsel %vm825, %v878, %v1112
        %v1141 = vsel %vm825, %v879, %v1114
        %v1142 = vsel %vm825, %v880, %v1116
        %v1143 = vsel %vm825, %v881, %v1118
        %v1144 = vsel %vm825, %v882, %v1120
        %v1145 = vsel %vm825, %v883, %v1122
        %v1146 = vsel %vm825, %v884, %v1124
        %v1147 = vsel %vm825, %v885, %v1126
        %v1148 = vsel %vm825, %v886, %v1128
        %v1149 = vsel %vm825, %v887, %v1130
        %v1150 = vsel %vm825, %v888, %v1132
        %v1151 = vsel %vm825, %v889, %v1134
        %v1152 = vsel %vm825, %v890, %v1136
        %v1153 = vsub.f32 %v1089, %v1137
        %v1154 = vsub.f32 %v1090, %v1138
        %v1155 = vsub.f32 %v1091, %v1139
        %v1156 = vsub.f32 %v1092, %v1140
        %v1157 = vsub.f32 %v1093, %v1141
        %v1158 = vsub.f32 %v1094, %v1142
        %v1159 = vsub.f32 %v1095, %v1143
        %v1160 = vsub.f32 %v1096, %v1144
        %v1161 = vsub.f32 %v1097, %v1145
        %v1162 = vsub.f32 %v1098, %v1146
        %v1163 = vsub.f32 %v1099, %v1147
        %v1164 = vsub.f32 %v1100, %v1148
        %v1165 = vsub.f32 %v1101, %v1149
        %v1166 = vsub.f32 %v1102, %v1150
        %v1167 = vsub.f32 %v1103, %v1151
        %v1168 = vsub.f32 %v1104, %v1152
        %v1169 = vmul.f32 %v1153, %v551
        %v1170 = vmul.f32 %v1154, %v551
        %v1171 = vmul.f32 %v1155, %v551
        %v1172 = vmul.f32 %v1156, %v551
        %v1173 = vmul.f32 %v1157, %v551
        %v1174 = vmul.f32 %v1158, %v551
        %v1175 = vmul.f32 %v1159, %v551
        %v1176 = vmul.f32 %v1160, %v551
        %v1177 = vmul.f32 %v1161, %v551
        %v1178 = vmul.f32 %v1162, %v551
        %v1179 = vmul.f32 %v1163, %v551
        %v1180 = vmul.f32 %v1164, %v551
        %v1181 = vmul.f32 %v1165, %v551
        %v1182 = vmul.f32 %v1166, %v551
        %v1183 = vmul.f32 %v1167, %v551
        %v1184 = vmul.f32 %v1168, %v551
        %s1185 = scalar_lea.vmem %s410, 256 [#allocation2]
        %v1186 = vld [vmem:[%s1185] sm:$0xff]
        %v1187 = vld [vmem:[%s1185 + $0x8] sm:$0xff]
        %v1188 = vld [vmem:[%s1185 + $0x10] sm:$0xff]
        %v1189 = vld [vmem:[%s1185 + $0x18] sm:$0xff]
        %v1190 = vld [vmem:[%s1185 + $0x20] sm:$0xff]
        %v1191 = vld [vmem:[%s1185 + $0x28] sm:$0xff]
        %v1192 = vld [vmem:[%s1185 + $0x30] sm:$0xff]
        %v1193 = vld [vmem:[%s1185 + $0x38] sm:$0xff]
        %v1194 = vld [vmem:[%s1185 + $0x40] sm:$0xff]
        %v1195 = vld [vmem:[%s1185 + $0x48] sm:$0xff]
        %v1196 = vld [vmem:[%s1185 + $0x50] sm:$0xff]
        %v1197 = vld [vmem:[%s1185 + $0x58] sm:$0xff]
        %v1198 = vld [vmem:[%s1185 + $0x60] sm:$0xff]
        %v1199 = vld [vmem:[%s1185 + $0x68] sm:$0xff]
        %v1200 = vld [vmem:[%s1185 + $0x70] sm:$0xff]
        %v1201 = vld [vmem:[%s1185 + $0x78] sm:$0xff]
        %s1202 = scalar_lea.vmem %s419, 32 [#allocation6]
        %v1203 = vld [vmem:[%s1202] sm:$0xff]
        %v1204 = vld [vmem:[%s1202 + $0x8] sm:$0xff]
        %s1205 = scalar_lea.vmem %s428, 32 [#allocation8]
        %v1206 = vld [vmem:[%s1205] sm:$0xff]
        %v1207 = vld [vmem:[%s1205 + $0x8] sm:$0xff]
        %v1208 = vsub.f32 %v1188, %v1203
        %v1209 = vsub.f32 %v1189, %v1204
        %v1210 = vsub.f32 %v1190, %v1186
        %v1211 = vsub.f32 %v1191, %v1187
        %v1212 = vsub.f32 %v1192, %v1188
        %v1213 = vsub.f32 %v1193, %v1189
        %v1214 = vsub.f32 %v1194, %v1190
        %v1215 = vsub.f32 %v1195, %v1191
        %v1216 = vsub.f32 %v1196, %v1192
        %v1217 = vsub.f32 %v1197, %v1193
        %v1218 = vsub.f32 %v1198, %v1194
        %v1219 = vsub.f32 %v1199, %v1195
        %v1220 = vsub.f32 %v1200, %v1196
        %v1221 = vsub.f32 %v1201, %v1197
        %v1222 = vsub.f32 %v1206, %v1198
        %v1223 = vsub.f32 %v1207, %v1199
        %v1224 = vmul.f32 %v1208, %v527
        %v1225 = vmul.f32 %v1209, %v527
        %v1226 = vmul.f32 %v1210, %v528
        %v1227 = vmul.f32 %v1211, %v528
        %v1228 = vmul.f32 %v1212, %v529
        %v1229 = vmul.f32 %v1213, %v529
        %v1230 = vmul.f32 %v1214, %v530
        %v1231 = vmul.f32 %v1215, %v530
        %v1232 = vmul.f32 %v1216, %v531
        %v1233 = vmul.f32 %v1217, %v531
        %v1234 = vmul.f32 %v1218, %v532
        %v1235 = vmul.f32 %v1219, %v532
        %v1236 = vmul.f32 %v1220, %v533
        %v1237 = vmul.f32 %v1221, %v533
        %v1238 = vmul.f32 %v1222, %v534
        %v1239 = vmul.f32 %v1223, %v534
        %v1240 = vrot.slane %v1186, 1
        %v1241 = vrot.slane %v1188, 1
        %v1242 = vrot.slane %v1190, 1
        %v1243 = vrot.slane %v1192, 1
        %v1244 = vrot.slane %v1194, 1
        %v1245 = vrot.slane %v1196, 1
        %v1246 = vrot.slane %v1198, 1
        %v1247 = vrot.slane %v1200, 1
        %v1248 = vrot.slane %v1187, 1
        %v1249 = vrot.slane %v1189, 1
        %v1250 = vrot.slane %v1191, 1
        %v1251 = vrot.slane %v1193, 1
        %v1252 = vrot.slane %v1195, 1
        %v1253 = vrot.slane %v1197, 1
        %v1254 = vrot.slane %v1199, 1
        %v1255 = vrot.slane %v1201, 1
        %v1256 = vsel %vm620, %v1240, %v1248
        %v1257 = vsel %vm620, %v1241, %v1249
        %v1258 = vsel %vm620, %v1242, %v1250
        %v1259 = vsel %vm620, %v1243, %v1251
        %v1260 = vsel %vm620, %v1244, %v1252
        %v1261 = vsel %vm620, %v1245, %v1253
        %v1262 = vsel %vm620, %v1246, %v1254
        %v1263 = vsel %vm620, %v1247, %v1255
        %v1264 = vsel %vm620, %v1248, %v1240
        %v1265 = vsel %vm620, %v1249, %v1241
        %v1266 = vsel %vm620, %v1250, %v1242
        %v1267 = vsel %vm620, %v1251, %v1243
        %v1268 = vsel %vm620, %v1252, %v1244
        %v1269 = vsel %vm620, %v1253, %v1245
        %v1270 = vsel %vm620, %v1254, %v1246
        %v1271 = vsel %vm620, %v1255, %v1247
        %v1272 = vsel %vm639, %v1186, %v1256
        %v1273 = vsel %vm640, %v1187, %v1264
        %v1274 = vsel %vm639, %v1188, %v1257
        %v1275 = vsel %vm640, %v1189, %v1265
        %v1276 = vsel %vm639, %v1190, %v1258
        %v1277 = vsel %vm640, %v1191, %v1266
        %v1278 = vsel %vm639, %v1192, %v1259
        %v1279 = vsel %vm640, %v1193, %v1267
        %v1280 = vsel %vm639, %v1194, %v1260
        %v1281 = vsel %vm640, %v1195, %v1268
        %v1282 = vsel %vm639, %v1196, %v1261
        %v1283 = vsel %vm640, %v1197, %v1269
        %v1284 = vsel %vm639, %v1198, %v1262
        %v1285 = vsel %vm640, %v1199, %v1270
        %v1286 = vsel %vm639, %v1200, %v1263
        %v1287 = vsel %vm640, %v1201, %v1271
        %v1288 = vrot.slane %v1186, 7
        %v1289 = vrot.slane %v1188, 7
        %v1290 = vrot.slane %v1190, 7
        %v1291 = vrot.slane %v1192, 7
        %v1292 = vrot.slane %v1194, 7
        %v1293 = vrot.slane %v1196, 7
        %v1294 = vrot.slane %v1198, 7
        %v1295 = vrot.slane %v1200, 7
        %v1296 = vrot.slane %v1187, 7
        %v1297 = vrot.slane %v1189, 7
        %v1298 = vrot.slane %v1191, 7
        %v1299 = vrot.slane %v1193, 7
        %v1300 = vrot.slane %v1195, 7
        %v1301 = vrot.slane %v1197, 7
        %v1302 = vrot.slane %v1199, 7
        %v1303 = vrot.slane %v1201, 7
        %v1304 = vsel %vm673, %v1288, %v1296
        %v1305 = vsel %vm673, %v1289, %v1297
        %v1306 = vsel %vm673, %v1290, %v1298
        %v1307 = vsel %vm673, %v1291, %v1299
        %v1308 = vsel %vm673, %v1292, %v1300
        %v1309 = vsel %vm673, %v1293, %v1301
        %v1310 = vsel %vm673, %v1294, %v1302
        %v1311 = vsel %vm673, %v1295, %v1303
        %v1312 = vsel %vm673, %v1296, %v1288
        %v1313 = vsel %vm673, %v1297, %v1289
        %v1314 = vsel %vm673, %v1298, %v1290
        %v1315 = vsel %vm673, %v1299, %v1291
        %v1316 = vsel %vm673, %v1300, %v1292
        %v1317 = vsel %vm673, %v1301, %v1293
        %v1318 = vsel %vm673, %v1302, %v1294
        %v1319 = vsel %vm673, %v1303, %v1295
        %v1320 = vsel %vm692, %v1186, %v1312
        %v1321 = vsel %vm693, %v1187, %v1304
        %v1322 = vsel %vm692, %v1188, %v1313
        %v1323 = vsel %vm693, %v1189, %v1305
        %v1324 = vsel %vm692, %v1190, %v1314
        %v1325 = vsel %vm693, %v1191, %v1306
        %v1326 = vsel %vm692, %v1192, %v1315
        %v1327 = vsel %vm693, %v1193, %v1307
        %v1328 = vsel %vm692, %v1194, %v1316
        %v1329 = vsel %vm693, %v1195, %v1308
        %v1330 = vsel %vm692, %v1196, %v1317
        %v1331 = vsel %vm693, %v1197, %v1309
        %v1332 = vsel %vm692, %v1198, %v1318
        %v1333 = vsel %vm693, %v1199, %v1310
        %v1334 = vsel %vm692, %v1200, %v1319
        %v1335 = vsel %vm693, %v1201, %v1311
        %v1336 = vsub.f32 %v1272, %v1320
        %v1337 = vsub.f32 %v1273, %v1321
        %v1338 = vsub.f32 %v1274, %v1322
        %v1339 = vsub.f32 %v1275, %v1323
        %v1340 = vsub.f32 %v1276, %v1324
        %v1341 = vsub.f32 %v1277, %v1325
        %v1342 = vsub.f32 %v1278, %v1326
        %v1343 = vsub.f32 %v1279, %v1327
        %v1344 = vsub.f32 %v1280, %v1328
        %v1345 = vsub.f32 %v1281, %v1329
        %v1346 = vsub.f32 %v1282, %v1330
        %v1347 = vsub.f32 %v1283, %v1331
        %v1348 = vsub.f32 %v1284, %v1332
        %v1349 = vsub.f32 %v1285, %v1333
        %v1350 = vsub.f32 %v1286, %v1334
        %v1351 = vsub.f32 %v1287, %v1335
        %v1352 = vmul.f32 %v1336, %v544
        %v1353 = vmul.f32 %v1337, %v545
        %v1354 = vmul.f32 %v1338, %v544
        %v1355 = vmul.f32 %v1339, %v545
        %v1356 = vmul.f32 %v1340, %v544
        %v1357 = vmul.f32 %v1341, %v545
        %v1358 = vmul.f32 %v1342, %v544
        %v1359 = vmul.f32 %v1343, %v545
        %v1360 = vmul.f32 %v1344, %v544
        %v1361 = vmul.f32 %v1345, %v545
        %v1362 = vmul.f32 %v1346, %v544
        %v1363 = vmul.f32 %v1347, %v545
        %v1364 = vmul.f32 %v1348, %v544
        %v1365 = vmul.f32 %v1349, %v545
        %v1366 = vmul.f32 %v1350, %v544
        %v1367 = vmul.f32 %v1351, %v545
        %1368 = vrot.lane.b32.xlu0 %v1186, 127
        %v1369 = vpop.permute.xlu0 %1368
        %1370 = vrot.lane.b32.xlu0 %v1187, 127
        %v1371 = vpop.permute.xlu0 %1370
        %1372 = vrot.lane.b32.xlu0 %v1188, 127
        %v1373 = vpop.permute.xlu0 %1372
        %1374 = vrot.lane.b32.xlu0 %v1189, 127
        %v1375 = vpop.permute.xlu0 %1374
        %1376 = vrot.lane.b32.xlu0 %v1190, 127
        %v1377 = vpop.permute.xlu0 %1376
        %1378 = vrot.lane.b32.xlu0 %v1191, 127
        %v1379 = vpop.permute.xlu0 %1378
        %1380 = vrot.lane.b32.xlu0 %v1192, 127
        %v1381 = vpop.permute.xlu0 %1380
        %1382 = vrot.lane.b32.xlu0 %v1193, 127
        %v1383 = vpop.permute.xlu0 %1382
        %1384 = vrot.lane.b32.xlu0 %v1194, 127
        %v1385 = vpop.permute.xlu0 %1384
        %1386 = vrot.lane.b32.xlu0 %v1195, 127
        %v1387 = vpop.permute.xlu0 %1386
        %1388 = vrot.lane.b32.xlu0 %v1196, 127
        %v1389 = vpop.permute.xlu0 %1388
        %1390 = vrot.lane.b32.xlu0 %v1197, 127
        %v1391 = vpop.permute.xlu0 %1390
        %1392 = vrot.lane.b32.xlu0 %v1198, 127
        %v1393 = vpop.permute.xlu0 %1392
        %1394 = vrot.lane.b32.xlu0 %v1199, 127
        %v1395 = vpop.permute.xlu0 %1394
        %1396 = vrot.lane.b32.xlu0 %v1200, 127
        %v1397 = vpop.permute.xlu0 %1396
        %1398 = vrot.lane.b32.xlu0 %v1201, 127
        %v1399 = vpop.permute.xlu0 %1398
        %v1400 = vsel %vm775, %v1186, %v1369
        %v1401 = vsel %vm775, %v1187, %v1371
        %v1402 = vsel %vm775, %v1188, %v1373
        %v1403 = vsel %vm775, %v1189, %v1375
        %v1404 = vsel %vm775, %v1190, %v1377
        %v1405 = vsel %vm775, %v1191, %v1379
        %v1406 = vsel %vm775, %v1192, %v1381
        %v1407 = vsel %vm775, %v1193, %v1383
        %v1408 = vsel %vm775, %v1194, %v1385
        %v1409 = vsel %vm775, %v1195, %v1387
        %v1410 = vsel %vm775, %v1196, %v1389
        %v1411 = vsel %vm775, %v1197, %v1391
        %v1412 = vsel %vm775, %v1198, %v1393
        %v1413 = vsel %vm775, %v1199, %v1395
        %v1414 = vsel %vm775, %v1200, %v1397
        %v1415 = vsel %vm775, %v1201, %v1399
        %1416 = vrot.lane.b32.xlu0 %v1186, 1
        %v1417 = vpop.permute.xlu0 %1416
        %1418 = vrot.lane.b32.xlu0 %v1187, 1
        %v1419 = vpop.permute.xlu0 %1418
        %1420 = vrot.lane.b32.xlu0 %v1188, 1
        %v1421 = vpop.permute.xlu0 %1420
        %1422 = vrot.lane.b32.xlu0 %v1189, 1
        %v1423 = vpop.permute.xlu0 %1422
        %1424 = vrot.lane.b32.xlu0 %v1190, 1
        %v1425 = vpop.permute.xlu0 %1424
        %1426 = vrot.lane.b32.xlu0 %v1191, 1
        %v1427 = vpop.permute.xlu0 %1426
        %1428 = vrot.lane.b32.xlu0 %v1192, 1
        %v1429 = vpop.permute.xlu0 %1428
        %1430 = vrot.lane.b32.xlu0 %v1193, 1
        %v1431 = vpop.permute.xlu0 %1430
        %1432 = vrot.lane.b32.xlu0 %v1194, 1
        %v1433 = vpop.permute.xlu0 %1432
        %1434 = vrot.lane.b32.xlu0 %v1195, 1
        %v1435 = vpop.permute.xlu0 %1434
        %1436 = vrot.lane.b32.xlu0 %v1196, 1
        %v1437 = vpop.permute.xlu0 %1436
        %1438 = vrot.lane.b32.xlu0 %v1197, 1
        %v1439 = vpop.permute.xlu0 %1438
        %1440 = vrot.lane.b32.xlu0 %v1198, 1
        %v1441 = vpop.permute.xlu0 %1440
        %1442 = vrot.lane.b32.xlu0 %v1199, 1
        %v1443 = vpop.permute.xlu0 %1442
        %1444 = vrot.lane.b32.xlu0 %v1200, 1
        %v1445 = vpop.permute.xlu0 %1444
        %1446 = vrot.lane.b32.xlu0 %v1201, 1
        %v1447 = vpop.permute.xlu0 %1446
        %v1448 = vsel %vm825, %v1186, %v1417
        %v1449 = vsel %vm825, %v1187, %v1419
        %v1450 = vsel %vm825, %v1188, %v1421
        %v1451 = vsel %vm825, %v1189, %v1423
        %v1452 = vsel %vm825, %v1190, %v1425
        %v1453 = vsel %vm825, %v1191, %v1427
        %v1454 = vsel %vm825, %v1192, %v1429
        %v1455 = vsel %vm825, %v1193, %v1431
        %v1456 = vsel %vm825, %v1194, %v1433
        %v1457 = vsel %vm825, %v1195, %v1435
        %v1458 = vsel %vm825, %v1196, %v1437
        %v1459 = vsel %vm825, %v1197, %v1439
        %v1460 = vsel %vm825, %v1198, %v1441
        %v1461 = vsel %vm825, %v1199, %v1443
        %v1462 = vsel %vm825, %v1200, %v1445
        %v1463 = vsel %vm825, %v1201, %v1447
        %v1464 = vsub.f32 %v1400, %v1448
        %v1465 = vsub.f32 %v1401, %v1449
        %v1466 = vsub.f32 %v1402, %v1450
        %v1467 = vsub.f32 %v1403, %v1451
        %v1468 = vsub.f32 %v1404, %v1452
        %v1469 = vsub.f32 %v1405, %v1453
        %v1470 = vsub.f32 %v1406, %v1454
        %v1471 = vsub.f32 %v1407, %v1455
        %v1472 = vsub.f32 %v1408, %v1456
        %v1473 = vsub.f32 %v1409, %v1457
        %v1474 = vsub.f32 %v1410, %v1458
        %v1475 = vsub.f32 %v1411, %v1459
        %v1476 = vsub.f32 %v1412, %v1460
        %v1477 = vsub.f32 %v1413, %v1461
        %v1478 = vsub.f32 %v1414, %v1462
        %v1479 = vsub.f32 %v1415, %v1463
        %v1480 = vmul.f32 %v1464, %v551
        %v1481 = vmul.f32 %v1465, %v551
        %v1482 = vmul.f32 %v1466, %v551
        %v1483 = vmul.f32 %v1467, %v551
        %v1484 = vmul.f32 %v1468, %v551
        %v1485 = vmul.f32 %v1469, %v551
        %v1486 = vmul.f32 %v1470, %v551
        %v1487 = vmul.f32 %v1471, %v551
        %v1488 = vmul.f32 %v1472, %v551
        %v1489 = vmul.f32 %v1473, %v551
        %v1490 = vmul.f32 %v1474, %v551
        %v1491 = vmul.f32 %v1475, %v551
        %v1492 = vmul.f32 %v1476, %v551
        %v1493 = vmul.f32 %v1477, %v551
        %v1494 = vmul.f32 %v1478, %v551
        %v1495 = vmul.f32 %v1479, %v551
        %v1496 = vmul.f32 %v588, %v588
        %v1497 = vmul.f32 %v589, %v589
        %v1498 = vmul.f32 %v590, %v590
        %v1499 = vmul.f32 %v591, %v591
        %v1500 = vmul.f32 %v592, %v592
        %v1501 = vmul.f32 %v593, %v593
        %v1502 = vmul.f32 %v594, %v594
        %v1503 = vmul.f32 %v595, %v595
        %v1504 = vmul.f32 %v596, %v596
        %v1505 = vmul.f32 %v597, %v597
        %v1506 = vmul.f32 %v598, %v598
        %v1507 = vmul.f32 %v599, %v599
        %v1508 = vmul.f32 %v600, %v600
        %v1509 = vmul.f32 %v601, %v601
        %v1510 = vmul.f32 %v602, %v602
        %v1511 = vmul.f32 %v603, %v603
        %v1512 = vmul.f32 %v1041, %v1041
        %v1513 = vmul.f32 %v1042, %v1042
        %v1514 = vmul.f32 %v1043, %v1043
        %v1515 = vmul.f32 %v1044, %v1044
        %v1516 = vmul.f32 %v1045, %v1045
        %v1517 = vmul.f32 %v1046, %v1046
        %v1518 = vmul.f32 %v1047, %v1047
        %v1519 = vmul.f32 %v1048, %v1048
        %v1520 = vmul.f32 %v1049, %v1049
        %v1521 = vmul.f32 %v1050, %v1050
        %v1522 = vmul.f32 %v1051, %v1051
        %v1523 = vmul.f32 %v1052, %v1052
        %v1524 = vmul.f32 %v1053, %v1053
        %v1525 = vmul.f32 %v1054, %v1054
        %v1526 = vmul.f32 %v1055, %v1055
        %v1527 = vmul.f32 %v1056, %v1056
        %v1528 = vmul.f32 %v1480, %v1480
        %v1529 = vmul.f32 %v1481, %v1481
        %v1530 = vmul.f32 %v1482, %v1482
        %v1531 = vmul.f32 %v1483, %v1483
        %v1532 = vmul.f32 %v1484, %v1484
        %v1533 = vmul.f32 %v1485, %v1485
        %v1534 = vmul.f32 %v1486, %v1486
        %v1535 = vmul.f32 %v1487, %v1487
        %v1536 = vmul.f32 %v1488, %v1488
        %v1537 = vmul.f32 %v1489, %v1489
        %v1538 = vmul.f32 %v1490, %v1490
        %v1539 = vmul.f32 %v1491, %v1491
        %v1540 = vmul.f32 %v1492, %v1492
        %v1541 = vmul.f32 %v1493, %v1493
        %v1542 = vmul.f32 %v1494, %v1494
        %v1543 = vmul.f32 %v1495, %v1495
        %v1544 = vadd.f32 %v1496, %v1512
        %v1545 = vadd.f32 %v1497, %v1513
        %v1546 = vadd.f32 %v1498, %v1514
        %v1547 = vadd.f32 %v1499, %v1515
        %v1548 = vadd.f32 %v1500, %v1516
        %v1549 = vadd.f32 %v1501, %v1517
        %v1550 = vadd.f32 %v1502, %v1518
        %v1551 = vadd.f32 %v1503, %v1519
        %v1552 = vadd.f32 %v1504, %v1520
        %v1553 = vadd.f32 %v1505, %v1521
        %v1554 = vadd.f32 %v1506, %v1522
        %v1555 = vadd.f32 %v1507, %v1523
        %v1556 = vadd.f32 %v1508, %v1524
        %v1557 = vadd.f32 %v1509, %v1525
        %v1558 = vadd.f32 %v1510, %v1526
        %v1559 = vadd.f32 %v1511, %v1527
        %v1560 = vadd.f32 %v1544, %v1528
        %v1561 = vadd.f32 %v1545, %v1529
        %v1562 = vadd.f32 %v1546, %v1530
        %v1563 = vadd.f32 %v1547, %v1531
        %v1564 = vadd.f32 %v1548, %v1532
        %v1565 = vadd.f32 %v1549, %v1533
        %v1566 = vadd.f32 %v1550, %v1534
        %v1567 = vadd.f32 %v1551, %v1535
        %v1568 = vadd.f32 %v1552, %v1536
        %v1569 = vadd.f32 %v1553, %v1537
        %v1570 = vadd.f32 %v1554, %v1538
        %v1571 = vadd.f32 %v1555, %v1539
        %v1572 = vadd.f32 %v1556, %v1540
        %v1573 = vadd.f32 %v1557, %v1541
        %v1574 = vadd.f32 %v1558, %v1542
        %v1575 = vadd.f32 %v1559, %v1543
        %v1576 = vmul.f32 %v726, %v726
        %v1577 = vmul.f32 %v727, %v727
        %v1578 = vmul.f32 %v728, %v728
        %v1579 = vmul.f32 %v729, %v729
        %v1580 = vmul.f32 %v730, %v730
        %v1581 = vmul.f32 %v731, %v731
        %v1582 = vmul.f32 %v732, %v732
        %v1583 = vmul.f32 %v733, %v733
        %v1584 = vmul.f32 %v734, %v734
        %v1585 = vmul.f32 %v735, %v735
        %v1586 = vmul.f32 %v736, %v736
        %v1587 = vmul.f32 %v737, %v737
        %v1588 = vmul.f32 %v738, %v738
        %v1589 = vmul.f32 %v739, %v739
        %v1590 = vmul.f32 %v740, %v740
        %v1591 = vmul.f32 %v741, %v741
        %v1592 = vadd.f32 %v1560, %v1576
        %v1593 = vadd.f32 %v1561, %v1577
        %v1594 = vadd.f32 %v1562, %v1578
        %v1595 = vadd.f32 %v1563, %v1579
        %v1596 = vadd.f32 %v1564, %v1580
        %v1597 = vadd.f32 %v1565, %v1581
        %v1598 = vadd.f32 %v1566, %v1582
        %v1599 = vadd.f32 %v1567, %v1583
        %v1600 = vadd.f32 %v1568, %v1584
        %v1601 = vadd.f32 %v1569, %v1585
        %v1602 = vadd.f32 %v1570, %v1586
        %v1603 = vadd.f32 %v1571, %v1587
        %v1604 = vadd.f32 %v1572, %v1588
        %v1605 = vadd.f32 %v1573, %v1589
        %v1606 = vadd.f32 %v1574, %v1590
        %v1607 = vadd.f32 %v1575, %v1591
        %v1608 = vmul.f32 %v858, %v858
        %v1609 = vmul.f32 %v859, %v859
        %v1610 = vmul.f32 %v860, %v860
        %v1611 = vmul.f32 %v861, %v861
        %v1612 = vmul.f32 %v862, %v862
        %v1613 = vmul.f32 %v863, %v863
        %v1614 = vmul.f32 %v864, %v864
        %v1615 = vmul.f32 %v865, %v865
        %v1616 = vmul.f32 %v866, %v866
        %v1617 = vmul.f32 %v867, %v867
        %v1618 = vmul.f32 %v868, %v868
        %v1619 = vmul.f32 %v869, %v869
        %v1620 = vmul.f32 %v870, %v870
        %v1621 = vmul.f32 %v871, %v871
        %v1622 = vmul.f32 %v872, %v872
        %v1623 = vmul.f32 %v873, %v873
        %v1624 = vadd.f32 %v1592, %v1608
        %v1625 = vadd.f32 %v1593, %v1609
        %v1626 = vadd.f32 %v1594, %v1610
        %v1627 = vadd.f32 %v1595, %v1611
        %v1628 = vadd.f32 %v1596, %v1612
        %v1629 = vadd.f32 %v1597, %v1613
        %v1630 = vadd.f32 %v1598, %v1614
        %v1631 = vadd.f32 %v1599, %v1615
        %v1632 = vadd.f32 %v1600, %v1616
        %v1633 = vadd.f32 %v1601, %v1617
        %v1634 = vadd.f32 %v1602, %v1618
        %v1635 = vadd.f32 %v1603, %v1619
        %v1636 = vadd.f32 %v1604, %v1620
        %v1637 = vadd.f32 %v1605, %v1621
        %v1638 = vadd.f32 %v1606, %v1622
        %v1639 = vadd.f32 %v1607, %v1623
        %v1640 = vmul.f32 %v913, %v913
        %v1641 = vmul.f32 %v914, %v914
        %v1642 = vmul.f32 %v915, %v915
        %v1643 = vmul.f32 %v916, %v916
        %v1644 = vmul.f32 %v917, %v917
        %v1645 = vmul.f32 %v918, %v918
        %v1646 = vmul.f32 %v919, %v919
        %v1647 = vmul.f32 %v920, %v920
        %v1648 = vmul.f32 %v921, %v921
        %v1649 = vmul.f32 %v922, %v922
        %v1650 = vmul.f32 %v923, %v923
        %v1651 = vmul.f32 %v924, %v924
        %v1652 = vmul.f32 %v925, %v925
        %v1653 = vmul.f32 %v926, %v926
        %v1654 = vmul.f32 %v927, %v927
        %v1655 = vmul.f32 %v928, %v928
        %v1656 = vadd.f32 %v1624, %v1640
        %v1657 = vadd.f32 %v1625, %v1641
        %v1658 = vadd.f32 %v1626, %v1642
        %v1659 = vadd.f32 %v1627, %v1643
        %v1660 = vadd.f32 %v1628, %v1644
        %v1661 = vadd.f32 %v1629, %v1645
        %v1662 = vadd.f32 %v1630, %v1646
        %v1663 = vadd.f32 %v1631, %v1647
        %v1664 = vadd.f32 %v1632, %v1648
        %v1665 = vadd.f32 %v1633, %v1649
        %v1666 = vadd.f32 %v1634, %v1650
        %v1667 = vadd.f32 %v1635, %v1651
        %v1668 = vadd.f32 %v1636, %v1652
        %v1669 = vadd.f32 %v1637, %v1653
        %v1670 = vadd.f32 %v1638, %v1654
        %v1671 = vadd.f32 %v1639, %v1655
        %v1672 = vmul.f32 %v1169, %v1169
        %v1673 = vmul.f32 %v1170, %v1170
        %v1674 = vmul.f32 %v1171, %v1171
        %v1675 = vmul.f32 %v1172, %v1172
        %v1676 = vmul.f32 %v1173, %v1173
        %v1677 = vmul.f32 %v1174, %v1174
        %v1678 = vmul.f32 %v1175, %v1175
        %v1679 = vmul.f32 %v1176, %v1176
        %v1680 = vmul.f32 %v1177, %v1177
        %v1681 = vmul.f32 %v1178, %v1178
        %v1682 = vmul.f32 %v1179, %v1179
        %v1683 = vmul.f32 %v1180, %v1180
        %v1684 = vmul.f32 %v1181, %v1181
        %v1685 = vmul.f32 %v1182, %v1182
        %v1686 = vmul.f32 %v1183, %v1183
        %v1687 = vmul.f32 %v1184, %v1184
        %v1688 = vadd.f32 %v1656, %v1672
        %v1689 = vadd.f32 %v1657, %v1673
        %v1690 = vadd.f32 %v1658, %v1674
        %v1691 = vadd.f32 %v1659, %v1675
        %v1692 = vadd.f32 %v1660, %v1676
        %v1693 = vadd.f32 %v1661, %v1677
        %v1694 = vadd.f32 %v1662, %v1678
        %v1695 = vadd.f32 %v1663, %v1679
        %v1696 = vadd.f32 %v1664, %v1680
        %v1697 = vadd.f32 %v1665, %v1681
        %v1698 = vadd.f32 %v1666, %v1682
        %v1699 = vadd.f32 %v1667, %v1683
        %v1700 = vadd.f32 %v1668, %v1684
        %v1701 = vadd.f32 %v1669, %v1685
        %v1702 = vadd.f32 %v1670, %v1686
        %v1703 = vadd.f32 %v1671, %v1687
        %v1704 = vmul.f32 %v1224, %v1224
        %v1705 = vmul.f32 %v1225, %v1225
        %v1706 = vmul.f32 %v1226, %v1226
        %v1707 = vmul.f32 %v1227, %v1227
        %v1708 = vmul.f32 %v1228, %v1228
        %v1709 = vmul.f32 %v1229, %v1229
        %v1710 = vmul.f32 %v1230, %v1230
        %v1711 = vmul.f32 %v1231, %v1231
        %v1712 = vmul.f32 %v1232, %v1232
        %v1713 = vmul.f32 %v1233, %v1233
        %v1714 = vmul.f32 %v1234, %v1234
        %v1715 = vmul.f32 %v1235, %v1235
        %v1716 = vmul.f32 %v1236, %v1236
        %v1717 = vmul.f32 %v1237, %v1237
        %v1718 = vmul.f32 %v1238, %v1238
        %v1719 = vmul.f32 %v1239, %v1239
        %v1720 = vadd.f32 %v1688, %v1704
        %v1721 = vadd.f32 %v1689, %v1705
        %v1722 = vadd.f32 %v1690, %v1706
        %v1723 = vadd.f32 %v1691, %v1707
        %v1724 = vadd.f32 %v1692, %v1708
        %v1725 = vadd.f32 %v1693, %v1709
        %v1726 = vadd.f32 %v1694, %v1710
        %v1727 = vadd.f32 %v1695, %v1711
        %v1728 = vadd.f32 %v1696, %v1712
        %v1729 = vadd.f32 %v1697, %v1713
        %v1730 = vadd.f32 %v1698, %v1714
        %v1731 = vadd.f32 %v1699, %v1715
        %v1732 = vadd.f32 %v1700, %v1716
        %v1733 = vadd.f32 %v1701, %v1717
        %v1734 = vadd.f32 %v1702, %v1718
        %v1735 = vadd.f32 %v1703, %v1719
        %v1736 = vmul.f32 %v1352, %v1352
        %v1737 = vmul.f32 %v1353, %v1353
        %v1738 = vmul.f32 %v1354, %v1354
        %v1739 = vmul.f32 %v1355, %v1355
        %v1740 = vmul.f32 %v1356, %v1356
        %v1741 = vmul.f32 %v1357, %v1357
        %v1742 = vmul.f32 %v1358, %v1358
        %v1743 = vmul.f32 %v1359, %v1359
        %v1744 = vmul.f32 %v1360, %v1360
        %v1745 = vmul.f32 %v1361, %v1361
        %v1746 = vmul.f32 %v1362, %v1362
        %v1747 = vmul.f32 %v1363, %v1363
        %v1748 = vmul.f32 %v1364, %v1364
        %v1749 = vmul.f32 %v1365, %v1365
        %v1750 = vmul.f32 %v1366, %v1366
        %v1751 = vmul.f32 %v1367, %v1367
        %v1752 = vadd.f32 %v1720, %v1736
        %v1753 = vadd.f32 %v1721, %v1737
        %v1754 = vadd.f32 %v1722, %v1738
        %v1755 = vadd.f32 %v1723, %v1739
        %v1756 = vadd.f32 %v1724, %v1740
        %v1757 = vadd.f32 %v1725, %v1741
        %v1758 = vadd.f32 %v1726, %v1742
        %v1759 = vadd.f32 %v1727, %v1743
        %v1760 = vadd.f32 %v1728, %v1744
        %v1761 = vadd.f32 %v1729, %v1745
        %v1762 = vadd.f32 %v1730, %v1746
        %v1763 = vadd.f32 %v1731, %v1747
        %v1764 = vadd.f32 %v1732, %v1748
        %v1765 = vadd.f32 %v1733, %v1749
        %v1766 = vadd.f32 %v1734, %v1750
        %v1767 = vadd.f32 %v1735, %v1751
        %v1768 = vrsqrt.pop %v1752
        %v1769 = vmul.f32 %v1752, %v1768
        %vm1770 = vcmp.eq.f32.partialorder %v1752, inf
        %v1771 = vsel %vm1770, %v1752, %v1769
        %vm1772 = vcmp.eq.f32.partialorder %v1752, 0.0
        %v1773 = vand.u32 %v1752, 2147483648
        %v1774 = vsel %vm1772, %v1773, %v1771
        %v1775 = vrsqrt.pop %v1753
        %v1776 = vmul.f32 %v1753, %v1775
        %vm1777 = vcmp.eq.f32.partialorder %v1753, inf
        %v1778 = vsel %vm1777, %v1753, %v1776
        %vm1779 = vcmp.eq.f32.partialorder %v1753, 0.0
        %v1780 = vand.u32 %v1753, 2147483648
        %v1781 = vsel %vm1779, %v1780, %v1778
        %v1782 = vrsqrt.pop %v1754
        %v1783 = vmul.f32 %v1754, %v1782
        %vm1784 = vcmp.eq.f32.partialorder %v1754, inf
        %v1785 = vsel %vm1784, %v1754, %v1783
        %vm1786 = vcmp.eq.f32.partialorder %v1754, 0.0
        %v1787 = vand.u32 %v1754, 2147483648
        %v1788 = vsel %vm1786, %v1787, %v1785
        %v1789 = vrsqrt.pop %v1755
        %v1790 = vmul.f32 %v1755, %v1789
        %vm1791 = vcmp.eq.f32.partialorder %v1755, inf
        %v1792 = vsel %vm1791, %v1755, %v1790
        %vm1793 = vcmp.eq.f32.partialorder %v1755, 0.0
        %v1794 = vand.u32 %v1755, 2147483648
        %v1795 = vsel %vm1793, %v1794, %v1792
        %v1796 = vrsqrt.pop %v1756
        %v1797 = vmul.f32 %v1756, %v1796
        %vm1798 = vcmp.eq.f32.partialorder %v1756, inf
        %v1799 = vsel %vm1798, %v1756, %v1797
        %vm1800 = vcmp.eq.f32.partialorder %v1756, 0.0
        %v1801 = vand.u32 %v1756, 2147483648
        %v1802 = vsel %vm1800, %v1801, %v1799
        %v1803 = vrsqrt.pop %v1757
        %v1804 = vmul.f32 %v1757, %v1803
        %vm1805 = vcmp.eq.f32.partialorder %v1757, inf
        %v1806 = vsel %vm1805, %v1757, %v1804
        %vm1807 = vcmp.eq.f32.partialorder %v1757, 0.0
        %v1808 = vand.u32 %v1757, 2147483648
        %v1809 = vsel %vm1807, %v1808, %v1806
        %v1810 = vrsqrt.pop %v1758
        %v1811 = vmul.f32 %v1758, %v1810
        %vm1812 = vcmp.eq.f32.partialorder %v1758, inf
        %v1813 = vsel %vm1812, %v1758, %v1811
        %vm1814 = vcmp.eq.f32.partialorder %v1758, 0.0
        %v1815 = vand.u32 %v1758, 2147483648
        %v1816 = vsel %vm1814, %v1815, %v1813
        %v1817 = vrsqrt.pop %v1759
        %v1818 = vmul.f32 %v1759, %v1817
        %vm1819 = vcmp.eq.f32.partialorder %v1759, inf
        %v1820 = vsel %vm1819, %v1759, %v1818
        %vm1821 = vcmp.eq.f32.partialorder %v1759, 0.0
        %v1822 = vand.u32 %v1759, 2147483648
        %v1823 = vsel %vm1821, %v1822, %v1820
        %v1824 = vrsqrt.pop %v1760
        %v1825 = vmul.f32 %v1760, %v1824
        %vm1826 = vcmp.eq.f32.partialorder %v1760, inf
        %v1827 = vsel %vm1826, %v1760, %v1825
        %vm1828 = vcmp.eq.f32.partialorder %v1760, 0.0
        %v1829 = vand.u32 %v1760, 2147483648
        %v1830 = vsel %vm1828, %v1829, %v1827
        %v1831 = vrsqrt.pop %v1761
        %v1832 = vmul.f32 %v1761, %v1831
        %vm1833 = vcmp.eq.f32.partialorder %v1761, inf
        %v1834 = vsel %vm1833, %v1761, %v1832
        %vm1835 = vcmp.eq.f32.partialorder %v1761, 0.0
        %v1836 = vand.u32 %v1761, 2147483648
        %v1837 = vsel %vm1835, %v1836, %v1834
        %v1838 = vrsqrt.pop %v1762
        %v1839 = vmul.f32 %v1762, %v1838
        %vm1840 = vcmp.eq.f32.partialorder %v1762, inf
        %v1841 = vsel %vm1840, %v1762, %v1839
        %vm1842 = vcmp.eq.f32.partialorder %v1762, 0.0
        %v1843 = vand.u32 %v1762, 2147483648
        %v1844 = vsel %vm1842, %v1843, %v1841
        %v1845 = vrsqrt.pop %v1763
        %v1846 = vmul.f32 %v1763, %v1845
        %vm1847 = vcmp.eq.f32.partialorder %v1763, inf
        %v1848 = vsel %vm1847, %v1763, %v1846
        %vm1849 = vcmp.eq.f32.partialorder %v1763, 0.0
        %v1850 = vand.u32 %v1763, 2147483648
        %v1851 = vsel %vm1849, %v1850, %v1848
        %v1852 = vrsqrt.pop %v1764
        %v1853 = vmul.f32 %v1764, %v1852
        %vm1854 = vcmp.eq.f32.partialorder %v1764, inf
        %v1855 = vsel %vm1854, %v1764, %v1853
        %vm1856 = vcmp.eq.f32.partialorder %v1764, 0.0
        %v1857 = vand.u32 %v1764, 2147483648
        %v1858 = vsel %vm1856, %v1857, %v1855
        %v1859 = vrsqrt.pop %v1765
        %v1860 = vmul.f32 %v1765, %v1859
        %vm1861 = vcmp.eq.f32.partialorder %v1765, inf
        %v1862 = vsel %vm1861, %v1765, %v1860
        %vm1863 = vcmp.eq.f32.partialorder %v1765, 0.0
        %v1864 = vand.u32 %v1765, 2147483648
        %v1865 = vsel %vm1863, %v1864, %v1862
        %v1866 = vrsqrt.pop %v1766
        %v1867 = vmul.f32 %v1766, %v1866
        %vm1868 = vcmp.eq.f32.partialorder %v1766, inf
        %v1869 = vsel %vm1868, %v1766, %v1867
        %vm1870 = vcmp.eq.f32.partialorder %v1766, 0.0
        %v1871 = vand.u32 %v1766, 2147483648
        %v1872 = vsel %vm1870, %v1871, %v1869
        %v1873 = vrsqrt.pop %v1767
        %v1874 = vmul.f32 %v1767, %v1873
        %vm1875 = vcmp.eq.f32.partialorder %v1767, inf
        %v1876 = vsel %vm1875, %v1767, %v1874
        %vm1877 = vcmp.eq.f32.partialorder %v1767, 0.0
        %v1878 = vand.u32 %v1767, 2147483648
        %v1879 = vsel %vm1877, %v1878, %v1876
        %v1880 = vmul.f32 %v1774, -10.0
        %v1881 = vmul.f32 %v1781, -10.0
        %v1882 = vmul.f32 %v1788, -10.0
        %v1883 = vmul.f32 %v1795, -10.0
        %v1884 = vmul.f32 %v1802, -10.0
        %v1885 = vmul.f32 %v1809, -10.0
        %v1886 = vmul.f32 %v1816, -10.0
        %v1887 = vmul.f32 %v1823, -10.0
        %v1888 = vmul.f32 %v1830, -10.0
        %v1889 = vmul.f32 %v1837, -10.0
        %v1890 = vmul.f32 %v1844, -10.0
        %v1891 = vmul.f32 %v1851, -10.0
        %v1892 = vmul.f32 %v1858, -10.0
        %v1893 = vmul.f32 %v1865, -10.0
        %v1894 = vmul.f32 %v1872, -10.0
        %v1895 = vmul.f32 %v1879, -10.0
        %v1896 = vmul.f32 %v1880, 1.442695
        %v1897 = vpow.pop %v1896
        %v1898 = vmul.f32 %v1881, 1.442695
        %v1899 = vpow.pop %v1898
        %v1900 = vmul.f32 %v1882, 1.442695
        %v1901 = vpow.pop %v1900
        %v1902 = vmul.f32 %v1883, 1.442695
        %v1903 = vpow.pop %v1902
        %v1904 = vmul.f32 %v1884, 1.442695
        %v1905 = vpow.pop %v1904
        %v1906 = vmul.f32 %v1885, 1.442695
        %v1907 = vpow.pop %v1906
        %v1908 = vmul.f32 %v1886, 1.442695
        %v1909 = vpow.pop %v1908
        %v1910 = vmul.f32 %v1887, 1.442695
        %v1911 = vpow.pop %v1910
        %v1912 = vmul.f32 %v1888, 1.442695
        %v1913 = vpow.pop %v1912
        %v1914 = vmul.f32 %v1889, 1.442695
        %v1915 = vpow.pop %v1914
        %v1916 = vmul.f32 %v1890, 1.442695
        %v1917 = vpow.pop %v1916
        %v1918 = vmul.f32 %v1891, 1.442695
        %v1919 = vpow.pop %v1918
        %v1920 = vmul.f32 %v1892, 1.442695
        %v1921 = vpow.pop %v1920
        %v1922 = vmul.f32 %v1893, 1.442695
        %v1923 = vpow.pop %v1922
        %v1924 = vmul.f32 %v1894, 1.442695
        %v1925 = vpow.pop %v1924
        %v1926 = vmul.f32 %v1895, 1.442695
        %v1927 = vpow.pop %v1926
        %v1928 = vadd.f32 %v1897, 1.0
        %v1929 = vadd.f32 %v1899, 1.0
        %v1930 = vadd.f32 %v1901, 1.0
        %v1931 = vadd.f32 %v1903, 1.0
        %v1932 = vadd.f32 %v1905, 1.0
        %v1933 = vadd.f32 %v1907, 1.0
        %v1934 = vadd.f32 %v1909, 1.0
        %v1935 = vadd.f32 %v1911, 1.0
        %v1936 = vadd.f32 %v1913, 1.0
        %v1937 = vadd.f32 %v1915, 1.0
        %v1938 = vadd.f32 %v1917, 1.0
        %v1939 = vadd.f32 %v1919, 1.0
        %v1940 = vadd.f32 %v1921, 1.0
        %v1941 = vadd.f32 %v1923, 1.0
        %v1942 = vadd.f32 %v1925, 1.0
        %v1943 = vadd.f32 %v1927, 1.0
        %v1944 = vsub.f32 0.05, %v1774
        %v1945 = vsub.f32 0.05, %v1781
        %v1946 = vsub.f32 0.05, %v1788
        %v1947 = vsub.f32 0.05, %v1795
        %v1948 = vsub.f32 0.05, %v1802
        %v1949 = vsub.f32 0.05, %v1809
        %v1950 = vsub.f32 0.05, %v1816
        %v1951 = vsub.f32 0.05, %v1823
        %v1952 = vsub.f32 0.05, %v1830
        %v1953 = vsub.f32 0.05, %v1837
        %v1954 = vsub.f32 0.05, %v1844
        %v1955 = vsub.f32 0.05, %v1851
        %v1956 = vsub.f32 0.05, %v1858
        %v1957 = vsub.f32 0.05, %v1865
        %v1958 = vsub.f32 0.05, %v1872
        %v1959 = vsub.f32 0.05, %v1879
        %v1960 = vmul.f32 %v1944, 50.0
        %v1961 = vmul.f32 %v1945, 50.0
        %v1962 = vmul.f32 %v1946, 50.0
        %v1963 = vmul.f32 %v1947, 50.0
        %v1964 = vmul.f32 %v1948, 50.0
        %v1965 = vmul.f32 %v1949, 50.0
        %v1966 = vmul.f32 %v1950, 50.0
        %v1967 = vmul.f32 %v1951, 50.0
        %v1968 = vmul.f32 %v1952, 50.0
        %v1969 = vmul.f32 %v1953, 50.0
        %v1970 = vmul.f32 %v1954, 50.0
        %v1971 = vmul.f32 %v1955, 50.0
        %v1972 = vmul.f32 %v1956, 50.0
        %v1973 = vmul.f32 %v1957, 50.0
        %v1974 = vmul.f32 %v1958, 50.0
        %v1975 = vmul.f32 %v1959, 50.0
        %v1976 = vtanh.pop %v1960
        %v1977 = vtanh.pop %v1961
        %v1978 = vtanh.pop %v1962
        %v1979 = vtanh.pop %v1963
        %v1980 = vtanh.pop %v1964
        %v1981 = vtanh.pop %v1965
        %v1982 = vtanh.pop %v1966
        %v1983 = vtanh.pop %v1967
        %v1984 = vtanh.pop %v1968
        %v1985 = vtanh.pop %v1969
        %v1986 = vtanh.pop %v1970
        %v1987 = vtanh.pop %v1971
        %v1988 = vtanh.pop %v1972
        %v1989 = vtanh.pop %v1973
        %v1990 = vtanh.pop %v1974
        %v1991 = vtanh.pop %v1975
        %v1992 = vadd.f32 %v1976, 1.0
        %v1993 = vadd.f32 %v1977, 1.0
        %v1994 = vadd.f32 %v1978, 1.0
        %v1995 = vadd.f32 %v1979, 1.0
        %v1996 = vadd.f32 %v1980, 1.0
        %v1997 = vadd.f32 %v1981, 1.0
        %v1998 = vadd.f32 %v1982, 1.0
        %v1999 = vadd.f32 %v1983, 1.0
        %v2000 = vadd.f32 %v1984, 1.0
        %v2001 = vadd.f32 %v1985, 1.0
        %v2002 = vadd.f32 %v1986, 1.0
        %v2003 = vadd.f32 %v1987, 1.0
        %v2004 = vadd.f32 %v1988, 1.0
        %v2005 = vadd.f32 %v1989, 1.0
        %v2006 = vadd.f32 %v1990, 1.0
        %v2007 = vadd.f32 %v1991, 1.0
        %v2008 = vmul.f32 %v1992, 0.5
        %v2009 = vmul.f32 %v1993, 0.5
        %v2010 = vmul.f32 %v1994, 0.5
        %v2011 = vmul.f32 %v1995, 0.5
        %v2012 = vmul.f32 %v1996, 0.5
        %v2013 = vmul.f32 %v1997, 0.5
        %v2014 = vmul.f32 %v1998, 0.5
        %v2015 = vmul.f32 %v1999, 0.5
        %v2016 = vmul.f32 %v2000, 0.5
        %v2017 = vmul.f32 %v2001, 0.5
        %v2018 = vmul.f32 %v2002, 0.5
        %v2019 = vmul.f32 %v2003, 0.5
        %v2020 = vmul.f32 %v2004, 0.5
        %v2021 = vmul.f32 %v2005, 0.5
        %v2022 = vmul.f32 %v2006, 0.5
        %v2023 = vmul.f32 %v2007, 0.5
        %v2024 = vadd.f32 %v2008, 1.0
        %v2025 = vadd.f32 %v2009, 1.0
        %v2026 = vadd.f32 %v2010, 1.0
        %v2027 = vadd.f32 %v2011, 1.0
        %v2028 = vadd.f32 %v2012, 1.0
        %v2029 = vadd.f32 %v2013, 1.0
        %v2030 = vadd.f32 %v2014, 1.0
        %v2031 = vadd.f32 %v2015, 1.0
        %v2032 = vadd.f32 %v2016, 1.0
        %v2033 = vadd.f32 %v2017, 1.0
        %v2034 = vadd.f32 %v2018, 1.0
        %v2035 = vadd.f32 %v2019, 1.0
        %v2036 = vadd.f32 %v2020, 1.0
        %v2037 = vadd.f32 %v2021, 1.0
        %v2038 = vadd.f32 %v2022, 1.0
        %v2039 = vadd.f32 %v2023, 1.0
        %v2040 = vsub.f32 0.0, %v1774
        %v2041 = vsub.f32 0.0, %v1781
        %v2042 = vsub.f32 0.0, %v1788
        %v2043 = vsub.f32 0.0, %v1795
        %v2044 = vsub.f32 0.0, %v1802
        %v2045 = vsub.f32 0.0, %v1809
        %v2046 = vsub.f32 0.0, %v1816
        %v2047 = vsub.f32 0.0, %v1823
        %v2048 = vsub.f32 0.0, %v1830
        %v2049 = vsub.f32 0.0, %v1837
        %v2050 = vsub.f32 0.0, %v1844
        %v2051 = vsub.f32 0.0, %v1851
        %v2052 = vsub.f32 0.0, %v1858
        %v2053 = vsub.f32 0.0, %v1865
        %v2054 = vsub.f32 0.0, %v1872
        %v2055 = vsub.f32 0.0, %v1879
        %v2056 = vmul.f32 %v2040, 1.442695
        %v2057 = vpow.pop %v2056
        %v2058 = vmul.f32 %v2041, 1.442695
        %v2059 = vpow.pop %v2058
        %v2060 = vmul.f32 %v2042, 1.442695
        %v2061 = vpow.pop %v2060
        %v2062 = vmul.f32 %v2043, 1.442695
        %v2063 = vpow.pop %v2062
        %v2064 = vmul.f32 %v2044, 1.442695
        %v2065 = vpow.pop %v2064
        %v2066 = vmul.f32 %v2045, 1.442695
        %v2067 = vpow.pop %v2066
        %v2068 = vmul.f32 %v2046, 1.442695
        %v2069 = vpow.pop %v2068
        %v2070 = vmul.f32 %v2047, 1.442695
        %v2071 = vpow.pop %v2070
        %v2072 = vmul.f32 %v2048, 1.442695
        %v2073 = vpow.pop %v2072
        %v2074 = vmul.f32 %v2049, 1.442695
        %v2075 = vpow.pop %v2074
        %v2076 = vmul.f32 %v2050, 1.442695
        %v2077 = vpow.pop %v2076
        %v2078 = vmul.f32 %v2051, 1.442695
        %v2079 = vpow.pop %v2078
        %v2080 = vmul.f32 %v2052, 1.442695
        %v2081 = vpow.pop %v2080
        %v2082 = vmul.f32 %v2053, 1.442695
        %v2083 = vpow.pop %v2082
        %v2084 = vmul.f32 %v2054, 1.442695
        %v2085 = vpow.pop %v2084
        %v2086 = vmul.f32 %v2055, 1.442695
        %v2087 = vpow.pop %v2086
        %v2088 = vadd.f32 %v2057, 1.0
        %v2089 = vadd.f32 %v2059, 1.0
        %v2090 = vadd.f32 %v2061, 1.0
        %v2091 = vadd.f32 %v2063, 1.0
        %v2092 = vadd.f32 %v2065, 1.0
        %v2093 = vadd.f32 %v2067, 1.0
        %v2094 = vadd.f32 %v2069, 1.0
        %v2095 = vadd.f32 %v2071, 1.0
        %v2096 = vadd.f32 %v2073, 1.0
        %v2097 = vadd.f32 %v2075, 1.0
        %v2098 = vadd.f32 %v2077, 1.0
        %v2099 = vadd.f32 %v2079, 1.0
        %v2100 = vadd.f32 %v2081, 1.0
        %v2101 = vadd.f32 %v2083, 1.0
        %v2102 = vadd.f32 %v2085, 1.0
        %v2103 = vadd.f32 %v2087, 1.0
        %v2104 = vadd.f32 %v726, %v913
        %v2105 = vadd.f32 %v727, %v914
        %v2106 = vadd.f32 %v728, %v915
        %v2107 = vadd.f32 %v729, %v916
        %v2108 = vadd.f32 %v730, %v917
        %v2109 = vadd.f32 %v731, %v918
        %v2110 = vadd.f32 %v732, %v919
        %v2111 = vadd.f32 %v733, %v920
        %v2112 = vadd.f32 %v734, %v921
        %v2113 = vadd.f32 %v735, %v922
        %v2114 = vadd.f32 %v736, %v923
        %v2115 = vadd.f32 %v737, %v924
        %v2116 = vadd.f32 %v738, %v925
        %v2117 = vadd.f32 %v739, %v926
        %v2118 = vadd.f32 %v740, %v927
        %v2119 = vadd.f32 %v741, %v928
        %v2120 = vmul.f32 %v2104, 0.5
        %v2121 = vmul.f32 %v2105, 0.5
        %v2122 = vmul.f32 %v2106, 0.5
        %v2123 = vmul.f32 %v2107, 0.5
        %v2124 = vmul.f32 %v2108, 0.5
        %v2125 = vmul.f32 %v2109, 0.5
        %v2126 = vmul.f32 %v2110, 0.5
        %v2127 = vmul.f32 %v2111, 0.5
        %v2128 = vmul.f32 %v2112, 0.5
        %v2129 = vmul.f32 %v2113, 0.5
        %v2130 = vmul.f32 %v2114, 0.5
        %v2131 = vmul.f32 %v2115, 0.5
        %v2132 = vmul.f32 %v2116, 0.5
        %v2133 = vmul.f32 %v2117, 0.5
        %v2134 = vmul.f32 %v2118, 0.5
        %v2135 = vmul.f32 %v2119, 0.5
        %v2136 = vadd.f32 %v858, %v1224
        %v2137 = vadd.f32 %v859, %v1225
        %v2138 = vadd.f32 %v860, %v1226
        %v2139 = vadd.f32 %v861, %v1227
        %v2140 = vadd.f32 %v862, %v1228
        %v2141 = vadd.f32 %v863, %v1229
        %v2142 = vadd.f32 %v864, %v1230
        %v2143 = vadd.f32 %v865, %v1231
        %v2144 = vadd.f32 %v866, %v1232
        %v2145 = vadd.f32 %v867, %v1233
        %v2146 = vadd.f32 %v868, %v1234
        %v2147 = vadd.f32 %v869, %v1235
        %v2148 = vadd.f32 %v870, %v1236
        %v2149 = vadd.f32 %v871, %v1237
        %v2150 = vadd.f32 %v872, %v1238
        %v2151 = vadd.f32 %v873, %v1239
        %v2152 = vmul.f32 %v2136, 0.5
        %v2153 = vmul.f32 %v2137, 0.5
        %v2154 = vmul.f32 %v2138, 0.5
        %v2155 = vmul.f32 %v2139, 0.5
        %v2156 = vmul.f32 %v2140, 0.5
        %v2157 = vmul.f32 %v2141, 0.5
        %v2158 = vmul.f32 %v2142, 0.5
        %v2159 = vmul.f32 %v2143, 0.5
        %v2160 = vmul.f32 %v2144, 0.5
        %v2161 = vmul.f32 %v2145, 0.5
        %v2162 = vmul.f32 %v2146, 0.5
        %v2163 = vmul.f32 %v2147, 0.5
        %v2164 = vmul.f32 %v2148, 0.5
        %v2165 = vmul.f32 %v2149, 0.5
        %v2166 = vmul.f32 %v2150, 0.5
        %v2167 = vmul.f32 %v2151, 0.5
        %v2168 = vadd.f32 %v1169, %v1352
        %v2169 = vadd.f32 %v1170, %v1353
        %v2170 = vadd.f32 %v1171, %v1354
        %v2171 = vadd.f32 %v1172, %v1355
        %v2172 = vadd.f32 %v1173, %v1356
        %v2173 = vadd.f32 %v1174, %v1357
        %v2174 = vadd.f32 %v1175, %v1358
        %v2175 = vadd.f32 %v1176, %v1359
        %v2176 = vadd.f32 %v1177, %v1360
        %v2177 = vadd.f32 %v1178, %v1361
        %v2178 = vadd.f32 %v1179, %v1362
        %v2179 = vadd.f32 %v1180, %v1363
        %v2180 = vadd.f32 %v1181, %v1364
        %v2181 = vadd.f32 %v1182, %v1365
        %v2182 = vadd.f32 %v1183, %v1366
        %v2183 = vadd.f32 %v1184, %v1367
        %v2184 = vmul.f32 %v2168, 0.5
        %v2185 = vmul.f32 %v2169, 0.5
        %v2186 = vmul.f32 %v2170, 0.5
        %v2187 = vmul.f32 %v2171, 0.5
        %v2188 = vmul.f32 %v2172, 0.5
        %v2189 = vmul.f32 %v2173, 0.5
        %v2190 = vmul.f32 %v2174, 0.5
        %v2191 = vmul.f32 %v2175, 0.5
        %v2192 = vmul.f32 %v2176, 0.5
        %v2193 = vmul.f32 %v2177, 0.5
        %v2194 = vmul.f32 %v2178, 0.5
        %v2195 = vmul.f32 %v2179, 0.5
        %v2196 = vmul.f32 %v2180, 0.5
        %v2197 = vmul.f32 %v2181, 0.5
        %v2198 = vmul.f32 %v2182, 0.5
        %v2199 = vmul.f32 %v2183, 0.5
        %v2200 = vadd.f32 %v588, %v1041
        %v2201 = vadd.f32 %v589, %v1042
        %v2202 = vadd.f32 %v590, %v1043
        %v2203 = vadd.f32 %v591, %v1044
        %v2204 = vadd.f32 %v592, %v1045
        %v2205 = vadd.f32 %v593, %v1046
        %v2206 = vadd.f32 %v594, %v1047
        %v2207 = vadd.f32 %v595, %v1048
        %v2208 = vadd.f32 %v596, %v1049
        %v2209 = vadd.f32 %v597, %v1050
        %v2210 = vadd.f32 %v598, %v1051
        %v2211 = vadd.f32 %v599, %v1052
        %v2212 = vadd.f32 %v600, %v1053
        %v2213 = vadd.f32 %v601, %v1054
        %v2214 = vadd.f32 %v602, %v1055
        %v2215 = vadd.f32 %v603, %v1056
        %v2216 = vadd.f32 %v2200, %v1480
        %v2217 = vadd.f32 %v2201, %v1481
        %v2218 = vadd.f32 %v2202, %v1482
        %v2219 = vadd.f32 %v2203, %v1483
        %v2220 = vadd.f32 %v2204, %v1484
        %v2221 = vadd.f32 %v2205, %v1485
        %v2222 = vadd.f32 %v2206, %v1486
        %v2223 = vadd.f32 %v2207, %v1487
        %v2224 = vadd.f32 %v2208, %v1488
        %v2225 = vadd.f32 %v2209, %v1489
        %v2226 = vadd.f32 %v2210, %v1490
        %v2227 = vadd.f32 %v2211, %v1491
        %v2228 = vadd.f32 %v2212, %v1492
        %v2229 = vadd.f32 %v2213, %v1493
        %v2230 = vadd.f32 %v2214, %v1494
        %v2231 = vadd.f32 %v2215, %v1495
        %v2232 = vmul.f32 %v1928, 0.5
        %v2233 = vmul.f32 %v1929, 0.5
        %v2234 = vmul.f32 %v1930, 0.5
        %v2235 = vmul.f32 %v1931, 0.5
        %v2236 = vmul.f32 %v1932, 0.5
        %v2237 = vmul.f32 %v1933, 0.5
        %v2238 = vmul.f32 %v1934, 0.5
        %v2239 = vmul.f32 %v1935, 0.5
        %v2240 = vmul.f32 %v1936, 0.5
        %v2241 = vmul.f32 %v1937, 0.5
        %v2242 = vmul.f32 %v1938, 0.5
        %v2243 = vmul.f32 %v1939, 0.5
        %v2244 = vmul.f32 %v1940, 0.5
        %v2245 = vmul.f32 %v1941, 0.5
        %v2246 = vmul.f32 %v1942, 0.5
        %v2247 = vmul.f32 %v1943, 0.5
        %v2248 = vmul.f32 %v2216, %v2216
        %v2249 = vmul.f32 %v2217, %v2217
        %v2250 = vmul.f32 %v2218, %v2218
        %v2251 = vmul.f32 %v2219, %v2219
        %v2252 = vmul.f32 %v2220, %v2220
        %v2253 = vmul.f32 %v2221, %v2221
        %v2254 = vmul.f32 %v2222, %v2222
        %v2255 = vmul.f32 %v2223, %v2223
        %v2256 = vmul.f32 %v2224, %v2224
        %v2257 = vmul.f32 %v2225, %v2225
        %v2258 = vmul.f32 %v2226, %v2226
        %v2259 = vmul.f32 %v2227, %v2227
        %v2260 = vmul.f32 %v2228, %v2228
        %v2261 = vmul.f32 %v2229, %v2229
        %v2262 = vmul.f32 %v2230, %v2230
        %v2263 = vmul.f32 %v2231, %v2231
        %v2264 = vmul.f32 %v2232, %v2248
        %v2265 = vmul.f32 %v2233, %v2249
        %v2266 = vmul.f32 %v2234, %v2250
        %v2267 = vmul.f32 %v2235, %v2251
        %v2268 = vmul.f32 %v2236, %v2252
        %v2269 = vmul.f32 %v2237, %v2253
        %v2270 = vmul.f32 %v2238, %v2254
        %v2271 = vmul.f32 %v2239, %v2255
        %v2272 = vmul.f32 %v2240, %v2256
        %v2273 = vmul.f32 %v2241, %v2257
        %v2274 = vmul.f32 %v2242, %v2258
        %v2275 = vmul.f32 %v2243, %v2259
        %v2276 = vmul.f32 %v2244, %v2260
        %v2277 = vmul.f32 %v2245, %v2261
        %v2278 = vmul.f32 %v2246, %v2262
        %v2279 = vmul.f32 %v2247, %v2263
        %v2280 = vmul.f32 %v2120, %v2120
        %v2281 = vmul.f32 %v2121, %v2121
        %v2282 = vmul.f32 %v2122, %v2122
        %v2283 = vmul.f32 %v2123, %v2123
        %v2284 = vmul.f32 %v2124, %v2124
        %v2285 = vmul.f32 %v2125, %v2125
        %v2286 = vmul.f32 %v2126, %v2126
        %v2287 = vmul.f32 %v2127, %v2127
        %v2288 = vmul.f32 %v2128, %v2128
        %v2289 = vmul.f32 %v2129, %v2129
        %v2290 = vmul.f32 %v2130, %v2130
        %v2291 = vmul.f32 %v2131, %v2131
        %v2292 = vmul.f32 %v2132, %v2132
        %v2293 = vmul.f32 %v2133, %v2133
        %v2294 = vmul.f32 %v2134, %v2134
        %v2295 = vmul.f32 %v2135, %v2135
        %v2296 = vmul.f32 %v2152, %v2152
        %v2297 = vmul.f32 %v2153, %v2153
        %v2298 = vmul.f32 %v2154, %v2154
        %v2299 = vmul.f32 %v2155, %v2155
        %v2300 = vmul.f32 %v2156, %v2156
        %v2301 = vmul.f32 %v2157, %v2157
        %v2302 = vmul.f32 %v2158, %v2158
        %v2303 = vmul.f32 %v2159, %v2159
        %v2304 = vmul.f32 %v2160, %v2160
        %v2305 = vmul.f32 %v2161, %v2161
        %v2306 = vmul.f32 %v2162, %v2162
        %v2307 = vmul.f32 %v2163, %v2163
        %v2308 = vmul.f32 %v2164, %v2164
        %v2309 = vmul.f32 %v2165, %v2165
        %v2310 = vmul.f32 %v2166, %v2166
        %v2311 = vmul.f32 %v2167, %v2167
        %v2312 = vadd.f32 %v2280, %v2296
        %v2313 = vadd.f32 %v2281, %v2297
        %v2314 = vadd.f32 %v2282, %v2298
        %v2315 = vadd.f32 %v2283, %v2299
        %v2316 = vadd.f32 %v2284, %v2300
        %v2317 = vadd.f32 %v2285, %v2301
        %v2318 = vadd.f32 %v2286, %v2302
        %v2319 = vadd.f32 %v2287, %v2303
        %v2320 = vadd.f32 %v2288, %v2304
        %v2321 = vadd.f32 %v2289, %v2305
        %v2322 = vadd.f32 %v2290, %v2306
        %v2323 = vadd.f32 %v2291, %v2307
        %v2324 = vadd.f32 %v2292, %v2308
        %v2325 = vadd.f32 %v2293, %v2309
        %v2326 = vadd.f32 %v2294, %v2310
        %v2327 = vadd.f32 %v2295, %v2311
        %v2328 = vmul.f32 %v2184, %v2184
        %v2329 = vmul.f32 %v2185, %v2185
        %v2330 = vmul.f32 %v2186, %v2186
        %v2331 = vmul.f32 %v2187, %v2187
        %v2332 = vmul.f32 %v2188, %v2188
        %v2333 = vmul.f32 %v2189, %v2189
        %v2334 = vmul.f32 %v2190, %v2190
        %v2335 = vmul.f32 %v2191, %v2191
        %v2336 = vmul.f32 %v2192, %v2192
        %v2337 = vmul.f32 %v2193, %v2193
        %v2338 = vmul.f32 %v2194, %v2194
        %v2339 = vmul.f32 %v2195, %v2195
        %v2340 = vmul.f32 %v2196, %v2196
        %v2341 = vmul.f32 %v2197, %v2197
        %v2342 = vmul.f32 %v2198, %v2198
        %v2343 = vmul.f32 %v2199, %v2199
        %v2344 = vadd.f32 %v2312, %v2328
        %v2345 = vadd.f32 %v2313, %v2329
        %v2346 = vadd.f32 %v2314, %v2330
        %v2347 = vadd.f32 %v2315, %v2331
        %v2348 = vadd.f32 %v2316, %v2332
        %v2349 = vadd.f32 %v2317, %v2333
        %v2350 = vadd.f32 %v2318, %v2334
        %v2351 = vadd.f32 %v2319, %v2335
        %v2352 = vadd.f32 %v2320, %v2336
        %v2353 = vadd.f32 %v2321, %v2337
        %v2354 = vadd.f32 %v2322, %v2338
        %v2355 = vadd.f32 %v2323, %v2339
        %v2356 = vadd.f32 %v2324, %v2340
        %v2357 = vadd.f32 %v2325, %v2341
        %v2358 = vadd.f32 %v2326, %v2342
        %v2359 = vadd.f32 %v2327, %v2343
        %v2360 = vmul.f32 %v2344, 2.0
        %v2361 = vmul.f32 %v2345, 2.0
        %v2362 = vmul.f32 %v2346, 2.0
        %v2363 = vmul.f32 %v2347, 2.0
        %v2364 = vmul.f32 %v2348, 2.0
        %v2365 = vmul.f32 %v2349, 2.0
        %v2366 = vmul.f32 %v2350, 2.0
        %v2367 = vmul.f32 %v2351, 2.0
        %v2368 = vmul.f32 %v2352, 2.0
        %v2369 = vmul.f32 %v2353, 2.0
        %v2370 = vmul.f32 %v2354, 2.0
        %v2371 = vmul.f32 %v2355, 2.0
        %v2372 = vmul.f32 %v2356, 2.0
        %v2373 = vmul.f32 %v2357, 2.0
        %v2374 = vmul.f32 %v2358, 2.0
        %v2375 = vmul.f32 %v2359, 2.0
        %v2376 = vadd.f32 %v1560, %v2360
        %v2377 = vadd.f32 %v1561, %v2361
        %v2378 = vadd.f32 %v1562, %v2362
        %v2379 = vadd.f32 %v1563, %v2363
        %v2380 = vadd.f32 %v1564, %v2364
        %v2381 = vadd.f32 %v1565, %v2365
        %v2382 = vadd.f32 %v1566, %v2366
        %v2383 = vadd.f32 %v1567, %v2367
        %v2384 = vadd.f32 %v1568, %v2368
        %v2385 = vadd.f32 %v1569, %v2369
        %v2386 = vadd.f32 %v1570, %v2370
        %v2387 = vadd.f32 %v1571, %v2371
        %v2388 = vadd.f32 %v1572, %v2372
        %v2389 = vadd.f32 %v1573, %v2373
        %v2390 = vadd.f32 %v1574, %v2374
        %v2391 = vadd.f32 %v1575, %v2375
        %v2392 = vmul.f32 %v2024, %v2376
        %v2393 = vmul.f32 %v2025, %v2377
        %v2394 = vmul.f32 %v2026, %v2378
        %v2395 = vmul.f32 %v2027, %v2379
        %v2396 = vmul.f32 %v2028, %v2380
        %v2397 = vmul.f32 %v2029, %v2381
        %v2398 = vmul.f32 %v2030, %v2382
        %v2399 = vmul.f32 %v2031, %v2383
        %v2400 = vmul.f32 %v2032, %v2384
        %v2401 = vmul.f32 %v2033, %v2385
        %v2402 = vmul.f32 %v2034, %v2386
        %v2403 = vmul.f32 %v2035, %v2387
        %v2404 = vmul.f32 %v2036, %v2388
        %v2405 = vmul.f32 %v2037, %v2389
        %v2406 = vmul.f32 %v2038, %v2390
        %v2407 = vmul.f32 %v2039, %v2391
        %v2408 = vadd.f32 %v2264, %v2392
        %v2409 = vadd.f32 %v2265, %v2393
        %v2410 = vadd.f32 %v2266, %v2394
        %v2411 = vadd.f32 %v2267, %v2395
        %v2412 = vadd.f32 %v2268, %v2396
        %v2413 = vadd.f32 %v2269, %v2397
        %v2414 = vadd.f32 %v2270, %v2398
        %v2415 = vadd.f32 %v2271, %v2399
        %v2416 = vadd.f32 %v2272, %v2400
        %v2417 = vadd.f32 %v2273, %v2401
        %v2418 = vadd.f32 %v2274, %v2402
        %v2419 = vadd.f32 %v2275, %v2403
        %v2420 = vadd.f32 %v2276, %v2404
        %v2421 = vadd.f32 %v2277, %v2405
        %v2422 = vadd.f32 %v2278, %v2406
        %v2423 = vadd.f32 %v2279, %v2407
        %v2424 = vmul.f32 %v2088, %v2408
        %v2425 = vmul.f32 %v2089, %v2409
        %v2426 = vmul.f32 %v2090, %v2410
        %v2427 = vmul.f32 %v2091, %v2411
        %v2428 = vmul.f32 %v2092, %v2412
        %v2429 = vmul.f32 %v2093, %v2413
        %v2430 = vmul.f32 %v2094, %v2414
        %v2431 = vmul.f32 %v2095, %v2415
        %v2432 = vmul.f32 %v2096, %v2416
        %v2433 = vmul.f32 %v2097, %v2417
        %v2434 = vmul.f32 %v2098, %v2418
        %v2435 = vmul.f32 %v2099, %v2419
        %v2436 = vmul.f32 %v2100, %v2420
        %v2437 = vmul.f32 %v2101, %v2421
        %v2438 = vmul.f32 %v2102, %v2422
        %v2439 = vmul.f32 %v2103, %v2423
        %v2440 = vmul.f32 %v1041, %v1480
        %v2441 = vmul.f32 %v1042, %v1481
        %v2442 = vmul.f32 %v1043, %v1482
        %v2443 = vmul.f32 %v1044, %v1483
        %v2444 = vmul.f32 %v1045, %v1484
        %v2445 = vmul.f32 %v1046, %v1485
        %v2446 = vmul.f32 %v1047, %v1486
        %v2447 = vmul.f32 %v1048, %v1487
        %v2448 = vmul.f32 %v1049, %v1488
        %v2449 = vmul.f32 %v1050, %v1489
        %v2450 = vmul.f32 %v1051, %v1490
        %v2451 = vmul.f32 %v1052, %v1491
        %v2452 = vmul.f32 %v1053, %v1492
        %v2453 = vmul.f32 %v1054, %v1493
        %v2454 = vmul.f32 %v1055, %v1494
        %v2455 = vmul.f32 %v1056, %v1495
        %v2456 = vmul.f32 %v1169, %v1352
        %v2457 = vmul.f32 %v1170, %v1353
        %v2458 = vmul.f32 %v1171, %v1354
        %v2459 = vmul.f32 %v1172, %v1355
        %v2460 = vmul.f32 %v1173, %v1356
        %v2461 = vmul.f32 %v1174, %v1357
        %v2462 = vmul.f32 %v1175, %v1358
        %v2463 = vmul.f32 %v1176, %v1359
        %v2464 = vmul.f32 %v1177, %v1360
        %v2465 = vmul.f32 %v1178, %v1361
        %v2466 = vmul.f32 %v1179, %v1362
        %v2467 = vmul.f32 %v1180, %v1363
        %v2468 = vmul.f32 %v1181, %v1364
        %v2469 = vmul.f32 %v1182, %v1365
        %v2470 = vmul.f32 %v1183, %v1366
        %v2471 = vmul.f32 %v1184, %v1367
        %v2472 = vsub.f32 %v2440, %v2456
        %v2473 = vsub.f32 %v2441, %v2457
        %v2474 = vsub.f32 %v2442, %v2458
        %v2475 = vsub.f32 %v2443, %v2459
        %v2476 = vsub.f32 %v2444, %v2460
        %v2477 = vsub.f32 %v2445, %v2461
        %v2478 = vsub.f32 %v2446, %v2462
        %v2479 = vsub.f32 %v2447, %v2463
        %v2480 = vsub.f32 %v2448, %v2464
        %v2481 = vsub.f32 %v2449, %v2465
        %v2482 = vsub.f32 %v2450, %v2466
        %v2483 = vsub.f32 %v2451, %v2467
        %v2484 = vsub.f32 %v2452, %v2468
        %v2485 = vsub.f32 %v2453, %v2469
        %v2486 = vsub.f32 %v2454, %v2470
        %v2487 = vsub.f32 %v2455, %v2471
        %v2488 = vmul.f32 %v588, %v2472
        %v2489 = vmul.f32 %v589, %v2473
        %v2490 = vmul.f32 %v590, %v2474
        %v2491 = vmul.f32 %v591, %v2475
        %v2492 = vmul.f32 %v592, %v2476
        %v2493 = vmul.f32 %v593, %v2477
        %v2494 = vmul.f32 %v594, %v2478
        %v2495 = vmul.f32 %v595, %v2479
        %v2496 = vmul.f32 %v596, %v2480
        %v2497 = vmul.f32 %v597, %v2481
        %v2498 = vmul.f32 %v598, %v2482
        %v2499 = vmul.f32 %v599, %v2483
        %v2500 = vmul.f32 %v600, %v2484
        %v2501 = vmul.f32 %v601, %v2485
        %v2502 = vmul.f32 %v602, %v2486
        %v2503 = vmul.f32 %v603, %v2487
        %v2504 = vmul.f32 %v913, %v1480
        %v2505 = vmul.f32 %v914, %v1481
        %v2506 = vmul.f32 %v915, %v1482
        %v2507 = vmul.f32 %v916, %v1483
        %v2508 = vmul.f32 %v917, %v1484
        %v2509 = vmul.f32 %v918, %v1485
        %v2510 = vmul.f32 %v919, %v1486
        %v2511 = vmul.f32 %v920, %v1487
        %v2512 = vmul.f32 %v921, %v1488
        %v2513 = vmul.f32 %v922, %v1489
        %v2514 = vmul.f32 %v923, %v1490
        %v2515 = vmul.f32 %v924, %v1491
        %v2516 = vmul.f32 %v925, %v1492
        %v2517 = vmul.f32 %v926, %v1493
        %v2518 = vmul.f32 %v927, %v1494
        %v2519 = vmul.f32 %v928, %v1495
        %v2520 = vmul.f32 %v1169, %v1224
        %v2521 = vmul.f32 %v1170, %v1225
        %v2522 = vmul.f32 %v1171, %v1226
        %v2523 = vmul.f32 %v1172, %v1227
        %v2524 = vmul.f32 %v1173, %v1228
        %v2525 = vmul.f32 %v1174, %v1229
        %v2526 = vmul.f32 %v1175, %v1230
        %v2527 = vmul.f32 %v1176, %v1231
        %v2528 = vmul.f32 %v1177, %v1232
        %v2529 = vmul.f32 %v1178, %v1233
        %v2530 = vmul.f32 %v1179, %v1234
        %v2531 = vmul.f32 %v1180, %v1235
        %v2532 = vmul.f32 %v1181, %v1236
        %v2533 = vmul.f32 %v1182, %v1237
        %v2534 = vmul.f32 %v1183, %v1238
        %v2535 = vmul.f32 %v1184, %v1239
        %v2536 = vsub.f32 %v2504, %v2520
        %v2537 = vsub.f32 %v2505, %v2521
        %v2538 = vsub.f32 %v2506, %v2522
        %v2539 = vsub.f32 %v2507, %v2523
        %v2540 = vsub.f32 %v2508, %v2524
        %v2541 = vsub.f32 %v2509, %v2525
        %v2542 = vsub.f32 %v2510, %v2526
        %v2543 = vsub.f32 %v2511, %v2527
        %v2544 = vsub.f32 %v2512, %v2528
        %v2545 = vsub.f32 %v2513, %v2529
        %v2546 = vsub.f32 %v2514, %v2530
        %v2547 = vsub.f32 %v2515, %v2531
        %v2548 = vsub.f32 %v2516, %v2532
        %v2549 = vsub.f32 %v2517, %v2533
        %v2550 = vsub.f32 %v2518, %v2534
        %v2551 = vsub.f32 %v2519, %v2535
        %v2552 = vmul.f32 %v726, %v2536
        %v2553 = vmul.f32 %v727, %v2537
        %v2554 = vmul.f32 %v728, %v2538
        %v2555 = vmul.f32 %v729, %v2539
        %v2556 = vmul.f32 %v730, %v2540
        %v2557 = vmul.f32 %v731, %v2541
        %v2558 = vmul.f32 %v732, %v2542
        %v2559 = vmul.f32 %v733, %v2543
        %v2560 = vmul.f32 %v734, %v2544
        %v2561 = vmul.f32 %v735, %v2545
        %v2562 = vmul.f32 %v736, %v2546
        %v2563 = vmul.f32 %v737, %v2547
        %v2564 = vmul.f32 %v738, %v2548
        %v2565 = vmul.f32 %v739, %v2549
        %v2566 = vmul.f32 %v740, %v2550
        %v2567 = vmul.f32 %v741, %v2551
        %v2568 = vsub.f32 %v2488, %v2552
        %v2569 = vsub.f32 %v2489, %v2553
        %v2570 = vsub.f32 %v2490, %v2554
        %v2571 = vsub.f32 %v2491, %v2555
        %v2572 = vsub.f32 %v2492, %v2556
        %v2573 = vsub.f32 %v2493, %v2557
        %v2574 = vsub.f32 %v2494, %v2558
        %v2575 = vsub.f32 %v2495, %v2559
        %v2576 = vsub.f32 %v2496, %v2560
        %v2577 = vsub.f32 %v2497, %v2561
        %v2578 = vsub.f32 %v2498, %v2562
        %v2579 = vsub.f32 %v2499, %v2563
        %v2580 = vsub.f32 %v2500, %v2564
        %v2581 = vsub.f32 %v2501, %v2565
        %v2582 = vsub.f32 %v2502, %v2566
        %v2583 = vsub.f32 %v2503, %v2567
        %v2584 = vmul.f32 %v913, %v1352
        %v2585 = vmul.f32 %v914, %v1353
        %v2586 = vmul.f32 %v915, %v1354
        %v2587 = vmul.f32 %v916, %v1355
        %v2588 = vmul.f32 %v917, %v1356
        %v2589 = vmul.f32 %v918, %v1357
        %v2590 = vmul.f32 %v919, %v1358
        %v2591 = vmul.f32 %v920, %v1359
        %v2592 = vmul.f32 %v921, %v1360
        %v2593 = vmul.f32 %v922, %v1361
        %v2594 = vmul.f32 %v923, %v1362
        %v2595 = vmul.f32 %v924, %v1363
        %v2596 = vmul.f32 %v925, %v1364
        %v2597 = vmul.f32 %v926, %v1365
        %v2598 = vmul.f32 %v927, %v1366
        %v2599 = vmul.f32 %v928, %v1367
        %v2600 = vmul.f32 %v1041, %v1224
        %v2601 = vmul.f32 %v1042, %v1225
        %v2602 = vmul.f32 %v1043, %v1226
        %v2603 = vmul.f32 %v1044, %v1227
        %v2604 = vmul.f32 %v1045, %v1228
        %v2605 = vmul.f32 %v1046, %v1229
        %v2606 = vmul.f32 %v1047, %v1230
        %v2607 = vmul.f32 %v1048, %v1231
        %v2608 = vmul.f32 %v1049, %v1232
        %v2609 = vmul.f32 %v1050, %v1233
        %v2610 = vmul.f32 %v1051, %v1234
        %v2611 = vmul.f32 %v1052, %v1235
        %v2612 = vmul.f32 %v1053, %v1236
        %v2613 = vmul.f32 %v1054, %v1237
        %v2614 = vmul.f32 %v1055, %v1238
        %v2615 = vmul.f32 %v1056, %v1239
        %v2616 = vsub.f32 %v2584, %v2600
        %v2617 = vsub.f32 %v2585, %v2601
        %v2618 = vsub.f32 %v2586, %v2602
        %v2619 = vsub.f32 %v2587, %v2603
        %v2620 = vsub.f32 %v2588, %v2604
        %v2621 = vsub.f32 %v2589, %v2605
        %v2622 = vsub.f32 %v2590, %v2606
        %v2623 = vsub.f32 %v2591, %v2607
        %v2624 = vsub.f32 %v2592, %v2608
        %v2625 = vsub.f32 %v2593, %v2609
        %v2626 = vsub.f32 %v2594, %v2610
        %v2627 = vsub.f32 %v2595, %v2611
        %v2628 = vsub.f32 %v2596, %v2612
        %v2629 = vsub.f32 %v2597, %v2613
        %v2630 = vsub.f32 %v2598, %v2614
        %v2631 = vsub.f32 %v2599, %v2615
        %v2632 = vmul.f32 %v858, %v2616
        %v2633 = vmul.f32 %v859, %v2617
        %v2634 = vmul.f32 %v860, %v2618
        %v2635 = vmul.f32 %v861, %v2619
        %v2636 = vmul.f32 %v862, %v2620
        %v2637 = vmul.f32 %v863, %v2621
        %v2638 = vmul.f32 %v864, %v2622
        %v2639 = vmul.f32 %v865, %v2623
        %v2640 = vmul.f32 %v866, %v2624
        %v2641 = vmul.f32 %v867, %v2625
        %v2642 = vmul.f32 %v868, %v2626
        %v2643 = vmul.f32 %v869, %v2627
        %v2644 = vmul.f32 %v870, %v2628
        %v2645 = vmul.f32 %v871, %v2629
        %v2646 = vmul.f32 %v872, %v2630
        %v2647 = vmul.f32 %v873, %v2631
        %v2648 = vadd.f32 %v2568, %v2632
        %v2649 = vadd.f32 %v2569, %v2633
        %v2650 = vadd.f32 %v2570, %v2634
        %v2651 = vadd.f32 %v2571, %v2635
        %v2652 = vadd.f32 %v2572, %v2636
        %v2653 = vadd.f32 %v2573, %v2637
        %v2654 = vadd.f32 %v2574, %v2638
        %v2655 = vadd.f32 %v2575, %v2639
        %v2656 = vadd.f32 %v2576, %v2640
        %v2657 = vadd.f32 %v2577, %v2641
        %v2658 = vadd.f32 %v2578, %v2642
        %v2659 = vadd.f32 %v2579, %v2643
        %v2660 = vadd.f32 %v2580, %v2644
        %v2661 = vadd.f32 %v2581, %v2645
        %v2662 = vadd.f32 %v2582, %v2646
        %v2663 = vadd.f32 %v2583, %v2647
        %v2664 = vsub.f32 0.0, %v2648
        %v2665 = vsub.f32 0.0, %v2649
        %v2666 = vsub.f32 0.0, %v2650
        %v2667 = vsub.f32 0.0, %v2651
        %v2668 = vsub.f32 0.0, %v2652
        %v2669 = vsub.f32 0.0, %v2653
        %v2670 = vsub.f32 0.0, %v2654
        %v2671 = vsub.f32 0.0, %v2655
        %v2672 = vsub.f32 0.0, %v2656
        %v2673 = vsub.f32 0.0, %v2657
        %v2674 = vsub.f32 0.0, %v2658
        %v2675 = vsub.f32 0.0, %v2659
        %v2676 = vsub.f32 0.0, %v2660
        %v2677 = vsub.f32 0.0, %v2661
        %v2678 = vsub.f32 0.0, %v2662
        %v2679 = vsub.f32 0.0, %v2663
        %v2680 = vmax.f32 %v2664, 0.0
        %v2681 = vmax.f32 %v2665, 0.0
        %v2682 = vmax.f32 %v2666, 0.0
        %v2683 = vmax.f32 %v2667, 0.0
        %v2684 = vmax.f32 %v2668, 0.0
        %v2685 = vmax.f32 %v2669, 0.0
        %v2686 = vmax.f32 %v2670, 0.0
        %v2687 = vmax.f32 %v2671, 0.0
        %v2688 = vmax.f32 %v2672, 0.0
        %v2689 = vmax.f32 %v2673, 0.0
        %v2690 = vmax.f32 %v2674, 0.0
        %v2691 = vmax.f32 %v2675, 0.0
        %v2692 = vmax.f32 %v2676, 0.0
        %v2693 = vmax.f32 %v2677, 0.0
        %v2694 = vmax.f32 %v2678, 0.0
        %v2695 = vmax.f32 %v2679, 0.0
        %2696 = vst [vmem:[%s460] sm:$0xff] %v1928
        %2697 = vst [vmem:[%s460 + $0x8] sm:$0xff] %v1929
        %2698 = vst [vmem:[%s460 + $0x10] sm:$0xff] %v1930
        %2699 = vst [vmem:[%s460 + $0x18] sm:$0xff] %v1931
        %2700 = vst [vmem:[%s460 + $0x20] sm:$0xff] %v1932
        %2701 = vst [vmem:[%s460 + $0x28] sm:$0xff] %v1933
        %2702 = vst [vmem:[%s460 + $0x30] sm:$0xff] %v1934
        %2703 = vst [vmem:[%s460 + $0x38] sm:$0xff] %v1935
        %2704 = vst [vmem:[%s460 + $0x40] sm:$0xff] %v1936
        %2705 = vst [vmem:[%s460 + $0x48] sm:$0xff] %v1937
        %2706 = vst [vmem:[%s460 + $0x50] sm:$0xff] %v1938
        %2707 = vst [vmem:[%s460 + $0x58] sm:$0xff] %v1939
        %2708 = vst [vmem:[%s460 + $0x60] sm:$0xff] %v1940
        %2709 = vst [vmem:[%s460 + $0x68] sm:$0xff] %v1941
        %2710 = vst [vmem:[%s460 + $0x70] sm:$0xff] %v1942
        %2711 = vst [vmem:[%s460 + $0x78] sm:$0xff] %v1943
        %2712 = vst [vmem:[%s467] sm:$0xff] %v2024
        %2713 = vst [vmem:[%s467 + $0x8] sm:$0xff] %v2025
        %2714 = vst [vmem:[%s467 + $0x10] sm:$0xff] %v2026
        %2715 = vst [vmem:[%s467 + $0x18] sm:$0xff] %v2027
        %2716 = vst [vmem:[%s467 + $0x20] sm:$0xff] %v2028
        %2717 = vst [vmem:[%s467 + $0x28] sm:$0xff] %v2029
        %2718 = vst [vmem:[%s467 + $0x30] sm:$0xff] %v2030
        %2719 = vst [vmem:[%s467 + $0x38] sm:$0xff] %v2031
        %2720 = vst [vmem:[%s467 + $0x40] sm:$0xff] %v2032
        %2721 = vst [vmem:[%s467 + $0x48] sm:$0xff] %v2033
        %2722 = vst [vmem:[%s467 + $0x50] sm:$0xff] %v2034
        %2723 = vst [vmem:[%s467 + $0x58] sm:$0xff] %v2035
        %2724 = vst [vmem:[%s467 + $0x60] sm:$0xff] %v2036
        %2725 = vst [vmem:[%s467 + $0x68] sm:$0xff] %v2037
        %2726 = vst [vmem:[%s467 + $0x70] sm:$0xff] %v2038
        %2727 = vst [vmem:[%s467 + $0x78] sm:$0xff] %v2039
        %2728 = vst [vmem:[%s474] sm:$0xff] %v2088
        %2729 = vst [vmem:[%s474 + $0x8] sm:$0xff] %v2089
        %2730 = vst [vmem:[%s474 + $0x10] sm:$0xff] %v2090
        %2731 = vst [vmem:[%s474 + $0x18] sm:$0xff] %v2091
        %2732 = vst [vmem:[%s474 + $0x20] sm:$0xff] %v2092
        %2733 = vst [vmem:[%s474 + $0x28] sm:$0xff] %v2093
        %2734 = vst [vmem:[%s474 + $0x30] sm:$0xff] %v2094
        %2735 = vst [vmem:[%s474 + $0x38] sm:$0xff] %v2095
        %2736 = vst [vmem:[%s474 + $0x40] sm:$0xff] %v2096
        %2737 = vst [vmem:[%s474 + $0x48] sm:$0xff] %v2097
        %2738 = vst [vmem:[%s474 + $0x50] sm:$0xff] %v2098
        %2739 = vst [vmem:[%s474 + $0x58] sm:$0xff] %v2099
        %2740 = vst [vmem:[%s474 + $0x60] sm:$0xff] %v2100
        %2741 = vst [vmem:[%s474 + $0x68] sm:$0xff] %v2101
        %2742 = vst [vmem:[%s474 + $0x70] sm:$0xff] %v2102
        %2743 = vst [vmem:[%s474 + $0x78] sm:$0xff] %v2103
        %v2744 = vadd.f32 %v2424, %v2425
        %v2745 = vadd.f32 %v2744, %v2426
        %v2746 = vadd.f32 %v2745, %v2427
        %v2747 = vadd.f32 %v2746, %v2428
        %v2748 = vadd.f32 %v2747, %v2429
        %v2749 = vadd.f32 %v2748, %v2430
        %v2750 = vadd.f32 %v2749, %v2431
        %v2751 = vadd.f32 %v2750, %v2432
        %v2752 = vadd.f32 %v2751, %v2433
        %v2753 = vadd.f32 %v2752, %v2434
        %v2754 = vadd.f32 %v2753, %v2435
        %v2755 = vadd.f32 %v2754, %v2436
        %v2756 = vadd.f32 %v2755, %v2437
        %v2757 = vadd.f32 %v2756, %v2438
        %v2758 = vadd.f32 %v2757, %v2439
        %2759 = vadd.xlane.f32.xlu0 %v2758
        %v2760 = vpop.xlane.xlu0 %2759
        %v2761 = vrot.slane %v2760, 4
        %v2762 = vadd.f32 %v2760, %v2761
        %v2763 = vrot.slane %v2762, 2
        %v2764 = vadd.f32 %v2762, %v2763
        %v2765 = vrot.slane %v2764, 1
        %v2766 = vadd.f32 %v2764, %v2765
        %s2767 = vtos %v2766
        %s2768 = scalar_lea.smem %s481, 0 [#allocation13]
        %2769 = sst [smem:[%s2768]] %s2767
        %v2770 = vmul.f32 %v2680, %v2680
        %v2771 = vmul.f32 %v2681, %v2681
        %v2772 = vmul.f32 %v2682, %v2682
        %v2773 = vmul.f32 %v2683, %v2683
        %v2774 = vmul.f32 %v2684, %v2684
        %v2775 = vmul.f32 %v2685, %v2685
        %v2776 = vmul.f32 %v2686, %v2686
        %v2777 = vmul.f32 %v2687, %v2687
        %v2778 = vmul.f32 %v2688, %v2688
        %v2779 = vmul.f32 %v2689, %v2689
        %v2780 = vmul.f32 %v2690, %v2690
        %v2781 = vmul.f32 %v2691, %v2691
        %v2782 = vmul.f32 %v2692, %v2692
        %v2783 = vmul.f32 %v2693, %v2693
        %v2784 = vmul.f32 %v2694, %v2694
        %v2785 = vmul.f32 %v2695, %v2695
        %v2786 = vadd.f32 %v2770, %v2771
        %v2787 = vadd.f32 %v2786, %v2772
        %v2788 = vadd.f32 %v2787, %v2773
        %v2789 = vadd.f32 %v2788, %v2774
        %v2790 = vadd.f32 %v2789, %v2775
        %v2791 = vadd.f32 %v2790, %v2776
        %v2792 = vadd.f32 %v2791, %v2777
        %v2793 = vadd.f32 %v2792, %v2778
        %v2794 = vadd.f32 %v2793, %v2779
        %v2795 = vadd.f32 %v2794, %v2780
        %v2796 = vadd.f32 %v2795, %v2781
        %v2797 = vadd.f32 %v2796, %v2782
        %v2798 = vadd.f32 %v2797, %v2783
        %v2799 = vadd.f32 %v2798, %v2784
        %v2800 = vadd.f32 %v2799, %v2785
        %2801 = vadd.xlane.f32.xlu0 %v2800
        %v2802 = vpop.xlane.xlu0 %2801
        %v2803 = vrot.slane %v2802, 4
        %v2804 = vadd.f32 %v2802, %v2803
        %v2805 = vrot.slane %v2804, 2
        %v2806 = vadd.f32 %v2804, %v2805
        %v2807 = vrot.slane %v2806, 1
        %v2808 = vadd.f32 %v2806, %v2807
        %s2809 = vtos %v2808
        %s2810 = scalar_lea.smem %s481, 1 [#allocation13]
        %2811 = sst [smem:[%s2810]] %s2809
        %s2812 = sand.u32 %s155, 1
        %s2813 = scalar_lea.sflag [#allocation4], %s2812
        %s2814 = sand.u32 %s155, 1
        %s2815 = smul.addr %s2814, 128
        %s2816 = scalar_lea.vmem [#allocation9], %s2815
        %s2817 = sand.u32 %s33, 1
        %s2818 = scalar_lea.sflag [#allocation11], %s2817
        %s2819 = sand.u32 %s183, 1
        %s2820 = smul.addr %s2819, 128
        %s2821 = scalar_lea.vmem [#allocation10], %s2820
        %s2822 = sand.u32 %s33, 1
        %s2823 = scalar_lea.sflag [#allocation11], %s2822
        %s2824 = sand.u32 %s211, 1
        %s2825 = smul.addr %s2824, 128
        %s2826 = scalar_lea.vmem [#allocation12], %s2825
        %s2827 = sand.u32 %s239, 1
        %s2828 = scalar_lea.sflag [#allocation5], %s2827
        %s2829 = sand.u32 %s239, 1
        %s2830 = smul.addr %s2829, 128
        %s2831 = scalar_lea.smem [#allocation13], %s2830
        // Predicated region
        $region45: #{tpu_custom_call.1} parent=31 // pred_check
          %p2832 = pneg %p165
        $region46: #{tpu_custom_call.1} parent=31 // pred_check_branch
          %2834 = sbr.rel (%p2832) target = $region48
        $region47: #{tpu_custom_call.1} parent=31 // pred_region
          %s2835 = smul.u32 8, %s38
          %s2837 = ssub.s32 2048, 2048
          %2838 = vsyncadd %s2813, %s2837
          %s2839 = smul.addr %s2835, 2
          %s2840 = smul.addr %s37, 16
          %s2841 = sadd.s32 %s2839, %s2840
          %s2842 = smul.addr %s2841, 128
          %s2843 = scalar_lea.hbm %s3, %s2842
          %s2844 = sshll.u32 %s2816, 4
          %s2845 = int_to_ptr.vmem [resolvable:$true] %s2844
          %2850 = dma.vmem_to_hbm [thread:$0]  %s2845, 2048, %s2843, %s2813, 128, 128, 8
        $region48: #{tpu_custom_call.1} parent=31 // pred_fallthru
          _
        // Predicated region
        $region49: #{tpu_custom_call.1} parent=31 // pred_check
          %p2851 = pneg %p193
        $region50: #{tpu_custom_call.1} parent=31 // pred_check_branch
          %2853 = sbr.rel (%p2851) target = $region52
        $region51: #{tpu_custom_call.1} parent=31 // pred_region
          %s2854 = smul.u32 8, %s38
          %s2856 = ssub.s32 2048, 2048
          %2857 = vsyncadd %s2818, %s2856
          %s2858 = smul.addr %s2854, 2
          %s2859 = smul.addr %s37, 16
          %s2860 = sadd.s32 %s2858, %s2859
          %s2861 = smul.addr %s2860, 128
          %s2862 = scalar_lea.hbm %s4, %s2861
          %s2863 = sshll.u32 %s2821, 4
          %s2864 = int_to_ptr.vmem [resolvable:$true] %s2863
          %2869 = dma.vmem_to_hbm [thread:$0]  %s2864, 2048, %s2862, %s2818, 128, 128, 8
        $region52: #{tpu_custom_call.1} parent=31 // pred_fallthru
          _
        // Predicated region
        $region53: #{tpu_custom_call.1} parent=31 // pred_check
          %p2870 = pneg %p221
        $region54: #{tpu_custom_call.1} parent=31 // pred_check_branch
          %2872 = sbr.rel (%p2870) target = $region56
        $region55: #{tpu_custom_call.1} parent=31 // pred_region
          %s2873 = smul.u32 8, %s38
          %s2875 = ssub.s32 2048, 2048
          %2876 = vsyncadd %s2823, %s2875
          %s2877 = smul.addr %s2873, 2
          %s2878 = smul.addr %s37, 16
          %s2879 = sadd.s32 %s2877, %s2878
          %s2880 = smul.addr %s2879, 128
          %s2881 = scalar_lea.hbm %s5, %s2880
          %s2882 = sshll.u32 %s2826, 4
          %s2883 = int_to_ptr.vmem [resolvable:$true] %s2882
          %2888 = dma.vmem_to_hbm [thread:$0]  %s2883, 2048, %s2881, %s2823, 128, 128, 8
        $region56: #{tpu_custom_call.1} parent=31 // pred_fallthru
          _
        // Predicated region
        $region57: #{tpu_custom_call.1} parent=31 // pred_check
          %p2889 = pneg %p249
        $region58: #{tpu_custom_call.1} parent=31 // pred_check_branch
          %2891 = sbr.rel (%p2889) target = $region60
        $region59: #{tpu_custom_call.1} parent=31 // pred_region
          %s2893 = ssub.s32 16, 16
          %2894 = vsyncadd %s2828, %s2893
          %s2895 = sadd.s32 %s38, %s37
          %s2896 = smul.addr %s2895, 16
          %s2897 = scalar_lea.hbm %s6, %s2896
          %2900 = dma.smem_to_hbm %s2831, 16, %s2897, %s2828
        $region60: #{tpu_custom_call.1} parent=31 // pred_fallthru
          _
      $region32: #{tpu_custom_call.1} parent=5 // pred_fallthru
        _
      %p2901 = scmp.le.s32.totalorder 2, %s28
      // Predicated region
      $region61: #{tpu_custom_call.1} parent=5 // pred_check
        %p2902 = pneg %p2901
      $region62: #{tpu_custom_call.1} parent=5 // pred_check_branch
        %2904 = sbr.rel (%p2902) target = $region64
      $region63: #{tpu_custom_call.1} parent=5 // pred_region
        %s2905 = ssub.s32 %s28, 2
        // Predicated region
        $region65: #{tpu_custom_call.1} parent=63 // pred_check
          %p2906 = pneg %p171
        $region66: #{tpu_custom_call.1} parent=63 // pred_check_branch
          %2908 = sbr.rel (%p2906) target = $region68
        $region67: #{tpu_custom_call.1} parent=63 // pred_region
          %s2909 = sand.u32 %s156, 1
          %s2910 = scalar_lea.sflag [#allocation4], %s2909
          %s2911 = sand.u32 %s156, 1
          %s2912 = smul.addr %s2911, 128
          %s2913 = scalar_lea.vmem [#allocation9], %s2912
          %2914 = dma.done %s2910, 2048
        $region68: #{tpu_custom_call.1} parent=63 // pred_fallthru
          _
        // Predicated region
        $region69: #{tpu_custom_call.1} parent=63 // pred_check
          %p2915 = pneg %p199
        $region70: #{tpu_custom_call.1} parent=63 // pred_check_branch
          %2917 = sbr.rel (%p2915) target = $region72
        $region71: #{tpu_custom_call.1} parent=63 // pred_region
          %s2918 = sand.u32 %s34, 1
          %s2919 = scalar_lea.sflag [#allocation11], %s2918
          %s2920 = sand.u32 %s184, 1
          %s2921 = smul.addr %s2920, 128
          %s2922 = scalar_lea.vmem [#allocation10], %s2921
          %2923 = dma.done %s2919, 2048
        $region72: #{tpu_custom_call.1} parent=63 // pred_fallthru
          _
        // Predicated region
        $region73: #{tpu_custom_call.1} parent=63 // pred_check
          %p2924 = pneg %p227
        $region74: #{tpu_custom_call.1} parent=63 // pred_check_branch
          %2926 = sbr.rel (%p2924) target = $region76
        $region75: #{tpu_custom_call.1} parent=63 // pred_region
          %s2927 = sand.u32 %s34, 1
          %s2928 = scalar_lea.sflag [#allocation11], %s2927
          %s2929 = sand.u32 %s212, 1
          %s2930 = smul.addr %s2929, 128
          %s2931 = scalar_lea.vmem [#allocation12], %s2930
          %2932 = dma.done %s2928, 2048
        $region76: #{tpu_custom_call.1} parent=63 // pred_fallthru
          _
        // Predicated region
        $region77: #{tpu_custom_call.1} parent=63 // pred_check
          %p2933 = pneg %p255
        $region78: #{tpu_custom_call.1} parent=63 // pred_check_branch
          %2935 = sbr.rel (%p2933) target = $region80
        $region79: #{tpu_custom_call.1} parent=63 // pred_region
          %s2936 = sand.u32 %s240, 1
          %s2937 = scalar_lea.sflag [#allocation5], %s2936
          %s2938 = sand.u32 %s240, 1
          %s2939 = smul.addr %s2938, 128
          %s2940 = scalar_lea.smem [#allocation13], %s2939
          %2941 = dma.done %s2937, 16
        $region80: #{tpu_custom_call.1} parent=63 // pred_fallthru
          _
        %2942 = sfence
      $region64: #{tpu_custom_call.1} parent=5 // pred_fallthru
        _
    $region6: #{tpu_custom_call.1} parent=1 // loop_footer
      %s32 = sadd.s32 1, %s28
    $region7: #{tpu_custom_call.1} parent=1 // loop_footer_branch
      %27 = sbr.rel target = $region3
    $region8: #{tpu_custom_call.1} parent=1 // loop_exit
      _
    %2943 = vsyncpa [#allocation3], 1
    %s2944 = scalar_lea.sflag [#allocation3], 1
    %2945 = vsyncpa %s2944, 1
    %2946 = vsyncpa [#allocation7], 1
    %s2947 = scalar_lea.sflag [#allocation7], 1
    %2948 = vsyncpa %s2947, 1
    %2949 = vsyncpa [#allocation4], 1
    %s2950 = scalar_lea.sflag [#allocation4], 1
    %2951 = vsyncpa %s2950, 1
    %2952 = vsyncpa [#allocation11], 1
    %s2953 = scalar_lea.sflag [#allocation11], 1
    %2954 = vsyncpa %s2953, 1
    %2955 = vsyncpa [#allocation5], 1
    %s2956 = scalar_lea.sflag [#allocation5], 1
    %2957 = vsyncpa %s2956, 1

</llo_original>
